<compile_context>
chip_gen: v5e
topology: v5e:2x2
jax: 0.10.0
libtpu: 0.0.40
codegen_flags: <defaults>
</compile_context>

<pallas_src>
import math

import jax
import jax.numpy as jnp
from jax.experimental import pallas as pl
from jax.experimental.pallas import tpu as pltpu

# ---- CFG (the reference code depends on an external CFG object) ------------
CFG_LSTM_LAYERS = 2      # CFG.lstm_layers
CFG_WIDTH = 8            # CFG.width  (forward reads hidden state at t = width-1)

INPUT_DIM = 80
HIDDEN = 128
OUT_CLASSES = 2
OUT_PAD = 128            # lane-pad the tiny (B, 2) head output
BATCH_PAD_TO = 8         # sublane alignment


def _sigmoid(x):
    # sigmoid(x) = 0.5 * tanh(0.5 x) + 0.5 : single EUP op + VPU mul/add.
    return 0.5 * jnp.tanh(0.5 * x) + 0.5


# ---------------------------------------------------------------------------
# Fused kernel: software-pipelined 2-layer LSTM recurrence + FC head.
# ---------------------------------------------------------------------------
def _make_fused_kernel(n_steps, batch_pad, hidden):
    T, Bp, H = n_steps, batch_pad, hidden

    def lstm_gates(gates, c):
        i_g = _sigmoid(gates[:, 0 * H:1 * H])
        f_g = _sigmoid(gates[:, 1 * H:2 * H])
        g_g = jnp.tanh(gates[:, 2 * H:3 * H])
        o_g = _sigmoid(gates[:, 3 * H:4 * H])
        c_new = f_g * c + i_g * g_g
        h_new = o_g * jnp.tanh(c_new)
        return h_new, c_new

    def kernel(x_ref, wih0_ref, whh0_ref, b0_ref,
               wih1_ref, whh1_ref, b1_ref,
               fw1_ref, fb1_ref, fw2_ref, fb2_ref, fw3_ref, fb3_ref,
               out_ref, xw0_scr):
        # ---- Layer-0 input projection: one big off-critical-path matmul
        # (bf16 operands, f32 accumulate), immediately spilled to VMEM scratch
        # so it never occupies ~32 live vregs across the unrolled recurrence.
        xw0_scr[...] = (
            jnp.dot(x_ref[...], wih0_ref[...],
                    preferred_element_type=jnp.float32)
            + b0_ref[...])

        zeros = jnp.zeros((Bp, H), jnp.float32)
        h0, c0 = zeros, zeros
        h1, c1 = zeros, zeros
        h0_prev = zeros   # pipeline register: layer-0 output at step t-1

        # ---- Software-pipelined recurrence (fully unrolled, T+1 stages):
        # stage t computes layer-0 step t and layer-1 step t-1.
        for t in range(T + 1):
            if t < T:
                row = t * Bp                         # tile-aligned (Bp % 8 == 0)
                g0 = xw0_scr[row:row + Bp, :]
                if t > 0:                            # h0 == 0 at t == 0
                    g0 = g0 + jnp.dot(
                        h0.astype(jnp.bfloat16), whh0_ref[...],
                        preferred_element_type=jnp.float32)
                h0_new, c0 = lstm_gates(g0, c0)
            if t >= 1:
                # Layer-1 step t-1; its input projection depends only on
                # h0_{t-1}, not on the whole layer-0 sequence.
                g1 = jnp.dot(h0_prev.astype(jnp.bfloat16), wih1_ref[...],
                             preferred_element_type=jnp.float32) + b1_ref[...]
                if t > 1:                            # h1 == 0 on its first step
                    g1 = g1 + jnp.dot(
                        h1.astype(jnp.bfloat16), whh1_ref[...],
                        preferred_element_type=jnp.float32)
                h1, c1 = lstm_gates(g1, c1)
            if t < T:
                h0_prev = h0_new
                h0 = h0_new

        # ---- FC head on h1 at t = width-1:
        # 128 -> 64 -> ReLU -> [Dropout=id] -> 32 -> ReLU -> 2 (lane-padded to 128)
        z = jnp.dot(h1.astype(jnp.bfloat16), fw1_ref[...],
                    preferred_element_type=jnp.float32) + fb1_ref[...]
        z = jnp.maximum(z, 0.0)
        z = jnp.dot(z.astype(jnp.bfloat16), fw2_ref[...],
                    preferred_element_type=jnp.float32) + fb2_ref[...]
        z = jnp.maximum(z, 0.0)
        out = jnp.dot(z.astype(jnp.bfloat16), fw3_ref[...],
                      preferred_element_type=jnp.float32) + fb3_ref[...]
        out_ref[...] = out.astype(out_ref.dtype)     # (Bp, OUT_PAD), lane-dense

    return kernel


# ---------------------------------------------------------------------------
# One-time parameter preparation (outside jit): cast matmul operands to bf16,
# lane-pad the tiny head. Biases stay f32 (added to f32 accumulators).
# ---------------------------------------------------------------------------
def prepare_params(params):
    prep = {"lstm": [], "fc": []}
    for (wih, whh, b) in params["lstm"]:
        prep["lstm"].append((wih.astype(jnp.bfloat16),
                             whh.astype(jnp.bfloat16),
                             b))
    (w1, b1), (w2, b2), (w3, b3) = params["fc"]
    w3p = jnp.pad(w3, ((0, 0), (0, OUT_PAD - w3.shape[1])))
    b3p = jnp.pad(b3, ((0, 0), (0, OUT_PAD - b3.shape[1])))
    prep["fc"] = [(w1.astype(jnp.bfloat16), b1),
                  (w2.astype(jnp.bfloat16), b2),
                  (w3p.astype(jnp.bfloat16), b3p)]
    return prep


# ---------------------------------------------------------------------------
# Model forward: minimal layout glue + one fused Pallas launch.
# ---------------------------------------------------------------------------
def lstm_model_forward(prep_params, x_bdt):
    # x_bdt: (B, input_dim, T) -- matches the PyTorch module's input layout
    B, D, T_in = x_bdt.shape
    T = CFG_WIDTH                        # head reads t = width-1; LSTM is causal
    assert T_in >= T, (T_in, T)
    assert len(prep_params["lstm"]) == CFG_LSTM_LAYERS == 2
    H = prep_params["lstm"][0][1].shape[0]
    Bp = max(BATCH_PAD_TO, ((B + 7) // 8) * 8)

    # (B, D, T) -> time-major (T, Bp, D) -> (T*Bp, D) bf16 slab (sublane-aligned).
    x = jnp.transpose(x_bdt[:, :, :T], (2, 0, 1))
    x = jnp.pad(x, ((0, 0), (0, Bp - B), (0, 0)))
    x2d = x.reshape(T * Bp, D).astype(jnp.bfloat16)

    (wih0, whh0, b0), (wih1, whh1, b1) = prep_params["lstm"]
    (fw1, fb1), (fw2, fb2), (fw3, fb3) = prep_params["fc"]
    flat = [x2d, wih0, whh0, b0, wih1, whh1, b1,
            fw1, fb1, fw2, fb2, fw3, fb3]

    vmem = pl.BlockSpec(memory_space=pltpu.MemorySpace.VMEM)
    out_padded = pl.pallas_call(
        _make_fused_kernel(T, Bp, H),
        out_shape=jax.ShapeDtypeStruct((Bp, OUT_PAD), jnp.float32),
        in_specs=[vmem] * len(flat),
        out_specs=vmem,
        scratch_shapes=[pltpu.VMEM((T * Bp, 4 * H), jnp.float32)],
    )(*flat)

    return out_padded[:B, :OUT_CLASSES]


# ---------------------------------------------------------------------------
# Parameter init (deterministic, PyTorch-like uniform(-1/sqrt(fan), 1/sqrt(fan)))
# ---------------------------------------------------------------------------
def uniform(key, shape, bound):
    return jax.random.uniform(key, shape, jnp.float32, -bound, bound)


def init_params(key):
    params = {"lstm": []}
    k = 1.0 / math.sqrt(HIDDEN)
    for layer in range(CFG_LSTM_LAYERS):
        d_in = INPUT_DIM if layer == 0 else HIDDEN
        key, k1, k2, k3, k4 = jax.random.split(key, 5)
        wih = uniform(k1, (d_in, 4 * HIDDEN), k)       # stored transposed: (D, 4H)
        whh = uniform(k2, (HIDDEN, 4 * HIDDEN), k)     # (H, 4H)
        b_ih = uniform(k3, (1, 4 * HIDDEN), k)
        b_hh = uniform(k4, (1, 4 * HIDDEN), k)
        params["lstm"].append((wih, whh, b_ih + b_hh))
    # _fc: Linear(128,64) -> ReLU -> Dropout -> Linear(64,32) -> ReLU -> Linear(32,2)
    dims = [(128, 64), (64, 32), (32, 2)]
    fc = []
    for (fi, fo) in dims:
        key, kw, kb = jax.random.split(key, 3)
        bnd = 1.0 / math.sqrt(fi)
        fc.append((uniform(kw, (fi, fo), bnd), uniform(kb, (1, fo), bnd)))
    params["fc"] = fc
    return params


# ---------------------------------------------------------------------------
# References.
#  - matched_reference: mirrors the kernel's numerics (bf16 matmul operands,
#    f32 state, tanh-based sigmoid) -> tight tolerance.
#  - reference_forward: pure f32 -> loose tolerance (bounds bf16 drift).
# ---------------------------------------------------------------------------
def matched_reference_forward(prep_params, x_bdt):
    T = CFG_WIDTH
    x = jnp.transpose(x_bdt[:, :, :T], (2, 0, 1)).astype(jnp.bfloat16)  # (T,B,D)
    B = x.shape[1]
    h_in = x
    for (wih, whh, b) in prep_params["lstm"]:
        H = whh.shape[0]
        h = jnp.zeros((B, H), jnp.float32)
        c = jnp.zeros((B, H), jnp.float32)
        outs = []
        for t in range(T):
            gates = (jnp.dot(h_in[t].astype(jnp.bfloat16), wih,
                             preferred_element_type=jnp.float32) + b
                     + jnp.dot(h.astype(jnp.bfloat16), whh,
                               preferred_element_type=jnp.float32))
            i_g = _sigmoid(gates[:, :H])
            f_g = _sigmoid(gates[:, H:2 * H])
            g_g = jnp.tanh(gates[:, 2 * H:3 * H])
            o_g = _sigmoid(gates[:, 3 * H:])
            c = f_g * c + i_g * g_g
            h = o_g * jnp.tanh(c)
            outs.append(h)
        h_in = jnp.stack(outs, axis=0)
    h_last = h_in[T - 1]
    (fw1, fb1), (fw2, fb2), (fw3, fb3) = prep_params["fc"]
    z = jnp.maximum(jnp.dot(h_last.astype(jnp.bfloat16), fw1,
                            preferred_element_type=jnp.float32) + fb1, 0.0)
    z = jnp.maximum(jnp.dot(z.astype(jnp.bfloat16), fw2,
                            preferred_element_type=jnp.float32) + fb2, 0.0)
    out = jnp.dot(z.astype(jnp.bfloat16), fw3,
                  preferred_element_type=jnp.float32) + fb3
    return out[:, :OUT_CLASSES]


def reference_forward(params, x_bdt):
    x = jnp.transpose(x_bdt, (2, 0, 1)).astype(jnp.float32)   # (T, B, D)
    T, B, _ = x.shape
    h_seq = x
    for (wih, whh, b) in params["lstm"]:
        H = whh.shape[0]
        h = jnp.zeros((B, H), jnp.float32)
        c = jnp.zeros((B, H), jnp.float32)
        outs = []
        for t in range(T):
            gates = (h_seq[t] @ wih + b) + h @ whh
            i_g = jax.nn.sigmoid(gates[:, :H])
            f_g = jax.nn.sigmoid(gates[:, H:2 * H])
            g_g = jnp.tanh(gates[:, 2 * H:3 * H])
            o_g = jax.nn.sigmoid(gates[:, 3 * H:])
            c = f_g * c + i_g * g_g
            h = o_g * jnp.tanh(c)
            outs.append(h)
        h_seq = jnp.stack(outs, axis=0)
    h_last = h_seq[CFG_WIDTH - 1]
    (w1, b1), (w2, b2), (w3, b3) = params["fc"]
    z = jnp.maximum(h_last @ w1 + b1, 0.0)
    z = jnp.maximum(z @ w2 + b2, 0.0)
    return z @ w3 + b3


if __name__ == "__main__":
    key = jax.random.PRNGKey(0)
    key, pkey, xkey = jax.random.split(key, 3)

    params = init_params(pkey)
    prep = prepare_params(params)     # one-time bf16 cast / head padding

    B, T = 2, CFG_WIDTH
    x = jax.random.normal(xkey, (B, INPUT_DIM, T), jnp.float32)   # (B, input_dim, T)

    fwd = jax.jit(lstm_model_forward)
    out = jax.block_until_ready(fwd(prep, x))

    ref_matched = matched_reference_forward(prep, x)   # same bf16 numerics
    ref_f32 = reference_forward(params, x)             # pure f32

    assert out.shape == (B, OUT_CLASSES), out.shape
    assert jnp.allclose(out, ref_matched, atol=2e-3, rtol=2e-3), (out, ref_matched)
    assert jnp.allclose(out, ref_f32, atol=1e-1, rtol=1e-1), (out, ref_f32)

    print("KERNEL_OK")
</pallas_src>

<mosaic_0001>
module attributes {stable_mosaic.version = 11 : i64} {
  func.func @kernel(%arg0: memref<64x80xbf16, #tpu.memory_space<vmem>>, %arg1: memref<80x512xbf16, #tpu.memory_space<vmem>>, %arg2: memref<128x512xbf16, #tpu.memory_space<vmem>>, %arg3: memref<1x512xf32, #tpu.memory_space<vmem>>, %arg4: memref<128x512xbf16, #tpu.memory_space<vmem>>, %arg5: memref<128x512xbf16, #tpu.memory_space<vmem>>, %arg6: memref<1x512xf32, #tpu.memory_space<vmem>>, %arg7: memref<128x64xbf16, #tpu.memory_space<vmem>>, %arg8: memref<1x64xf32, #tpu.memory_space<vmem>>, %arg9: memref<64x32xbf16, #tpu.memory_space<vmem>>, %arg10: memref<1x32xf32, #tpu.memory_space<vmem>>, %arg11: memref<32x128xbf16, #tpu.memory_space<vmem>>, %arg12: memref<1x128xf32, #tpu.memory_space<vmem>>, %arg13: memref<8x128xf32, #tpu.memory_space<vmem>>, %arg14: memref<64x512xf32, #tpu.memory_space<vmem>>) attributes {dimension_semantics = [], scalar_prefetch = 0 : i64, scratch_operands = 1 : i64, tpu.core_type = #tpu.core_type<tc>} {
    %c0 = arith.constant 0 : index
    %c0_0 = arith.constant 0 : index
    %0 = vector.load %arg0[%c0, %c0_0] : memref<64x80xbf16, #tpu.memory_space<vmem>>, vector<64x80xbf16>
    %c0_1 = arith.constant 0 : index
    %c0_2 = arith.constant 0 : index
    %1 = vector.load %arg1[%c0_1, %c0_2] : memref<80x512xbf16, #tpu.memory_space<vmem>>, vector<80x512xbf16>
    %cst = arith.constant dense<0.000000e+00> : vector<64x512xf32>
    %2 = tpu.matmul %0, %1, %cst {dimension_numbers = #tpu.dot_dimension_numbers<[1], [0], [0], [1], [0, 0, 1, 1], [], []>} : vector<64x80xbf16>, vector<80x512xbf16>, vector<64x512xf32> -> vector<64x512xf32>
    %c0_3 = arith.constant 0 : index
    %c0_4 = arith.constant 0 : index
    %3 = vector.load %arg3[%c0_3, %c0_4] : memref<1x512xf32, #tpu.memory_space<vmem>>, vector<1x512xf32>
    %4 = vector.broadcast %3 : vector<1x512xf32> to vector<64x512xf32>
    %5 = arith.addf %2, %4 : vector<64x512xf32>
    %c0_5 = arith.constant 0 : index
    %c0_6 = arith.constant 0 : index
    %6 = vector.load %arg14[%c0_5, %c0_6] : memref<64x512xf32, #tpu.memory_space<vmem>>, vector<64x512xf32>
    tpu.vector_store %arg14[%c0_5, %c0_6], %5 {strides = array<i32>} : memref<64x512xf32, #tpu.memory_space<vmem>>, vector<64x512xf32>,
    %cst_7 = arith.constant 0.000000e+00 : f32
    %7 = vector.broadcast %cst_7 : f32 to vector<8x128xf32>
    %c0_8 = arith.constant 0 : index
    %c0_9 = arith.constant 0 : index
    %8 = vector.load %arg14[%c0_8, %c0_9] : memref<64x512xf32, #tpu.memory_space<vmem>>, vector<8x512xf32>
    %9 = vector.extract_strided_slice %8 {offsets = [0, 0], sizes = [8, 128], strides = [1, 1]} : vector<8x512xf32> to vector<8x128xf32>
    %cst_10 = arith.constant 5.000000e-01 : f32
    %10 = vector.broadcast %cst_10 : f32 to vector<8x128xf32>
    %11 = arith.mulf %10, %9 : vector<8x128xf32>
    %12 = math.tanh %11 : vector<8x128xf32>
    %cst_11 = arith.constant 5.000000e-01 : f32
    %13 = vector.broadcast %cst_11 : f32 to vector<8x128xf32>
    %14 = arith.mulf %13, %12 : vector<8x128xf32>
    %cst_12 = arith.constant 5.000000e-01 : f32
    %15 = vector.broadcast %cst_12 : f32 to vector<8x128xf32>
    %16 = arith.addf %14, %15 : vector<8x128xf32>
    %17 = vector.extract_strided_slice %8 {offsets = [0, 128], sizes = [8, 128], strides = [1, 1]} : vector<8x512xf32> to vector<8x128xf32>
    %cst_13 = arith.constant 5.000000e-01 : f32
    %18 = vector.broadcast %cst_13 : f32 to vector<8x128xf32>
    %19 = arith.mulf %18, %17 : vector<8x128xf32>
    %20 = math.tanh %19 : vector<8x128xf32>
    %cst_14 = arith.constant 5.000000e-01 : f32
    %21 = vector.broadcast %cst_14 : f32 to vector<8x128xf32>
    %22 = arith.mulf %21, %20 : vector<8x128xf32>
    %cst_15 = arith.constant 5.000000e-01 : f32
    %23 = vector.broadcast %cst_15 : f32 to vector<8x128xf32>
    %24 = arith.addf %22, %23 : vector<8x128xf32>
    %25 = vector.extract_strided_slice %8 {offsets = [0, 256], sizes = [8, 128], strides = [1, 1]} : vector<8x512xf32> to vector<8x128xf32>
    %26 = math.tanh %25 : vector<8x128xf32>
    %27 = vector.extract_strided_slice %8 {offsets = [0, 384], sizes = [8, 128], strides = [1, 1]} : vector<8x512xf32> to vector<8x128xf32>
    %cst_16 = arith.constant 5.000000e-01 : f32
    %28 = vector.broadcast %cst_16 : f32 to vector<8x128xf32>
    %29 = arith.mulf %28, %27 : vector<8x128xf32>
    %30 = math.tanh %29 : vector<8x128xf32>
    %cst_17 = arith.constant 5.000000e-01 : f32
    %31 = vector.broadcast %cst_17 : f32 to vector<8x128xf32>
    %32 = arith.mulf %31, %30 : vector<8x128xf32>
    %cst_18 = arith.constant 5.000000e-01 : f32
    %33 = vector.broadcast %cst_18 : f32 to vector<8x128xf32>
    %34 = arith.addf %32, %33 : vector<8x128xf32>
    %35 = arith.mulf %24, %7 : vector<8x128xf32>
    %36 = arith.mulf %16, %26 : vector<8x128xf32>
    %37 = arith.addf %35, %36 : vector<8x128xf32>
    %38 = math.tanh %37 : vector<8x128xf32>
    %39 = arith.mulf %34, %38 : vector<8x128xf32>
    %c8 = arith.constant 8 : index
    %c0_19 = arith.constant 0 : index
    %40 = vector.load %arg14[%c8, %c0_19] : memref<64x512xf32, #tpu.memory_space<vmem>>, vector<8x512xf32>
    %41 = arith.truncf %39 : vector<8x128xf32> to vector<8x128xbf16>
    %c0_20 = arith.constant 0 : index
    %c0_21 = arith.constant 0 : index
    %42 = vector.load %arg2[%c0_20, %c0_21] : memref<128x512xbf16, #tpu.memory_space<vmem>>, vector<128x512xbf16>
    %cst_22 = arith.constant dense<0.000000e+00> : vector<8x512xf32>
    %43 = tpu.matmul %41, %42, %cst_22 {dimension_numbers = #tpu.dot_dimension_numbers<[1], [0], [0], [1], [0, 0, 1, 1], [], []>} : vector<8x128xbf16>, vector<128x512xbf16>, vector<8x512xf32> -> vector<8x512xf32>
    %44 = arith.addf %40, %43 : vector<8x512xf32>
    %45 = vector.extract_strided_slice %44 {offsets = [0, 0], sizes = [8, 128], strides = [1, 1]} : vector<8x512xf32> to vector<8x128xf32>
    %cst_23 = arith.constant 5.000000e-01 : f32
    %46 = vector.broadcast %cst_23 : f32 to vector<8x128xf32>
    %47 = arith.mulf %46, %45 : vector<8x128xf32>
    %48 = math.tanh %47 : vector<8x128xf32>
    %cst_24 = arith.constant 5.000000e-01 : f32
    %49 = vector.broadcast %cst_24 : f32 to vector<8x128xf32>
    %50 = arith.mulf %49, %48 : vector<8x128xf32>
    %cst_25 = arith.constant 5.000000e-01 : f32
    %51 = vector.broadcast %cst_25 : f32 to vector<8x128xf32>
    %52 = arith.addf %50, %51 : vector<8x128xf32>
    %53 = vector.extract_strided_slice %44 {offsets = [0, 128], sizes = [8, 128], strides = [1, 1]} : vector<8x512xf32> to vector<8x128xf32>
    %cst_26 = arith.constant 5.000000e-01 : f32
    %54 = vector.broadcast %cst_26 : f32 to vector<8x128xf32>
    %55 = arith.mulf %54, %53 : vector<8x128xf32>
    %56 = math.tanh %55 : vector<8x128xf32>
    %cst_27 = arith.constant 5.000000e-01 : f32
    %57 = vector.broadcast %cst_27 : f32 to vector<8x128xf32>
    %58 = arith.mulf %57, %56 : vector<8x128xf32>
    %cst_28 = arith.constant 5.000000e-01 : f32
    %59 = vector.broadcast %cst_28 : f32 to vector<8x128xf32>
    %60 = arith.addf %58, %59 : vector<8x128xf32>
    %61 = vector.extract_strided_slice %44 {offsets = [0, 256], sizes = [8, 128], strides = [1, 1]} : vector<8x512xf32> to vector<8x128xf32>
    %62 = math.tanh %61 : vector<8x128xf32>
    %63 = vector.extract_strided_slice %44 {offsets = [0, 384], sizes = [8, 128], strides = [1, 1]} : vector<8x512xf32> to vector<8x128xf32>
    %cst_29 = arith.constant 5.000000e-01 : f32
    %64 = vector.broadcast %cst_29 : f32 to vector<8x128xf32>
    %65 = arith.mulf %64, %63 : vector<8x128xf32>
    %66 = math.tanh %65 : vector<8x128xf32>
    %cst_30 = arith.constant 5.000000e-01 : f32
    %67 = vector.broadcast %cst_30 : f32 to vector<8x128xf32>
    %68 = arith.mulf %67, %66 : vector<8x128xf32>
    %cst_31 = arith.constant 5.000000e-01 : f32
    %69 = vector.broadcast %cst_31 : f32 to vector<8x128xf32>
    %70 = arith.addf %68, %69 : vector<8x128xf32>
    %71 = arith.mulf %60, %37 : vector<8x128xf32>
    %72 = arith.mulf %52, %62 : vector<8x128xf32>
    %73 = arith.addf %71, %72 : vector<8x128xf32>
    %74 = math.tanh %73 : vector<8x128xf32>
    %75 = arith.mulf %70, %74 : vector<8x128xf32>
    %76 = arith.truncf %39 : vector<8x128xf32> to vector<8x128xbf16>
    %c0_32 = arith.constant 0 : index
    %c0_33 = arith.constant 0 : index
    %77 = vector.load %arg4[%c0_32, %c0_33] : memref<128x512xbf16, #tpu.memory_space<vmem>>, vector<128x512xbf16>
    %cst_34 = arith.constant dense<0.000000e+00> : vector<8x512xf32>
    %78 = tpu.matmul %76, %77, %cst_34 {dimension_numbers = #tpu.dot_dimension_numbers<[1], [0], [0], [1], [0, 0, 1, 1], [], []>} : vector<8x128xbf16>, vector<128x512xbf16>, vector<8x512xf32> -> vector<8x512xf32>
    %c0_35 = arith.constant 0 : index
    %c0_36 = arith.constant 0 : index
    %79 = vector.load %arg6[%c0_35, %c0_36] : memref<1x512xf32, #tpu.memory_space<vmem>>, vector<1x512xf32>
    %80 = vector.broadcast %79 : vector<1x512xf32> to vector<8x512xf32>
    %81 = arith.addf %78, %80 : vector<8x512xf32>
    %82 = vector.extract_strided_slice %81 {offsets = [0, 0], sizes = [8, 128], strides = [1, 1]} : vector<8x512xf32> to vector<8x128xf32>
    %cst_37 = arith.constant 5.000000e-01 : f32
    %83 = vector.broadcast %cst_37 : f32 to vector<8x128xf32>
    %84 = arith.mulf %83, %82 : vector<8x128xf32>
    %85 = math.tanh %84 : vector<8x128xf32>
    %cst_38 = arith.constant 5.000000e-01 : f32
    %86 = vector.broadcast %cst_38 : f32 to vector<8x128xf32>
    %87 = arith.mulf %86, %85 : vector<8x128xf32>
    %cst_39 = arith.constant 5.000000e-01 : f32
    %88 = vector.broadcast %cst_39 : f32 to vector<8x128xf32>
    %89 = arith.addf %87, %88 : vector<8x128xf32>
    %90 = vector.extract_strided_slice %81 {offsets = [0, 128], sizes = [8, 128], strides = [1, 1]} : vector<8x512xf32> to vector<8x128xf32>
    %cst_40 = arith.constant 5.000000e-01 : f32
    %91 = vector.broadcast %cst_40 : f32 to vector<8x128xf32>
    %92 = arith.mulf %91, %90 : vector<8x128xf32>
    %93 = math.tanh %92 : vector<8x128xf32>
    %cst_41 = arith.constant 5.000000e-01 : f32
    %94 = vector.broadcast %cst_41 : f32 to vector<8x128xf32>
    %95 = arith.mulf %94, %93 : vector<8x128xf32>
    %cst_42 = arith.constant 5.000000e-01 : f32
    %96 = vector.broadcast %cst_42 : f32 to vector<8x128xf32>
    %97 = arith.addf %95, %96 : vector<8x128xf32>
    %98 = vector.extract_strided_slice %81 {offsets = [0, 256], sizes = [8, 128], strides = [1, 1]} : vector<8x512xf32> to vector<8x128xf32>
    %99 = math.tanh %98 : vector<8x128xf32>
    %100 = vector.extract_strided_slice %81 {offsets = [0, 384], sizes = [8, 128], strides = [1, 1]} : vector<8x512xf32> to vector<8x128xf32>
    %cst_43 = arith.constant 5.000000e-01 : f32
    %101 = vector.broadcast %cst_43 : f32 to vector<8x128xf32>
    %102 = arith.mulf %101, %100 : vector<8x128xf32>
    %103 = math.tanh %102 : vector<8x128xf32>
    %cst_44 = arith.constant 5.000000e-01 : f32
    %104 = vector.broadcast %cst_44 : f32 to vector<8x128xf32>
    %105 = arith.mulf %104, %103 : vector<8x128xf32>
    %cst_45 = arith.constant 5.000000e-01 : f32
    %106 = vector.broadcast %cst_45 : f32 to vector<8x128xf32>
    %107 = arith.addf %105, %106 : vector<8x128xf32>
    %108 = arith.mulf %97, %7 : vector<8x128xf32>
    %109 = arith.mulf %89, %99 : vector<8x128xf32>
    %110 = arith.addf %108, %109 : vector<8x128xf32>
    %111 = math.tanh %110 : vector<8x128xf32>
    %112 = arith.mulf %107, %111 : vector<8x128xf32>
    %c16 = arith.constant 16 : index
    %c0_46 = arith.constant 0 : index
    %113 = vector.load %arg14[%c16, %c0_46] : memref<64x512xf32, #tpu.memory_space<vmem>>, vector<8x512xf32>
    %114 = arith.truncf %75 : vector<8x128xf32> to vector<8x128xbf16>
    %c0_47 = arith.constant 0 : index
    %c0_48 = arith.constant 0 : index
    %115 = vector.load %arg2[%c0_47, %c0_48] : memref<128x512xbf16, #tpu.memory_space<vmem>>, vector<128x512xbf16>
    %cst_49 = arith.constant dense<0.000000e+00> : vector<8x512xf32>
    %116 = tpu.matmul %114, %115, %cst_49 {dimension_numbers = #tpu.dot_dimension_numbers<[1], [0], [0], [1], [0, 0, 1, 1], [], []>} : vector<8x128xbf16>, vector<128x512xbf16>, vector<8x512xf32> -> vector<8x512xf32>
    %117 = arith.addf %113, %116 : vector<8x512xf32>
    %118 = vector.extract_strided_slice %117 {offsets = [0, 0], sizes = [8, 128], strides = [1, 1]} : vector<8x512xf32> to vector<8x128xf32>
    %cst_50 = arith.constant 5.000000e-01 : f32
    %119 = vector.broadcast %cst_50 : f32 to vector<8x128xf32>
    %120 = arith.mulf %119, %118 : vector<8x128xf32>
    %121 = math.tanh %120 : vector<8x128xf32>
    %cst_51 = arith.constant 5.000000e-01 : f32
    %122 = vector.broadcast %cst_51 : f32 to vector<8x128xf32>
    %123 = arith.mulf %122, %121 : vector<8x128xf32>
    %cst_52 = arith.constant 5.000000e-01 : f32
    %124 = vector.broadcast %cst_52 : f32 to vector<8x128xf32>
    %125 = arith.addf %123, %124 : vector<8x128xf32>
    %126 = vector.extract_strided_slice %117 {offsets = [0, 128], sizes = [8, 128], strides = [1, 1]} : vector<8x512xf32> to vector<8x128xf32>
    %cst_53 = arith.constant 5.000000e-01 : f32
    %127 = vector.broadcast %cst_53 : f32 to vector<8x128xf32>
    %128 = arith.mulf %127, %126 : vector<8x128xf32>
    %129 = math.tanh %128 : vector<8x128xf32>
    %cst_54 = arith.constant 5.000000e-01 : f32
    %130 = vector.broadcast %cst_54 : f32 to vector<8x128xf32>
    %131 = arith.mulf %130, %129 : vector<8x128xf32>
    %cst_55 = arith.constant 5.000000e-01 : f32
    %132 = vector.broadcast %cst_55 : f32 to vector<8x128xf32>
    %133 = arith.addf %131, %132 : vector<8x128xf32>
    %134 = vector.extract_strided_slice %117 {offsets = [0, 256], sizes = [8, 128], strides = [1, 1]} : vector<8x512xf32> to vector<8x128xf32>
    %135 = math.tanh %134 : vector<8x128xf32>
    %136 = vector.extract_strided_slice %117 {offsets = [0, 384], sizes = [8, 128], strides = [1, 1]} : vector<8x512xf32> to vector<8x128xf32>
    %cst_56 = arith.constant 5.000000e-01 : f32
    %137 = vector.broadcast %cst_56 : f32 to vector<8x128xf32>
    %138 = arith.mulf %137, %136 : vector<8x128xf32>
    %139 = math.tanh %138 : vector<8x128xf32>
    %cst_57 = arith.constant 5.000000e-01 : f32
    %140 = vector.broadcast %cst_57 : f32 to vector<8x128xf32>
    %141 = arith.mulf %140, %139 : vector<8x128xf32>
    %cst_58 = arith.constant 5.000000e-01 : f32
    %142 = vector.broadcast %cst_58 : f32 to vector<8x128xf32>
    %143 = arith.addf %141, %142 : vector<8x128xf32>
    %144 = arith.mulf %133, %73 : vector<8x128xf32>
    %145 = arith.mulf %125, %135 : vector<8x128xf32>
    %146 = arith.addf %144, %145 : vector<8x128xf32>
    %147 = math.tanh %146 : vector<8x128xf32>
    %148 = arith.mulf %143, %147 : vector<8x128xf32>
    %149 = arith.truncf %75 : vector<8x128xf32> to vector<8x128xbf16>
    %c0_59 = arith.constant 0 : index
    %c0_60 = arith.constant 0 : index
    %150 = vector.load %arg4[%c0_59, %c0_60] : memref<128x512xbf16, #tpu.memory_space<vmem>>, vector<128x512xbf16>
    %cst_61 = arith.constant dense<0.000000e+00> : vector<8x512xf32>
    %151 = tpu.matmul %149, %150, %cst_61 {dimension_numbers = #tpu.dot_dimension_numbers<[1], [0], [0], [1], [0, 0, 1, 1], [], []>} : vector<8x128xbf16>, vector<128x512xbf16>, vector<8x512xf32> -> vector<8x512xf32>
    %c0_62 = arith.constant 0 : index
    %c0_63 = arith.constant 0 : index
    %152 = vector.load %arg6[%c0_62, %c0_63] : memref<1x512xf32, #tpu.memory_space<vmem>>, vector<1x512xf32>
    %153 = vector.broadcast %152 : vector<1x512xf32> to vector<8x512xf32>
    %154 = arith.addf %151, %153 : vector<8x512xf32>
    %155 = arith.truncf %112 : vector<8x128xf32> to vector<8x128xbf16>
    %c0_64 = arith.constant 0 : index
    %c0_65 = arith.constant 0 : index
    %156 = vector.load %arg5[%c0_64, %c0_65] : memref<128x512xbf16, #tpu.memory_space<vmem>>, vector<128x512xbf16>
    %cst_66 = arith.constant dense<0.000000e+00> : vector<8x512xf32>
    %157 = tpu.matmul %155, %156, %cst_66 {dimension_numbers = #tpu.dot_dimension_numbers<[1], [0], [0], [1], [0, 0, 1, 1], [], []>} : vector<8x128xbf16>, vector<128x512xbf16>, vector<8x512xf32> -> vector<8x512xf32>
    %158 = arith.addf %154, %157 : vector<8x512xf32>
    %159 = vector.extract_strided_slice %158 {offsets = [0, 0], sizes = [8, 128], strides = [1, 1]} : vector<8x512xf32> to vector<8x128xf32>
    %cst_67 = arith.constant 5.000000e-01 : f32
    %160 = vector.broadcast %cst_67 : f32 to vector<8x128xf32>
    %161 = arith.mulf %160, %159 : vector<8x128xf32>
    %162 = math.tanh %161 : vector<8x128xf32>
    %cst_68 = arith.constant 5.000000e-01 : f32
    %163 = vector.broadcast %cst_68 : f32 to vector<8x128xf32>
    %164 = arith.mulf %163, %162 : vector<8x128xf32>
    %cst_69 = arith.constant 5.000000e-01 : f32
    %165 = vector.broadcast %cst_69 : f32 to vector<8x128xf32>
    %166 = arith.addf %164, %165 : vector<8x128xf32>
    %167 = vector.extract_strided_slice %158 {offsets = [0, 128], sizes = [8, 128], strides = [1, 1]} : vector<8x512xf32> to vector<8x128xf32>
    %cst_70 = arith.constant 5.000000e-01 : f32
    %168 = vector.broadcast %cst_70 : f32 to vector<8x128xf32>
    %169 = arith.mulf %168, %167 : vector<8x128xf32>
    %170 = math.tanh %169 : vector<8x128xf32>
    %cst_71 = arith.constant 5.000000e-01 : f32
    %171 = vector.broadcast %cst_71 : f32 to vector<8x128xf32>
    %172 = arith.mulf %171, %170 : vector<8x128xf32>
    %cst_72 = arith.constant 5.000000e-01 : f32
    %173 = vector.broadcast %cst_72 : f32 to vector<8x128xf32>
    %174 = arith.addf %172, %173 : vector<8x128xf32>
    %175 = vector.extract_strided_slice %158 {offsets = [0, 256], sizes = [8, 128], strides = [1, 1]} : vector<8x512xf32> to vector<8x128xf32>
    %176 = math.tanh %175 : vector<8x128xf32>
    %177 = vector.extract_strided_slice %158 {offsets = [0, 384], sizes = [8, 128], strides = [1, 1]} : vector<8x512xf32> to vector<8x128xf32>
    %cst_73 = arith.constant 5.000000e-01 : f32
    %178 = vector.broadcast %cst_73 : f32 to vector<8x128xf32>
    %179 = arith.mulf %178, %177 : vector<8x128xf32>
    %180 = math.tanh %179 : vector<8x128xf32>
    %cst_74 = arith.constant 5.000000e-01 : f32
    %181 = vector.broadcast %cst_74 : f32 to vector<8x128xf32>
    %182 = arith.mulf %181, %180 : vector<8x128xf32>
    %cst_75 = arith.constant 5.000000e-01 : f32
    %183 = vector.broadcast %cst_75 : f32 to vector<8x128xf32>
    %184 = arith.addf %182, %183 : vector<8x128xf32>
    %185 = arith.mulf %174, %110 : vector<8x128xf32>
    %186 = arith.mulf %166, %176 : vector<8x128xf32>
    %187 = arith.addf %185, %186 : vector<8x128xf32>
    %188 = math.tanh %187 : vector<8x128xf32>
    %189 = arith.mulf %184, %188 : vector<8x128xf32>
    %c24 = arith.constant 24 : index
    %c0_76 = arith.constant 0 : index
    %190 = vector.load %arg14[%c24, %c0_76] : memref<64x512xf32, #tpu.memory_space<vmem>>, vector<8x512xf32>
    %191 = arith.truncf %148 : vector<8x128xf32> to vector<8x128xbf16>
    %c0_77 = arith.constant 0 : index
    %c0_78 = arith.constant 0 : index
    %192 = vector.load %arg2[%c0_77, %c0_78] : memref<128x512xbf16, #tpu.memory_space<vmem>>, vector<128x512xbf16>
    %cst_79 = arith.constant dense<0.000000e+00> : vector<8x512xf32>
    %193 = tpu.matmul %191, %192, %cst_79 {dimension_numbers = #tpu.dot_dimension_numbers<[1], [0], [0], [1], [0, 0, 1, 1], [], []>} : vector<8x128xbf16>, vector<128x512xbf16>, vector<8x512xf32> -> vector<8x512xf32>
    %194 = arith.addf %190, %193 : vector<8x512xf32>
    %195 = vector.extract_strided_slice %194 {offsets = [0, 0], sizes = [8, 128], strides = [1, 1]} : vector<8x512xf32> to vector<8x128xf32>
    %cst_80 = arith.constant 5.000000e-01 : f32
    %196 = vector.broadcast %cst_80 : f32 to vector<8x128xf32>
    %197 = arith.mulf %196, %195 : vector<8x128xf32>
    %198 = math.tanh %197 : vector<8x128xf32>
    %cst_81 = arith.constant 5.000000e-01 : f32
    %199 = vector.broadcast %cst_81 : f32 to vector<8x128xf32>
    %200 = arith.mulf %199, %198 : vector<8x128xf32>
    %cst_82 = arith.constant 5.000000e-01 : f32
    %201 = vector.broadcast %cst_82 : f32 to vector<8x128xf32>
    %202 = arith.addf %200, %201 : vector<8x128xf32>
    %203 = vector.extract_strided_slice %194 {offsets = [0, 128], sizes = [8, 128], strides = [1, 1]} : vector<8x512xf32> to vector<8x128xf32>
    %cst_83 = arith.constant 5.000000e-01 : f32
    %204 = vector.broadcast %cst_83 : f32 to vector<8x128xf32>
    %205 = arith.mulf %204, %203 : vector<8x128xf32>
    %206 = math.tanh %205 : vector<8x128xf32>
    %cst_84 = arith.constant 5.000000e-01 : f32
    %207 = vector.broadcast %cst_84 : f32 to vector<8x128xf32>
    %208 = arith.mulf %207, %206 : vector<8x128xf32>
    %cst_85 = arith.constant 5.000000e-01 : f32
    %209 = vector.broadcast %cst_85 : f32 to vector<8x128xf32>
    %210 = arith.addf %208, %209 : vector<8x128xf32>
    %211 = vector.extract_strided_slice %194 {offsets = [0, 256], sizes = [8, 128], strides = [1, 1]} : vector<8x512xf32> to vector<8x128xf32>
    %212 = math.tanh %211 : vector<8x128xf32>
    %213 = vector.extract_strided_slice %194 {offsets = [0, 384], sizes = [8, 128], strides = [1, 1]} : vector<8x512xf32> to vector<8x128xf32>
    %cst_86 = arith.constant 5.000000e-01 : f32
    %214 = vector.broadcast %cst_86 : f32 to vector<8x128xf32>
    %215 = arith.mulf %214, %213 : vector<8x128xf32>
    %216 = math.tanh %215 : vector<8x128xf32>
    %cst_87 = arith.constant 5.000000e-01 : f32
    %217 = vector.broadcast %cst_87 : f32 to vector<8x128xf32>
    %218 = arith.mulf %217, %216 : vector<8x128xf32>
    %cst_88 = arith.constant 5.000000e-01 : f32
    %219 = vector.broadcast %cst_88 : f32 to vector<8x128xf32>
    %220 = arith.addf %218, %219 : vector<8x128xf32>
    %221 = arith.mulf %210, %146 : vector<8x128xf32>
    %222 = arith.mulf %202, %212 : vector<8x128xf32>
    %223 = arith.addf %221, %222 : vector<8x128xf32>
    %224 = math.tanh %223 : vector<8x128xf32>
    %225 = arith.mulf %220, %224 : vector<8x128xf32>
    %226 = arith.truncf %148 : vector<8x128xf32> to vector<8x128xbf16>
    %c0_89 = arith.constant 0 : index
    %c0_90 = arith.constant 0 : index
    %227 = vector.load %arg4[%c0_89, %c0_90] : memref<128x512xbf16, #tpu.memory_space<vmem>>, vector<128x512xbf16>
    %cst_91 = arith.constant dense<0.000000e+00> : vector<8x512xf32>
    %228 = tpu.matmul %226, %227, %cst_91 {dimension_numbers = #tpu.dot_dimension_numbers<[1], [0], [0], [1], [0, 0, 1, 1], [], []>} : vector<8x128xbf16>, vector<128x512xbf16>, vector<8x512xf32> -> vector<8x512xf32>
    %c0_92 = arith.constant 0 : index
    %c0_93 = arith.constant 0 : index
    %229 = vector.load %arg6[%c0_92, %c0_93] : memref<1x512xf32, #tpu.memory_space<vmem>>, vector<1x512xf32>
    %230 = vector.broadcast %229 : vector<1x512xf32> to vector<8x512xf32>
    %231 = arith.addf %228, %230 : vector<8x512xf32>
    %232 = arith.truncf %189 : vector<8x128xf32> to vector<8x128xbf16>
    %c0_94 = arith.constant 0 : index
    %c0_95 = arith.constant 0 : index
    %233 = vector.load %arg5[%c0_94, %c0_95] : memref<128x512xbf16, #tpu.memory_space<vmem>>, vector<128x512xbf16>
    %cst_96 = arith.constant dense<0.000000e+00> : vector<8x512xf32>
    %234 = tpu.matmul %232, %233, %cst_96 {dimension_numbers = #tpu.dot_dimension_numbers<[1], [0], [0], [1], [0, 0, 1, 1], [], []>} : vector<8x128xbf16>, vector<128x512xbf16>, vector<8x512xf32> -> vector<8x512xf32>
    %235 = arith.addf %231, %234 : vector<8x512xf32>
    %236 = vector.extract_strided_slice %235 {offsets = [0, 0], sizes = [8, 128], strides = [1, 1]} : vector<8x512xf32> to vector<8x128xf32>
    %cst_97 = arith.constant 5.000000e-01 : f32
    %237 = vector.broadcast %cst_97 : f32 to vector<8x128xf32>
    %238 = arith.mulf %237, %236 : vector<8x128xf32>
    %239 = math.tanh %238 : vector<8x128xf32>
    %cst_98 = arith.constant 5.000000e-01 : f32
    %240 = vector.broadcast %cst_98 : f32 to vector<8x128xf32>
    %241 = arith.mulf %240, %239 : vector<8x128xf32>
    %cst_99 = arith.constant 5.000000e-01 : f32
    %242 = vector.broadcast %cst_99 : f32 to vector<8x128xf32>
    %243 = arith.addf %241, %242 : vector<8x128xf32>
    %244 = vector.extract_strided_slice %235 {offsets = [0, 128], sizes = [8, 128], strides = [1, 1]} : vector<8x512xf32> to vector<8x128xf32>
    %cst_100 = arith.constant 5.000000e-01 : f32
    %245 = vector.broadcast %cst_100 : f32 to vector<8x128xf32>
    %246 = arith.mulf %245, %244 : vector<8x128xf32>
    %247 = math.tanh %246 : vector<8x128xf32>
    %cst_101 = arith.constant 5.000000e-01 : f32
    %248 = vector.broadcast %cst_101 : f32 to vector<8x128xf32>
    %249 = arith.mulf %248, %247 : vector<8x128xf32>
    %cst_102 = arith.constant 5.000000e-01 : f32
    %250 = vector.broadcast %cst_102 : f32 to vector<8x128xf32>
    %251 = arith.addf %249, %250 : vector<8x128xf32>
    %252 = vector.extract_strided_slice %235 {offsets = [0, 256], sizes = [8, 128], strides = [1, 1]} : vector<8x512xf32> to vector<8x128xf32>
    %253 = math.tanh %252 : vector<8x128xf32>
    %254 = vector.extract_strided_slice %235 {offsets = [0, 384], sizes = [8, 128], strides = [1, 1]} : vector<8x512xf32> to vector<8x128xf32>
    %cst_103 = arith.constant 5.000000e-01 : f32
    %255 = vector.broadcast %cst_103 : f32 to vector<8x128xf32>
    %256 = arith.mulf %255, %254 : vector<8x128xf32>
    %257 = math.tanh %256 : vector<8x128xf32>
    %cst_104 = arith.constant 5.000000e-01 : f32
    %258 = vector.broadcast %cst_104 : f32 to vector<8x128xf32>
    %259 = arith.mulf %258, %257 : vector<8x128xf32>
    %cst_105 = arith.constant 5.000000e-01 : f32
    %260 = vector.broadcast %cst_105 : f32 to vector<8x128xf32>
    %261 = arith.addf %259, %260 : vector<8x128xf32>
    %262 = arith.mulf %251, %187 : vector<8x128xf32>
    %263 = arith.mulf %243, %253 : vector<8x128xf32>
    %264 = arith.addf %262, %263 : vector<8x128xf32>
    %265 = math.tanh %264 : vector<8x128xf32>
    %266 = arith.mulf %261, %265 : vector<8x128xf32>
    %c32 = arith.constant 32 : index
    %c0_106 = arith.constant 0 : index
    %267 = vector.load %arg14[%c32, %c0_106] : memref<64x512xf32, #tpu.memory_space<vmem>>, vector<8x512xf32>
    %268 = arith.truncf %225 : vector<8x128xf32> to vector<8x128xbf16>
    %c0_107 = arith.constant 0 : index
    %c0_108 = arith.constant 0 : index
    %269 = vector.load %arg2[%c0_107, %c0_108] : memref<128x512xbf16, #tpu.memory_space<vmem>>, vector<128x512xbf16>
    %cst_109 = arith.constant dense<0.000000e+00> : vector<8x512xf32>
    %270 = tpu.matmul %268, %269, %cst_109 {dimension_numbers = #tpu.dot_dimension_numbers<[1], [0], [0], [1], [0, 0, 1, 1], [], []>} : vector<8x128xbf16>, vector<128x512xbf16>, vector<8x512xf32> -> vector<8x512xf32>
    %271 = arith.addf %267, %270 : vector<8x512xf32>
    %272 = vector.extract_strided_slice %271 {offsets = [0, 0], sizes = [8, 128], strides = [1, 1]} : vector<8x512xf32> to vector<8x128xf32>
    %cst_110 = arith.constant 5.000000e-01 : f32
    %273 = vector.broadcast %cst_110 : f32 to vector<8x128xf32>
    %274 = arith.mulf %273, %272 : vector<8x128xf32>
    %275 = math.tanh %274 : vector<8x128xf32>
    %cst_111 = arith.constant 5.000000e-01 : f32
    %276 = vector.broadcast %cst_111 : f32 to vector<8x128xf32>
    %277 = arith.mulf %276, %275 : vector<8x128xf32>
    %cst_112 = arith.constant 5.000000e-01 : f32
    %278 = vector.broadcast %cst_112 : f32 to vector<8x128xf32>
    %279 = arith.addf %277, %278 : vector<8x128xf32>
    %280 = vector.extract_strided_slice %271 {offsets = [0, 128], sizes = [8, 128], strides = [1, 1]} : vector<8x512xf32> to vector<8x128xf32>
    %cst_113 = arith.constant 5.000000e-01 : f32
    %281 = vector.broadcast %cst_113 : f32 to vector<8x128xf32>
    %282 = arith.mulf %281, %280 : vector<8x128xf32>
    %283 = math.tanh %282 : vector<8x128xf32>
    %cst_114 = arith.constant 5.000000e-01 : f32
    %284 = vector.broadcast %cst_114 : f32 to vector<8x128xf32>
    %285 = arith.mulf %284, %283 : vector<8x128xf32>
    %cst_115 = arith.constant 5.000000e-01 : f32
    %286 = vector.broadcast %cst_115 : f32 to vector<8x128xf32>
    %287 = arith.addf %285, %286 : vector<8x128xf32>
    %288 = vector.extract_strided_slice %271 {offsets = [0, 256], sizes = [8, 128], strides = [1, 1]} : vector<8x512xf32> to vector<8x128xf32>
    %289 = math.tanh %288 : vector<8x128xf32>
    %290 = vector.extract_strided_slice %271 {offsets = [0, 384], sizes = [8, 128], strides = [1, 1]} : vector<8x512xf32> to vector<8x128xf32>
    %cst_116 = arith.constant 5.000000e-01 : f32
    %291 = vector.broadcast %cst_116 : f32 to vector<8x128xf32>
    %292 = arith.mulf %291, %290 : vector<8x128xf32>
    %293 = math.tanh %292 : vector<8x128xf32>
    %cst_117 = arith.constant 5.000000e-01 : f32
    %294 = vector.broadcast %cst_117 : f32 to vector<8x128xf32>
    %295 = arith.mulf %294, %293 : vector<8x128xf32>
    %cst_118 = arith.constant 5.000000e-01 : f32
    %296 = vector.broadcast %cst_118 : f32 to vector<8x128xf32>
    %297 = arith.addf %295, %296 : vector<8x128xf32>
    %298 = arith.mulf %287, %223 : vector<8x128xf32>
    %299 = arith.mulf %279, %289 : vector<8x128xf32>
    %300 = arith.addf %298, %299 : vector<8x128xf32>
    %301 = math.tanh %300 : vector<8x128xf32>
    %302 = arith.mulf %297, %301 : vector<8x128xf32>
    %303 = arith.truncf %225 : vector<8x128xf32> to vector<8x128xbf16>
    %c0_119 = arith.constant 0 : index
    %c0_120 = arith.constant 0 : index
    %304 = vector.load %arg4[%c0_119, %c0_120] : memref<128x512xbf16, #tpu.memory_space<vmem>>, vector<128x512xbf16>
    %cst_121 = arith.constant dense<0.000000e+00> : vector<8x512xf32>
    %305 = tpu.matmul %303, %304, %cst_121 {dimension_numbers = #tpu.dot_dimension_numbers<[1], [0], [0], [1], [0, 0, 1, 1], [], []>} : vector<8x128xbf16>, vector<128x512xbf16>, vector<8x512xf32> -> vector<8x512xf32>
    %c0_122 = arith.constant 0 : index
    %c0_123 = arith.constant 0 : index
    %306 = vector.load %arg6[%c0_122, %c0_123] : memref<1x512xf32, #tpu.memory_space<vmem>>, vector<1x512xf32>
    %307 = vector.broadcast %306 : vector<1x512xf32> to vector<8x512xf32>
    %308 = arith.addf %305, %307 : vector<8x512xf32>
    %309 = arith.truncf %266 : vector<8x128xf32> to vector<8x128xbf16>
    %c0_124 = arith.constant 0 : index
    %c0_125 = arith.constant 0 : index
    %310 = vector.load %arg5[%c0_124, %c0_125] : memref<128x512xbf16, #tpu.memory_space<vmem>>, vector<128x512xbf16>
    %cst_126 = arith.constant dense<0.000000e+00> : vector<8x512xf32>
    %311 = tpu.matmul %309, %310, %cst_126 {dimension_numbers = #tpu.dot_dimension_numbers<[1], [0], [0], [1], [0, 0, 1, 1], [], []>} : vector<8x128xbf16>, vector<128x512xbf16>, vector<8x512xf32> -> vector<8x512xf32>
    %312 = arith.addf %308, %311 : vector<8x512xf32>
    %313 = vector.extract_strided_slice %312 {offsets = [0, 0], sizes = [8, 128], strides = [1, 1]} : vector<8x512xf32> to vector<8x128xf32>
    %cst_127 = arith.constant 5.000000e-01 : f32
    %314 = vector.broadcast %cst_127 : f32 to vector<8x128xf32>
    %315 = arith.mulf %314, %313 : vector<8x128xf32>
    %316 = math.tanh %315 : vector<8x128xf32>
    %cst_128 = arith.constant 5.000000e-01 : f32
    %317 = vector.broadcast %cst_128 : f32 to vector<8x128xf32>
    %318 = arith.mulf %317, %316 : vector<8x128xf32>
    %cst_129 = arith.constant 5.000000e-01 : f32
    %319 = vector.broadcast %cst_129 : f32 to vector<8x128xf32>
    %320 = arith.addf %318, %319 : vector<8x128xf32>
    %321 = vector.extract_strided_slice %312 {offsets = [0, 128], sizes = [8, 128], strides = [1, 1]} : vector<8x512xf32> to vector<8x128xf32>
    %cst_130 = arith.constant 5.000000e-01 : f32
    %322 = vector.broadcast %cst_130 : f32 to vector<8x128xf32>
    %323 = arith.mulf %322, %321 : vector<8x128xf32>
    %324 = math.tanh %323 : vector<8x128xf32>
    %cst_131 = arith.constant 5.000000e-01 : f32
    %325 = vector.broadcast %cst_131 : f32 to vector<8x128xf32>
    %326 = arith.mulf %325, %324 : vector<8x128xf32>
    %cst_132 = arith.constant 5.000000e-01 : f32
    %327 = vector.broadcast %cst_132 : f32 to vector<8x128xf32>
    %328 = arith.addf %326, %327 : vector<8x128xf32>
    %329 = vector.extract_strided_slice %312 {offsets = [0, 256], sizes = [8, 128], strides = [1, 1]} : vector<8x512xf32> to vector<8x128xf32>
    %330 = math.tanh %329 : vector<8x128xf32>
    %331 = vector.extract_strided_slice %312 {offsets = [0, 384], sizes = [8, 128], strides = [1, 1]} : vector<8x512xf32> to vector<8x128xf32>
    %cst_133 = arith.constant 5.000000e-01 : f32
    %332 = vector.broadcast %cst_133 : f32 to vector<8x128xf32>
    %333 = arith.mulf %332, %331 : vector<8x128xf32>
    %334 = math.tanh %333 : vector<8x128xf32>
    %cst_134 = arith.constant 5.000000e-01 : f32
    %335 = vector.broadcast %cst_134 : f32 to vector<8x128xf32>
    %336 = arith.mulf %335, %334 : vector<8x128xf32>
    %cst_135 = arith.constant 5.000000e-01 : f32
    %337 = vector.broadcast %cst_135 : f32 to vector<8x128xf32>
    %338 = arith.addf %336, %337 : vector<8x128xf32>
    %339 = arith.mulf %328, %264 : vector<8x128xf32>
    %340 = arith.mulf %320, %330 : vector<8x128xf32>
    %341 = arith.addf %339, %340 : vector<8x128xf32>
    %342 = math.tanh %341 : vector<8x128xf32>
    %343 = arith.mulf %338, %342 : vector<8x128xf32>
    %c40 = arith.constant 40 : index
    %c0_136 = arith.constant 0 : index
    %344 = vector.load %arg14[%c40, %c0_136] : memref<64x512xf32, #tpu.memory_space<vmem>>, vector<8x512xf32>
    %345 = arith.truncf %302 : vector<8x128xf32> to vector<8x128xbf16>
    %c0_137 = arith.constant 0 : index
    %c0_138 = arith.constant 0 : index
    %346 = vector.load %arg2[%c0_137, %c0_138] : memref<128x512xbf16, #tpu.memory_space<vmem>>, vector<128x512xbf16>
    %cst_139 = arith.constant dense<0.000000e+00> : vector<8x512xf32>
    %347 = tpu.matmul %345, %346, %cst_139 {dimension_numbers = #tpu.dot_dimension_numbers<[1], [0], [0], [1], [0, 0, 1, 1], [], []>} : vector<8x128xbf16>, vector<128x512xbf16>, vector<8x512xf32> -> vector<8x512xf32>
    %348 = arith.addf %344, %347 : vector<8x512xf32>
    %349 = vector.extract_strided_slice %348 {offsets = [0, 0], sizes = [8, 128], strides = [1, 1]} : vector<8x512xf32> to vector<8x128xf32>
    %cst_140 = arith.constant 5.000000e-01 : f32
    %350 = vector.broadcast %cst_140 : f32 to vector<8x128xf32>
    %351 = arith.mulf %350, %349 : vector<8x128xf32>
    %352 = math.tanh %351 : vector<8x128xf32>
    %cst_141 = arith.constant 5.000000e-01 : f32
    %353 = vector.broadcast %cst_141 : f32 to vector<8x128xf32>
    %354 = arith.mulf %353, %352 : vector<8x128xf32>
    %cst_142 = arith.constant 5.000000e-01 : f32
    %355 = vector.broadcast %cst_142 : f32 to vector<8x128xf32>
    %356 = arith.addf %354, %355 : vector<8x128xf32>
    %357 = vector.extract_strided_slice %348 {offsets = [0, 128], sizes = [8, 128], strides = [1, 1]} : vector<8x512xf32> to vector<8x128xf32>
    %cst_143 = arith.constant 5.000000e-01 : f32
    %358 = vector.broadcast %cst_143 : f32 to vector<8x128xf32>
    %359 = arith.mulf %358, %357 : vector<8x128xf32>
    %360 = math.tanh %359 : vector<8x128xf32>
    %cst_144 = arith.constant 5.000000e-01 : f32
    %361 = vector.broadcast %cst_144 : f32 to vector<8x128xf32>
    %362 = arith.mulf %361, %360 : vector<8x128xf32>
    %cst_145 = arith.constant 5.000000e-01 : f32
    %363 = vector.broadcast %cst_145 : f32 to vector<8x128xf32>
    %364 = arith.addf %362, %363 : vector<8x128xf32>
    %365 = vector.extract_strided_slice %348 {offsets = [0, 256], sizes = [8, 128], strides = [1, 1]} : vector<8x512xf32> to vector<8x128xf32>
    %366 = math.tanh %365 : vector<8x128xf32>
    %367 = vector.extract_strided_slice %348 {offsets = [0, 384], sizes = [8, 128], strides = [1, 1]} : vector<8x512xf32> to vector<8x128xf32>
    %cst_146 = arith.constant 5.000000e-01 : f32
    %368 = vector.broadcast %cst_146 : f32 to vector<8x128xf32>
    %369 = arith.mulf %368, %367 : vector<8x128xf32>
    %370 = math.tanh %369 : vector<8x128xf32>
    %cst_147 = arith.constant 5.000000e-01 : f32
    %371 = vector.broadcast %cst_147 : f32 to vector<8x128xf32>
    %372 = arith.mulf %371, %370 : vector<8x128xf32>
    %cst_148 = arith.constant 5.000000e-01 : f32
    %373 = vector.broadcast %cst_148 : f32 to vector<8x128xf32>
    %374 = arith.addf %372, %373 : vector<8x128xf32>
    %375 = arith.mulf %364, %300 : vector<8x128xf32>
    %376 = arith.mulf %356, %366 : vector<8x128xf32>
    %377 = arith.addf %375, %376 : vector<8x128xf32>
    %378 = math.tanh %377 : vector<8x128xf32>
    %379 = arith.mulf %374, %378 : vector<8x128xf32>
    %380 = arith.truncf %302 : vector<8x128xf32> to vector<8x128xbf16>
    %c0_149 = arith.constant 0 : index
    %c0_150 = arith.constant 0 : index
    %381 = vector.load %arg4[%c0_149, %c0_150] : memref<128x512xbf16, #tpu.memory_space<vmem>>, vector<128x512xbf16>
    %cst_151 = arith.constant dense<0.000000e+00> : vector<8x512xf32>
    %382 = tpu.matmul %380, %381, %cst_151 {dimension_numbers = #tpu.dot_dimension_numbers<[1], [0], [0], [1], [0, 0, 1, 1], [], []>} : vector<8x128xbf16>, vector<128x512xbf16>, vector<8x512xf32> -> vector<8x512xf32>
    %c0_152 = arith.constant 0 : index
    %c0_153 = arith.constant 0 : index
    %383 = vector.load %arg6[%c0_152, %c0_153] : memref<1x512xf32, #tpu.memory_space<vmem>>, vector<1x512xf32>
    %384 = vector.broadcast %383 : vector<1x512xf32> to vector<8x512xf32>
    %385 = arith.addf %382, %384 : vector<8x512xf32>
    %386 = arith.truncf %343 : vector<8x128xf32> to vector<8x128xbf16>
    %c0_154 = arith.constant 0 : index
    %c0_155 = arith.constant 0 : index
    %387 = vector.load %arg5[%c0_154, %c0_155] : memref<128x512xbf16, #tpu.memory_space<vmem>>, vector<128x512xbf16>
    %cst_156 = arith.constant dense<0.000000e+00> : vector<8x512xf32>
    %388 = tpu.matmul %386, %387, %cst_156 {dimension_numbers = #tpu.dot_dimension_numbers<[1], [0], [0], [1], [0, 0, 1, 1], [], []>} : vector<8x128xbf16>, vector<128x512xbf16>, vector<8x512xf32> -> vector<8x512xf32>
    %389 = arith.addf %385, %388 : vector<8x512xf32>
    %390 = vector.extract_strided_slice %389 {offsets = [0, 0], sizes = [8, 128], strides = [1, 1]} : vector<8x512xf32> to vector<8x128xf32>
    %cst_157 = arith.constant 5.000000e-01 : f32
    %391 = vector.broadcast %cst_157 : f32 to vector<8x128xf32>
    %392 = arith.mulf %391, %390 : vector<8x128xf32>
    %393 = math.tanh %392 : vector<8x128xf32>
    %cst_158 = arith.constant 5.000000e-01 : f32
    %394 = vector.broadcast %cst_158 : f32 to vector<8x128xf32>
    %395 = arith.mulf %394, %393 : vector<8x128xf32>
    %cst_159 = arith.constant 5.000000e-01 : f32
    %396 = vector.broadcast %cst_159 : f32 to vector<8x128xf32>
    %397 = arith.addf %395, %396 : vector<8x128xf32>
    %398 = vector.extract_strided_slice %389 {offsets = [0, 128], sizes = [8, 128], strides = [1, 1]} : vector<8x512xf32> to vector<8x128xf32>
    %cst_160 = arith.constant 5.000000e-01 : f32
    %399 = vector.broadcast %cst_160 : f32 to vector<8x128xf32>
    %400 = arith.mulf %399, %398 : vector<8x128xf32>
    %401 = math.tanh %400 : vector<8x128xf32>
    %cst_161 = arith.constant 5.000000e-01 : f32
    %402 = vector.broadcast %cst_161 : f32 to vector<8x128xf32>
    %403 = arith.mulf %402, %401 : vector<8x128xf32>
    %cst_162 = arith.constant 5.000000e-01 : f32
    %404 = vector.broadcast %cst_162 : f32 to vector<8x128xf32>
    %405 = arith.addf %403, %404 : vector<8x128xf32>
    %406 = vector.extract_strided_slice %389 {offsets = [0, 256], sizes = [8, 128], strides = [1, 1]} : vector<8x512xf32> to vector<8x128xf32>
    %407 = math.tanh %406 : vector<8x128xf32>
    %408 = vector.extract_strided_slice %389 {offsets = [0, 384], sizes = [8, 128], strides = [1, 1]} : vector<8x512xf32> to vector<8x128xf32>
    %cst_163 = arith.constant 5.000000e-01 : f32
    %409 = vector.broadcast %cst_163 : f32 to vector<8x128xf32>
    %410 = arith.mulf %409, %408 : vector<8x128xf32>
    %411 = math.tanh %410 : vector<8x128xf32>
    %cst_164 = arith.constant 5.000000e-01 : f32
    %412 = vector.broadcast %cst_164 : f32 to vector<8x128xf32>
    %413 = arith.mulf %412, %411 : vector<8x128xf32>
    %cst_165 = arith.constant 5.000000e-01 : f32
    %414 = vector.broadcast %cst_165 : f32 to vector<8x128xf32>
    %415 = arith.addf %413, %414 : vector<8x128xf32>
    %416 = arith.mulf %405, %341 : vector<8x128xf32>
    %417 = arith.mulf %397, %407 : vector<8x128xf32>
    %418 = arith.addf %416, %417 : vector<8x128xf32>
    %419 = math.tanh %418 : vector<8x128xf32>
    %420 = arith.mulf %415, %419 : vector<8x128xf32>
    %c48 = arith.constant 48 : index
    %c0_166 = arith.constant 0 : index
    %421 = vector.load %arg14[%c48, %c0_166] : memref<64x512xf32, #tpu.memory_space<vmem>>, vector<8x512xf32>
    %422 = arith.truncf %379 : vector<8x128xf32> to vector<8x128xbf16>
    %c0_167 = arith.constant 0 : index
    %c0_168 = arith.constant 0 : index
    %423 = vector.load %arg2[%c0_167, %c0_168] : memref<128x512xbf16, #tpu.memory_space<vmem>>, vector<128x512xbf16>
    %cst_169 = arith.constant dense<0.000000e+00> : vector<8x512xf32>
    %424 = tpu.matmul %422, %423, %cst_169 {dimension_numbers = #tpu.dot_dimension_numbers<[1], [0], [0], [1], [0, 0, 1, 1], [], []>} : vector<8x128xbf16>, vector<128x512xbf16>, vector<8x512xf32> -> vector<8x512xf32>
    %425 = arith.addf %421, %424 : vector<8x512xf32>
    %426 = vector.extract_strided_slice %425 {offsets = [0, 0], sizes = [8, 128], strides = [1, 1]} : vector<8x512xf32> to vector<8x128xf32>
    %cst_170 = arith.constant 5.000000e-01 : f32
    %427 = vector.broadcast %cst_170 : f32 to vector<8x128xf32>
    %428 = arith.mulf %427, %426 : vector<8x128xf32>
    %429 = math.tanh %428 : vector<8x128xf32>
    %cst_171 = arith.constant 5.000000e-01 : f32
    %430 = vector.broadcast %cst_171 : f32 to vector<8x128xf32>
    %431 = arith.mulf %430, %429 : vector<8x128xf32>
    %cst_172 = arith.constant 5.000000e-01 : f32
    %432 = vector.broadcast %cst_172 : f32 to vector<8x128xf32>
    %433 = arith.addf %431, %432 : vector<8x128xf32>
    %434 = vector.extract_strided_slice %425 {offsets = [0, 128], sizes = [8, 128], strides = [1, 1]} : vector<8x512xf32> to vector<8x128xf32>
    %cst_173 = arith.constant 5.000000e-01 : f32
    %435 = vector.broadcast %cst_173 : f32 to vector<8x128xf32>
    %436 = arith.mulf %435, %434 : vector<8x128xf32>
    %437 = math.tanh %436 : vector<8x128xf32>
    %cst_174 = arith.constant 5.000000e-01 : f32
    %438 = vector.broadcast %cst_174 : f32 to vector<8x128xf32>
    %439 = arith.mulf %438, %437 : vector<8x128xf32>
    %cst_175 = arith.constant 5.000000e-01 : f32
    %440 = vector.broadcast %cst_175 : f32 to vector<8x128xf32>
    %441 = arith.addf %439, %440 : vector<8x128xf32>
    %442 = vector.extract_strided_slice %425 {offsets = [0, 256], sizes = [8, 128], strides = [1, 1]} : vector<8x512xf32> to vector<8x128xf32>
    %443 = math.tanh %442 : vector<8x128xf32>
    %444 = vector.extract_strided_slice %425 {offsets = [0, 384], sizes = [8, 128], strides = [1, 1]} : vector<8x512xf32> to vector<8x128xf32>
    %cst_176 = arith.constant 5.000000e-01 : f32
    %445 = vector.broadcast %cst_176 : f32 to vector<8x128xf32>
    %446 = arith.mulf %445, %444 : vector<8x128xf32>
    %447 = math.tanh %446 : vector<8x128xf32>
    %cst_177 = arith.constant 5.000000e-01 : f32
    %448 = vector.broadcast %cst_177 : f32 to vector<8x128xf32>
    %449 = arith.mulf %448, %447 : vector<8x128xf32>
    %cst_178 = arith.constant 5.000000e-01 : f32
    %450 = vector.broadcast %cst_178 : f32 to vector<8x128xf32>
    %451 = arith.addf %449, %450 : vector<8x128xf32>
    %452 = arith.mulf %441, %377 : vector<8x128xf32>
    %453 = arith.mulf %433, %443 : vector<8x128xf32>
    %454 = arith.addf %452, %453 : vector<8x128xf32>
    %455 = math.tanh %454 : vector<8x128xf32>
    %456 = arith.mulf %451, %455 : vector<8x128xf32>
    %457 = arith.truncf %379 : vector<8x128xf32> to vector<8x128xbf16>
    %c0_179 = arith.constant 0 : index
    %c0_180 = arith.constant 0 : index
    %458 = vector.load %arg4[%c0_179, %c0_180] : memref<128x512xbf16, #tpu.memory_space<vmem>>, vector<128x512xbf16>
    %cst_181 = arith.constant dense<0.000000e+00> : vector<8x512xf32>
    %459 = tpu.matmul %457, %458, %cst_181 {dimension_numbers = #tpu.dot_dimension_numbers<[1], [0], [0], [1], [0, 0, 1, 1], [], []>} : vector<8x128xbf16>, vector<128x512xbf16>, vector<8x512xf32> -> vector<8x512xf32>
    %c0_182 = arith.constant 0 : index
    %c0_183 = arith.constant 0 : index
    %460 = vector.load %arg6[%c0_182, %c0_183] : memref<1x512xf32, #tpu.memory_space<vmem>>, vector<1x512xf32>
    %461 = vector.broadcast %460 : vector<1x512xf32> to vector<8x512xf32>
    %462 = arith.addf %459, %461 : vector<8x512xf32>
    %463 = arith.truncf %420 : vector<8x128xf32> to vector<8x128xbf16>
    %c0_184 = arith.constant 0 : index
    %c0_185 = arith.constant 0 : index
    %464 = vector.load %arg5[%c0_184, %c0_185] : memref<128x512xbf16, #tpu.memory_space<vmem>>, vector<128x512xbf16>
    %cst_186 = arith.constant dense<0.000000e+00> : vector<8x512xf32>
    %465 = tpu.matmul %463, %464, %cst_186 {dimension_numbers = #tpu.dot_dimension_numbers<[1], [0], [0], [1], [0, 0, 1, 1], [], []>} : vector<8x128xbf16>, vector<128x512xbf16>, vector<8x512xf32> -> vector<8x512xf32>
    %466 = arith.addf %462, %465 : vector<8x512xf32>
    %467 = vector.extract_strided_slice %466 {offsets = [0, 0], sizes = [8, 128], strides = [1, 1]} : vector<8x512xf32> to vector<8x128xf32>
    %cst_187 = arith.constant 5.000000e-01 : f32
    %468 = vector.broadcast %cst_187 : f32 to vector<8x128xf32>
    %469 = arith.mulf %468, %467 : vector<8x128xf32>
    %470 = math.tanh %469 : vector<8x128xf32>
    %cst_188 = arith.constant 5.000000e-01 : f32
    %471 = vector.broadcast %cst_188 : f32 to vector<8x128xf32>
    %472 = arith.mulf %471, %470 : vector<8x128xf32>
    %cst_189 = arith.constant 5.000000e-01 : f32
    %473 = vector.broadcast %cst_189 : f32 to vector<8x128xf32>
    %474 = arith.addf %472, %473 : vector<8x128xf32>
    %475 = vector.extract_strided_slice %466 {offsets = [0, 128], sizes = [8, 128], strides = [1, 1]} : vector<8x512xf32> to vector<8x128xf32>
    %cst_190 = arith.constant 5.000000e-01 : f32
    %476 = vector.broadcast %cst_190 : f32 to vector<8x128xf32>
    %477 = arith.mulf %476, %475 : vector<8x128xf32>
    %478 = math.tanh %477 : vector<8x128xf32>
    %cst_191 = arith.constant 5.000000e-01 : f32
    %479 = vector.broadcast %cst_191 : f32 to vector<8x128xf32>
    %480 = arith.mulf %479, %478 : vector<8x128xf32>
    %cst_192 = arith.constant 5.000000e-01 : f32
    %481 = vector.broadcast %cst_192 : f32 to vector<8x128xf32>
    %482 = arith.addf %480, %481 : vector<8x128xf32>
    %483 = vector.extract_strided_slice %466 {offsets = [0, 256], sizes = [8, 128], strides = [1, 1]} : vector<8x512xf32> to vector<8x128xf32>
    %484 = math.tanh %483 : vector<8x128xf32>
    %485 = vector.extract_strided_slice %466 {offsets = [0, 384], sizes = [8, 128], strides = [1, 1]} : vector<8x512xf32> to vector<8x128xf32>
    %cst_193 = arith.constant 5.000000e-01 : f32
    %486 = vector.broadcast %cst_193 : f32 to vector<8x128xf32>
    %487 = arith.mulf %486, %485 : vector<8x128xf32>
    %488 = math.tanh %487 : vector<8x128xf32>
    %cst_194 = arith.constant 5.000000e-01 : f32
    %489 = vector.broadcast %cst_194 : f32 to vector<8x128xf32>
    %490 = arith.mulf %489, %488 : vector<8x128xf32>
    %cst_195 = arith.constant 5.000000e-01 : f32
    %491 = vector.broadcast %cst_195 : f32 to vector<8x128xf32>
    %492 = arith.addf %490, %491 : vector<8x128xf32>
    %493 = arith.mulf %482, %418 : vector<8x128xf32>
    %494 = arith.mulf %474, %484 : vector<8x128xf32>
    %495 = arith.addf %493, %494 : vector<8x128xf32>
    %496 = math.tanh %495 : vector<8x128xf32>
    %497 = arith.mulf %492, %496 : vector<8x128xf32>
    %c56 = arith.constant 56 : index
    %c0_196 = arith.constant 0 : index
    %498 = vector.load %arg14[%c56, %c0_196] : memref<64x512xf32, #tpu.memory_space<vmem>>, vector<8x512xf32>
    %499 = arith.truncf %456 : vector<8x128xf32> to vector<8x128xbf16>
    %c0_197 = arith.constant 0 : index
    %c0_198 = arith.constant 0 : index
    %500 = vector.load %arg2[%c0_197, %c0_198] : memref<128x512xbf16, #tpu.memory_space<vmem>>, vector<128x512xbf16>
    %cst_199 = arith.constant dense<0.000000e+00> : vector<8x512xf32>
    %501 = tpu.matmul %499, %500, %cst_199 {dimension_numbers = #tpu.dot_dimension_numbers<[1], [0], [0], [1], [0, 0, 1, 1], [], []>} : vector<8x128xbf16>, vector<128x512xbf16>, vector<8x512xf32> -> vector<8x512xf32>
    %502 = arith.addf %498, %501 : vector<8x512xf32>
    %503 = vector.extract_strided_slice %502 {offsets = [0, 0], sizes = [8, 128], strides = [1, 1]} : vector<8x512xf32> to vector<8x128xf32>
    %cst_200 = arith.constant 5.000000e-01 : f32
    %504 = vector.broadcast %cst_200 : f32 to vector<8x128xf32>
    %505 = arith.mulf %504, %503 : vector<8x128xf32>
    %506 = math.tanh %505 : vector<8x128xf32>
    %cst_201 = arith.constant 5.000000e-01 : f32
    %507 = vector.broadcast %cst_201 : f32 to vector<8x128xf32>
    %508 = arith.mulf %507, %506 : vector<8x128xf32>
    %cst_202 = arith.constant 5.000000e-01 : f32
    %509 = vector.broadcast %cst_202 : f32 to vector<8x128xf32>
    %510 = arith.addf %508, %509 : vector<8x128xf32>
    %511 = vector.extract_strided_slice %502 {offsets = [0, 128], sizes = [8, 128], strides = [1, 1]} : vector<8x512xf32> to vector<8x128xf32>
    %cst_203 = arith.constant 5.000000e-01 : f32
    %512 = vector.broadcast %cst_203 : f32 to vector<8x128xf32>
    %513 = arith.mulf %512, %511 : vector<8x128xf32>
    %514 = math.tanh %513 : vector<8x128xf32>
    %cst_204 = arith.constant 5.000000e-01 : f32
    %515 = vector.broadcast %cst_204 : f32 to vector<8x128xf32>
    %516 = arith.mulf %515, %514 : vector<8x128xf32>
    %cst_205 = arith.constant 5.000000e-01 : f32
    %517 = vector.broadcast %cst_205 : f32 to vector<8x128xf32>
    %518 = arith.addf %516, %517 : vector<8x128xf32>
    %519 = vector.extract_strided_slice %502 {offsets = [0, 256], sizes = [8, 128], strides = [1, 1]} : vector<8x512xf32> to vector<8x128xf32>
    %520 = math.tanh %519 : vector<8x128xf32>
    %521 = vector.extract_strided_slice %502 {offsets = [0, 384], sizes = [8, 128], strides = [1, 1]} : vector<8x512xf32> to vector<8x128xf32>
    %cst_206 = arith.constant 5.000000e-01 : f32
    %522 = vector.broadcast %cst_206 : f32 to vector<8x128xf32>
    %523 = arith.mulf %522, %521 : vector<8x128xf32>
    %524 = math.tanh %523 : vector<8x128xf32>
    %cst_207 = arith.constant 5.000000e-01 : f32
    %525 = vector.broadcast %cst_207 : f32 to vector<8x128xf32>
    %526 = arith.mulf %525, %524 : vector<8x128xf32>
    %cst_208 = arith.constant 5.000000e-01 : f32
    %527 = vector.broadcast %cst_208 : f32 to vector<8x128xf32>
    %528 = arith.addf %526, %527 : vector<8x128xf32>
    %529 = arith.mulf %518, %454 : vector<8x128xf32>
    %530 = arith.mulf %510, %520 : vector<8x128xf32>
    %531 = arith.addf %529, %530 : vector<8x128xf32>
    %532 = math.tanh %531 : vector<8x128xf32>
    %533 = arith.mulf %528, %532 : vector<8x128xf32>
    %534 = arith.truncf %456 : vector<8x128xf32> to vector<8x128xbf16>
    %c0_209 = arith.constant 0 : index
    %c0_210 = arith.constant 0 : index
    %535 = vector.load %arg4[%c0_209, %c0_210] : memref<128x512xbf16, #tpu.memory_space<vmem>>, vector<128x512xbf16>
    %cst_211 = arith.constant dense<0.000000e+00> : vector<8x512xf32>
    %536 = tpu.matmul %534, %535, %cst_211 {dimension_numbers = #tpu.dot_dimension_numbers<[1], [0], [0], [1], [0, 0, 1, 1], [], []>} : vector<8x128xbf16>, vector<128x512xbf16>, vector<8x512xf32> -> vector<8x512xf32>
    %c0_212 = arith.constant 0 : index
    %c0_213 = arith.constant 0 : index
    %537 = vector.load %arg6[%c0_212, %c0_213] : memref<1x512xf32, #tpu.memory_space<vmem>>, vector<1x512xf32>
    %538 = vector.broadcast %537 : vector<1x512xf32> to vector<8x512xf32>
    %539 = arith.addf %536, %538 : vector<8x512xf32>
    %540 = arith.truncf %497 : vector<8x128xf32> to vector<8x128xbf16>
    %c0_214 = arith.constant 0 : index
    %c0_215 = arith.constant 0 : index
    %541 = vector.load %arg5[%c0_214, %c0_215] : memref<128x512xbf16, #tpu.memory_space<vmem>>, vector<128x512xbf16>
    %cst_216 = arith.constant dense<0.000000e+00> : vector<8x512xf32>
    %542 = tpu.matmul %540, %541, %cst_216 {dimension_numbers = #tpu.dot_dimension_numbers<[1], [0], [0], [1], [0, 0, 1, 1], [], []>} : vector<8x128xbf16>, vector<128x512xbf16>, vector<8x512xf32> -> vector<8x512xf32>
    %543 = arith.addf %539, %542 : vector<8x512xf32>
    %544 = vector.extract_strided_slice %543 {offsets = [0, 0], sizes = [8, 128], strides = [1, 1]} : vector<8x512xf32> to vector<8x128xf32>
    %cst_217 = arith.constant 5.000000e-01 : f32
    %545 = vector.broadcast %cst_217 : f32 to vector<8x128xf32>
    %546 = arith.mulf %545, %544 : vector<8x128xf32>
    %547 = math.tanh %546 : vector<8x128xf32>
    %cst_218 = arith.constant 5.000000e-01 : f32
    %548 = vector.broadcast %cst_218 : f32 to vector<8x128xf32>
    %549 = arith.mulf %548, %547 : vector<8x128xf32>
    %cst_219 = arith.constant 5.000000e-01 : f32
    %550 = vector.broadcast %cst_219 : f32 to vector<8x128xf32>
    %551 = arith.addf %549, %550 : vector<8x128xf32>
    %552 = vector.extract_strided_slice %543 {offsets = [0, 128], sizes = [8, 128], strides = [1, 1]} : vector<8x512xf32> to vector<8x128xf32>
    %cst_220 = arith.constant 5.000000e-01 : f32
    %553 = vector.broadcast %cst_220 : f32 to vector<8x128xf32>
    %554 = arith.mulf %553, %552 : vector<8x128xf32>
    %555 = math.tanh %554 : vector<8x128xf32>
    %cst_221 = arith.constant 5.000000e-01 : f32
    %556 = vector.broadcast %cst_221 : f32 to vector<8x128xf32>
    %557 = arith.mulf %556, %555 : vector<8x128xf32>
    %cst_222 = arith.constant 5.000000e-01 : f32
    %558 = vector.broadcast %cst_222 : f32 to vector<8x128xf32>
    %559 = arith.addf %557, %558 : vector<8x128xf32>
    %560 = vector.extract_strided_slice %543 {offsets = [0, 256], sizes = [8, 128], strides = [1, 1]} : vector<8x512xf32> to vector<8x128xf32>
    %561 = math.tanh %560 : vector<8x128xf32>
    %562 = vector.extract_strided_slice %543 {offsets = [0, 384], sizes = [8, 128], strides = [1, 1]} : vector<8x512xf32> to vector<8x128xf32>
    %cst_223 = arith.constant 5.000000e-01 : f32
    %563 = vector.broadcast %cst_223 : f32 to vector<8x128xf32>
    %564 = arith.mulf %563, %562 : vector<8x128xf32>
    %565 = math.tanh %564 : vector<8x128xf32>
    %cst_224 = arith.constant 5.000000e-01 : f32
    %566 = vector.broadcast %cst_224 : f32 to vector<8x128xf32>
    %567 = arith.mulf %566, %565 : vector<8x128xf32>
    %cst_225 = arith.constant 5.000000e-01 : f32
    %568 = vector.broadcast %cst_225 : f32 to vector<8x128xf32>
    %569 = arith.addf %567, %568 : vector<8x128xf32>
    %570 = arith.mulf %559, %495 : vector<8x128xf32>
    %571 = arith.mulf %551, %561 : vector<8x128xf32>
    %572 = arith.addf %570, %571 : vector<8x128xf32>
    %573 = math.tanh %572 : vector<8x128xf32>
    %574 = arith.mulf %569, %573 : vector<8x128xf32>
    %575 = arith.truncf %533 : vector<8x128xf32> to vector<8x128xbf16>
    %c0_226 = arith.constant 0 : index
    %c0_227 = arith.constant 0 : index
    %576 = vector.load %arg4[%c0_226, %c0_227] : memref<128x512xbf16, #tpu.memory_space<vmem>>, vector<128x512xbf16>
    %cst_228 = arith.constant dense<0.000000e+00> : vector<8x512xf32>
    %577 = tpu.matmul %575, %576, %cst_228 {dimension_numbers = #tpu.dot_dimension_numbers<[1], [0], [0], [1], [0, 0, 1, 1], [], []>} : vector<8x128xbf16>, vector<128x512xbf16>, vector<8x512xf32> -> vector<8x512xf32>
    %c0_229 = arith.constant 0 : index
    %c0_230 = arith.constant 0 : index
    %578 = vector.load %arg6[%c0_229, %c0_230] : memref<1x512xf32, #tpu.memory_space<vmem>>, vector<1x512xf32>
    %579 = vector.broadcast %578 : vector<1x512xf32> to vector<8x512xf32>
    %580 = arith.addf %577, %579 : vector<8x512xf32>
    %581 = arith.truncf %574 : vector<8x128xf32> to vector<8x128xbf16>
    %c0_231 = arith.constant 0 : index
    %c0_232 = arith.constant 0 : index
    %582 = vector.load %arg5[%c0_231, %c0_232] : memref<128x512xbf16, #tpu.memory_space<vmem>>, vector<128x512xbf16>
    %cst_233 = arith.constant dense<0.000000e+00> : vector<8x512xf32>
    %583 = tpu.matmul %581, %582, %cst_233 {dimension_numbers = #tpu.dot_dimension_numbers<[1], [0], [0], [1], [0, 0, 1, 1], [], []>} : vector<8x128xbf16>, vector<128x512xbf16>, vector<8x512xf32> -> vector<8x512xf32>
    %584 = arith.addf %580, %583 : vector<8x512xf32>
    %585 = vector.extract_strided_slice %584 {offsets = [0, 0], sizes = [8, 128], strides = [1, 1]} : vector<8x512xf32> to vector<8x128xf32>
    %cst_234 = arith.constant 5.000000e-01 : f32
    %586 = vector.broadcast %cst_234 : f32 to vector<8x128xf32>
    %587 = arith.mulf %586, %585 : vector<8x128xf32>
    %588 = math.tanh %587 : vector<8x128xf32>
    %cst_235 = arith.constant 5.000000e-01 : f32
    %589 = vector.broadcast %cst_235 : f32 to vector<8x128xf32>
    %590 = arith.mulf %589, %588 : vector<8x128xf32>
    %cst_236 = arith.constant 5.000000e-01 : f32
    %591 = vector.broadcast %cst_236 : f32 to vector<8x128xf32>
    %592 = arith.addf %590, %591 : vector<8x128xf32>
    %593 = vector.extract_strided_slice %584 {offsets = [0, 128], sizes = [8, 128], strides = [1, 1]} : vector<8x512xf32> to vector<8x128xf32>
    %cst_237 = arith.constant 5.000000e-01 : f32
    %594 = vector.broadcast %cst_237 : f32 to vector<8x128xf32>
    %595 = arith.mulf %594, %593 : vector<8x128xf32>
    %596 = math.tanh %595 : vector<8x128xf32>
    %cst_238 = arith.constant 5.000000e-01 : f32
    %597 = vector.broadcast %cst_238 : f32 to vector<8x128xf32>
    %598 = arith.mulf %597, %596 : vector<8x128xf32>
    %cst_239 = arith.constant 5.000000e-01 : f32
    %599 = vector.broadcast %cst_239 : f32 to vector<8x128xf32>
    %600 = arith.addf %598, %599 : vector<8x128xf32>
    %601 = vector.extract_strided_slice %584 {offsets = [0, 256], sizes = [8, 128], strides = [1, 1]} : vector<8x512xf32> to vector<8x128xf32>
    %602 = math.tanh %601 : vector<8x128xf32>
    %603 = vector.extract_strided_slice %584 {offsets = [0, 384], sizes = [8, 128], strides = [1, 1]} : vector<8x512xf32> to vector<8x128xf32>
    %cst_240 = arith.constant 5.000000e-01 : f32
    %604 = vector.broadcast %cst_240 : f32 to vector<8x128xf32>
    %605 = arith.mulf %604, %603 : vector<8x128xf32>
    %606 = math.tanh %605 : vector<8x128xf32>
    %cst_241 = arith.constant 5.000000e-01 : f32
    %607 = vector.broadcast %cst_241 : f32 to vector<8x128xf32>
    %608 = arith.mulf %607, %606 : vector<8x128xf32>
    %cst_242 = arith.constant 5.000000e-01 : f32
    %609 = vector.broadcast %cst_242 : f32 to vector<8x128xf32>
    %610 = arith.addf %608, %609 : vector<8x128xf32>
    %611 = arith.mulf %600, %572 : vector<8x128xf32>
    %612 = arith.mulf %592, %602 : vector<8x128xf32>
    %613 = arith.addf %611, %612 : vector<8x128xf32>
    %614 = math.tanh %613 : vector<8x128xf32>
    %615 = arith.mulf %610, %614 : vector<8x128xf32>
    %616 = arith.truncf %615 : vector<8x128xf32> to vector<8x128xbf16>
    %c0_243 = arith.constant 0 : index
    %c0_244 = arith.constant 0 : index
    %617 = vector.load %arg7[%c0_243, %c0_244] : memref<128x64xbf16, #tpu.memory_space<vmem>>, vector<128x64xbf16>
    %cst_245 = arith.constant dense<0.000000e+00> : vector<8x64xf32>
    %618 = tpu.matmul %616, %617, %cst_245 {dimension_numbers = #tpu.dot_dimension_numbers<[1], [0], [0], [1], [0, 0, 1, 1], [], []>} : vector<8x128xbf16>, vector<128x64xbf16>, vector<8x64xf32> -> vector<8x64xf32>
    %c0_246 = arith.constant 0 : index
    %c0_247 = arith.constant 0 : index
    %619 = vector.load %arg8[%c0_246, %c0_247] : memref<1x64xf32, #tpu.memory_space<vmem>>, vector<1x64xf32>
    %620 = vector.broadcast %619 : vector<1x64xf32> to vector<8x64xf32>
    %621 = arith.addf %618, %620 : vector<8x64xf32>
    %cst_248 = arith.constant 0.000000e+00 : f32
    %622 = vector.broadcast %cst_248 : f32 to vector<8x64xf32>
    %623 = arith.maximumf %621, %622 : vector<8x64xf32>
    %624 = arith.truncf %623 : vector<8x64xf32> to vector<8x64xbf16>
    %c0_249 = arith.constant 0 : index
    %c0_250 = arith.constant 0 : index
    %625 = vector.load %arg9[%c0_249, %c0_250] : memref<64x32xbf16, #tpu.memory_space<vmem>>, vector<64x32xbf16>
    %cst_251 = arith.constant dense<0.000000e+00> : vector<8x32xf32>
    %626 = tpu.matmul %624, %625, %cst_251 {dimension_numbers = #tpu.dot_dimension_numbers<[1], [0], [0], [1], [0, 0, 1, 1], [], []>} : vector<8x64xbf16>, vector<64x32xbf16>, vector<8x32xf32> -> vector<8x32xf32>
    %c0_252 = arith.constant 0 : index
    %c0_253 = arith.constant 0 : index
    %627 = vector.load %arg10[%c0_252, %c0_253] : memref<1x32xf32, #tpu.memory_space<vmem>>, vector<1x32xf32>
    %628 = vector.broadcast %627 : vector<1x32xf32> to vector<8x32xf32>
    %629 = arith.addf %626, %628 : vector<8x32xf32>
    %cst_254 = arith.constant 0.000000e+00 : f32
    %630 = vector.broadcast %cst_254 : f32 to vector<8x32xf32>
    %631 = arith.maximumf %629, %630 : vector<8x32xf32>
    %632 = arith.truncf %631 : vector<8x32xf32> to vector<8x32xbf16>
    %c0_255 = arith.constant 0 : index
    %c0_256 = arith.constant 0 : index
    %633 = vector.load %arg11[%c0_255, %c0_256] : memref<32x128xbf16, #tpu.memory_space<vmem>>, vector<32x128xbf16>
    %cst_257 = arith.constant dense<0.000000e+00> : vector<8x128xf32>
    %634 = tpu.matmul %632, %633, %cst_257 {dimension_numbers = #tpu.dot_dimension_numbers<[1], [0], [0], [1], [0, 0, 1, 1], [], []>} : vector<8x32xbf16>, vector<32x128xbf16>, vector<8x128xf32> -> vector<8x128xf32>
    %c0_258 = arith.constant 0 : index
    %c0_259 = arith.constant 0 : index
    %635 = vector.load %arg12[%c0_258, %c0_259] : memref<1x128xf32, #tpu.memory_space<vmem>>, vector<1x128xf32>
    %636 = vector.broadcast %635 : vector<1x128xf32> to vector<8x128xf32>
    %637 = arith.addf %634, %636 : vector<8x128xf32>
    %c0_260 = arith.constant 0 : index
    %c0_261 = arith.constant 0 : index
    %638 = vector.load %arg13[%c0_260, %c0_261] : memref<8x128xf32, #tpu.memory_space<vmem>>, vector<8x128xf32>
    tpu.vector_store %arg13[%c0_260, %c0_261], %637 {strides = array<i32>} : memref<8x128xf32, #tpu.memory_space<vmem>>, vector<8x128xf32>,
    return
  }
}

</mosaic_0001>

<llo_original>
// kernel: lstm_model_forward.1
$region0: #{lstm_model_forward.1}
  #allocation0 [shape = 'u32[]', space=smem, size = 0x4, offset = 0x4, fixed_abs, tag = 'smem constant byte address 0x4 - core index']
  #allocation1 [shape = 'u32[72,128]{1,0:T(1,128)}', space=vmem, size = 0x9000, scoped, tag = 'internal scratch']
  #allocation2 [shape = 'f32[64,512]{1,0:T(8,128)}', space=vmem, size = 0x20000, scoped, tag = 'scratch operand']
  %s0 = inlined_call_operand.vmem [shape: bf16[64,80], index: 0, kind: input, shape index: {}]
  %s1 = inlined_call_operand.hbm [shape: bf16[80,512], index: 1, kind: input, shape index: {}]
  %s2 = inlined_call_operand.hbm [shape: bf16[128,512], index: 2, kind: input, shape index: {}]
  %s3 = inlined_call_operand.vmem [shape: f32[1,512], index: 3, kind: input, shape index: {}]
  %s4 = inlined_call_operand.hbm [shape: bf16[128,512], index: 4, kind: input, shape index: {}]
  %s5 = inlined_call_operand.hbm [shape: bf16[128,512], index: 5, kind: input, shape index: {}]
  %s6 = inlined_call_operand.vmem [shape: f32[1,512], index: 6, kind: input, shape index: {}]
  %s7 = inlined_call_operand.vmem [shape: bf16[128,64], index: 7, kind: input, shape index: {}]
  %s8 = inlined_call_operand.vmem [shape: f32[1,64], index: 8, kind: input, shape index: {}]
  %s9 = inlined_call_operand.vmem [shape: bf16[64,32], index: 9, kind: input, shape index: {}]
  %s10 = inlined_call_operand.vmem [shape: f32[1,32], index: 10, kind: input, shape index: {}]
  %s11 = inlined_call_operand.vmem [shape: bf16[32,128], index: 11, kind: input, shape index: {}]
  %s12 = inlined_call_operand.vmem [shape: f32[1,128], index: 12, kind: input, shape index: {}]
  %s13 = inlined_call_operand.vmem [shape: f32[8,128], index: 13, kind: output, shape index: {}]
  %s14 = sld [smem:[#allocation0]]
  $region78: #{lstm_model_forward.1} parent=0
    _
  %s16 = ssub.s32 1, %s14
  %s17 = scalar_select 0, %s16, %s14
  $region1: #{lstm_model_forward.1} parent=0
    #allocation3 [shape = 'u8[81920]{0}', space=vmem, size = 0x14000, scoped, tag = 'input window, operand 1, single buffered']
    #allocation4 [shape = 's32[1]{0}', space=sflag, size = 0x4, scoped, tag = 'scoped memory for lstm_model_forward.1']
    #allocation5 [shape = 'u8[131072]{0}', space=vmem, size = 0x20000, scoped, tag = 'input window, operand 2, single buffered']
    #allocation6 [shape = 's32[1]{0}', space=sflag, size = 0x4, scoped, tag = 'scoped memory for lstm_model_forward.1']
    #allocation7 [shape = 'u8[131072]{0}', space=vmem, size = 0x20000, scoped, tag = 'input window, operand 4, single buffered']
    #allocation8 [shape = 'u8[131072]{0}', space=vmem, size = 0x20000, scoped, tag = 'input window, operand 5, single buffered']
    #allocation9 [shape = 's32[1]{0}', space=sflag, size = 0x4, scoped, tag = 'scoped memory for lstm_model_forward.1']
    %18 = vsyncpa [#allocation4], 0
    %19 = vsyncpa [#allocation6], 0
    %20 = vsyncpa [#allocation9], 0
    // Predicated region
    $region2: #{lstm_model_forward.1} parent=1 // pred_check
      _
    $region3: #{lstm_model_forward.1} parent=1 // pred_check_branch
      %22 = sbr.rel (0) target = $region5
    $region4: #{lstm_model_forward.1} parent=1 // pred_region
      _
    $region5: #{lstm_model_forward.1} parent=1 // pred_fallthru
      _
    // Predicated region
    $region6: #{lstm_model_forward.1} parent=1 // pred_check
      _
    $region7: #{lstm_model_forward.1} parent=1 // pred_check_branch
      %24 = sbr.rel (0) target = $region9
    $region8: #{lstm_model_forward.1} parent=1 // pred_region
      %26 = vsyncadd [#allocation4], 0
      %s27 = sshll.u32 %s1, 4
      %s28 = int_to_ptr.hbm [resolvable:$true] %s27
      %s29 = sshll.u32 [#allocation3], 4
      %s30 = int_to_ptr.vmem [resolvable:$true] %s29
      %35 = dma.hbm_to_vmem [thread:$0]  %s28, 2560, %s30, [#allocation4], 256, 256, 16
    $region9: #{lstm_model_forward.1} parent=1 // pred_fallthru
      _
    // Predicated region
    $region10: #{lstm_model_forward.1} parent=1 // pred_check
      _
    $region11: #{lstm_model_forward.1} parent=1 // pred_check_branch
      %37 = sbr.rel (0) target = $region13
    $region12: #{lstm_model_forward.1} parent=1 // pred_region
      %39 = vsyncadd [#allocation6], 0
      %s40 = sshll.u32 %s2, 4
      %s41 = int_to_ptr.hbm [resolvable:$true] %s40
      %s42 = sshll.u32 [#allocation5], 4
      %s43 = int_to_ptr.vmem [resolvable:$true] %s42
      %48 = dma.hbm_to_vmem [thread:$0]  %s41, 4096, %s43, [#allocation6], 256, 256, 16
    $region13: #{lstm_model_forward.1} parent=1 // pred_fallthru
      _
    // Predicated region
    $region14: #{lstm_model_forward.1} parent=1 // pred_check
      _
    $region15: #{lstm_model_forward.1} parent=1 // pred_check_branch
      %50 = sbr.rel (0) target = $region17
    $region16: #{lstm_model_forward.1} parent=1 // pred_region
      _
    $region17: #{lstm_model_forward.1} parent=1 // pred_fallthru
      _
    // Predicated region
    $region18: #{lstm_model_forward.1} parent=1 // pred_check
      _
    $region19: #{lstm_model_forward.1} parent=1 // pred_check_branch
      %52 = sbr.rel (0) target = $region21
    $region20: #{lstm_model_forward.1} parent=1 // pred_region
      %54 = vsyncadd [#allocation6], 0
      %s55 = sshll.u32 %s4, 4
      %s56 = int_to_ptr.hbm [resolvable:$true] %s55
      %s57 = sshll.u32 [#allocation7], 4
      %s58 = int_to_ptr.vmem [resolvable:$true] %s57
      %63 = dma.hbm_to_vmem [thread:$0]  %s56, 4096, %s58, [#allocation6], 256, 256, 16
    $region21: #{lstm_model_forward.1} parent=1 // pred_fallthru
      _
    // Predicated region
    $region22: #{lstm_model_forward.1} parent=1 // pred_check
      _
    $region23: #{lstm_model_forward.1} parent=1 // pred_check_branch
      %65 = sbr.rel (0) target = $region25
    $region24: #{lstm_model_forward.1} parent=1 // pred_region
      %67 = vsyncadd [#allocation9], 0
      %s68 = sshll.u32 %s5, 4
      %s69 = int_to_ptr.hbm [resolvable:$true] %s68
      %s70 = sshll.u32 [#allocation8], 4
      %s71 = int_to_ptr.vmem [resolvable:$true] %s70
      %76 = dma.hbm_to_vmem [thread:$0]  %s69, 4096, %s71, [#allocation9], 256, 256, 16
    $region25: #{lstm_model_forward.1} parent=1 // pred_fallthru
      _
    // Predicated region
    $region26: #{lstm_model_forward.1} parent=1 // pred_check
      _
    $region27: #{lstm_model_forward.1} parent=1 // pred_check_branch
      %78 = sbr.rel (0) target = $region29
    $region28: #{lstm_model_forward.1} parent=1 // pred_region
      _
    $region29: #{lstm_model_forward.1} parent=1 // pred_fallthru
      _
    // Predicated region
    $region30: #{lstm_model_forward.1} parent=1 // pred_check
      _
    $region31: #{lstm_model_forward.1} parent=1 // pred_check_branch
      %80 = sbr.rel (0) target = $region33
    $region32: #{lstm_model_forward.1} parent=1 // pred_region
      _
    $region33: #{lstm_model_forward.1} parent=1 // pred_fallthru
      _
    // Predicated region
    $region34: #{lstm_model_forward.1} parent=1 // pred_check
      _
    $region35: #{lstm_model_forward.1} parent=1 // pred_check_branch
      %82 = sbr.rel (0) target = $region37
    $region36: #{lstm_model_forward.1} parent=1 // pred_region
      _
    $region37: #{lstm_model_forward.1} parent=1 // pred_fallthru
      _
    // Predicated region
    $region38: #{lstm_model_forward.1} parent=1 // pred_check
      _
    $region39: #{lstm_model_forward.1} parent=1 // pred_check_branch
      %84 = sbr.rel (0) target = $region41
    $region40: #{lstm_model_forward.1} parent=1 // pred_region
      _
    $region41: #{lstm_model_forward.1} parent=1 // pred_fallthru
      _
    // Predicated region
    $region42: #{lstm_model_forward.1} parent=1 // pred_check
      _
    $region43: #{lstm_model_forward.1} parent=1 // pred_check_branch
      %86 = sbr.rel (0) target = $region45
    $region44: #{lstm_model_forward.1} parent=1 // pred_region
      _
    $region45: #{lstm_model_forward.1} parent=1 // pred_fallthru
      _
    // Predicated region
    $region46: #{lstm_model_forward.1} parent=1 // pred_check
      _
    $region47: #{lstm_model_forward.1} parent=1 // pred_check_branch
      %88 = sbr.rel (0) target = $region49
    $region48: #{lstm_model_forward.1} parent=1 // pred_region
      _
    $region49: #{lstm_model_forward.1} parent=1 // pred_fallthru
      _
    // Predicated region
    $region50: #{lstm_model_forward.1} parent=1 // pred_check
      _
    $region51: #{lstm_model_forward.1} parent=1 // pred_check_branch
      %90 = sbr.rel (0) target = $region53
    $region52: #{lstm_model_forward.1} parent=1 // pred_region
      _
    $region53: #{lstm_model_forward.1} parent=1 // pred_fallthru
      _
    // Predicated region
    $region54: #{lstm_model_forward.1} parent=1 // pred_check
      _
    $region55: #{lstm_model_forward.1} parent=1 // pred_check_branch
      %92 = sbr.rel (0) target = $region57
    $region56: #{lstm_model_forward.1} parent=1 // pred_region
      %94 = dma.done [#allocation4], 2560
    $region57: #{lstm_model_forward.1} parent=1 // pred_fallthru
      _
    // Predicated region
    $region58: #{lstm_model_forward.1} parent=1 // pred_check
      _
    $region59: #{lstm_model_forward.1} parent=1 // pred_check_branch
      %96 = sbr.rel (0) target = $region61
    $region60: #{lstm_model_forward.1} parent=1 // pred_region
      %98 = dma.done [#allocation6], 4096
    $region61: #{lstm_model_forward.1} parent=1 // pred_fallthru
      _
    // Predicated region
    $region62: #{lstm_model_forward.1} parent=1 // pred_check
      _
    $region63: #{lstm_model_forward.1} parent=1 // pred_check_branch
      %100 = sbr.rel (0) target = $region65
    $region64: #{lstm_model_forward.1} parent=1 // pred_region
      %102 = dma.done [#allocation6], 4096
    $region65: #{lstm_model_forward.1} parent=1 // pred_fallthru
      _
    // Predicated region
    $region66: #{lstm_model_forward.1} parent=1 // pred_check
      _
    $region67: #{lstm_model_forward.1} parent=1 // pred_check_branch
      %104 = sbr.rel (0) target = $region69
    $region68: #{lstm_model_forward.1} parent=1 // pred_region
      %106 = dma.done [#allocation9], 4096
    $region69: #{lstm_model_forward.1} parent=1 // pred_fallthru
      _
    %v108 = vld [vmem:[%s0] sm:$0xf]
    %v109 = vld [vmem:[%s0 + $0x4] sm:$0xf]
    %v110 = vld [vmem:[%s0 + $0x8] sm:$0xf]
    %v111 = vld [vmem:[%s0 + $0xc] sm:$0xf]
    %v112 = vld [vmem:[%s0 + $0x10] sm:$0xf]
    %v113 = vld [vmem:[%s0 + $0x14] sm:$0xf]
    %v114 = vld [vmem:[%s0 + $0x18] sm:$0xf]
    %v115 = vld [vmem:[%s0 + $0x1c] sm:$0xf]
    %v116 = vld [vmem:[#allocation3] sm:$0xff]
    %v117 = vld [vmem:[#allocation3 + $0x8] sm:$0xff]
    %v118 = vld [vmem:[#allocation3 + $0x10] sm:$0xff]
    %v119 = vld [vmem:[#allocation3 + $0x18] sm:$0xff]
    %v120 = vld [vmem:[#allocation3 + $0x20] sm:$0xff]
    %v121 = vld [vmem:[#allocation3 + $0x28] sm:$0xff]
    %v122 = vld [vmem:[#allocation3 + $0x30] sm:$0xff]
    %v123 = vld [vmem:[#allocation3 + $0x38] sm:$0xff]
    %v124 = vld [vmem:[#allocation3 + $0x40] sm:$0xff]
    %v125 = vld [vmem:[#allocation3 + $0x48] sm:$0xff]
    %v126 = vld [vmem:[#allocation3 + $0x50] sm:$0xff]
    %v127 = vld [vmem:[#allocation3 + $0x58] sm:$0xff]
    %v128 = vld [vmem:[#allocation3 + $0x60] sm:$0xff]
    %v129 = vld [vmem:[#allocation3 + $0x68] sm:$0xff]
    %v130 = vld [vmem:[#allocation3 + $0x70] sm:$0xff]
    %v131 = vld [vmem:[#allocation3 + $0x78] sm:$0xff]
    %v132 = vld [vmem:[#allocation3 + $0x80] sm:$0xff]
    %v133 = vld [vmem:[#allocation3 + $0x88] sm:$0xff]
    %v134 = vld [vmem:[#allocation3 + $0x90] sm:$0xff]
    %v135 = vld [vmem:[#allocation3 + $0x98] sm:$0xff]
    %v136 = vld [vmem:[%s3] sm:$0xf]
    %v138 = vperm.slane %v136, 0
    %v139 = vperm.slane %v136, 1
    %v140 = vperm.slane %v136, 2
    %v141 = vperm.slane %v136, 3
    %v154 = vunpack.c.l.b16 %v108
    %v155 = vunpack.c.l.b16 %v109
    %v156 = vunpack.c.l.b16 %v110
    %v157 = vunpack.c.l.b16 %v111
    %v158 = vunpack.c.l.b16 %v112
    %v159 = vunpack.c.l.b16 %v113
    %v160 = vunpack.c.l.b16 %v114
    %v161 = vunpack.c.l.b16 %v115
    %v162 = vpack.c.b16 %v155, %v154
    %v163 = vpack.c.b16 %v157, %v156
    %v164 = vpack.c.b16 %v159, %v158
    %v165 = vpack.c.b16 %v161, %v160
    %v186 = vunpack.c.l.b16 %v116
    %v187 = vunpack.c.h.b16 %v116
    %v188 = vunpack.c.l.b16 %v117
    %v189 = vunpack.c.h.b16 %v117
    %v190 = vunpack.c.l.b16 %v118
    %v191 = vunpack.c.h.b16 %v118
    %v192 = vunpack.c.l.b16 %v119
    %v193 = vunpack.c.h.b16 %v119
    %v194 = vunpack.c.l.b16 %v120
    %v195 = vunpack.c.h.b16 %v120
    %v196 = vunpack.c.l.b16 %v121
    %v197 = vunpack.c.h.b16 %v121
    %v198 = vunpack.c.l.b16 %v122
    %v199 = vunpack.c.h.b16 %v122
    %v200 = vunpack.c.l.b16 %v123
    %v201 = vunpack.c.h.b16 %v123
    %v202 = vunpack.c.l.b16 %v124
    %v203 = vunpack.c.h.b16 %v124
    %v204 = vunpack.c.l.b16 %v125
    %v205 = vunpack.c.h.b16 %v125
    %v206 = vunpack.c.l.b16 %v126
    %v207 = vunpack.c.h.b16 %v126
    %v208 = vunpack.c.l.b16 %v127
    %v209 = vunpack.c.h.b16 %v127
    %v210 = vunpack.c.l.b16 %v128
    %v211 = vunpack.c.h.b16 %v128
    %v212 = vunpack.c.l.b16 %v129
    %v213 = vunpack.c.h.b16 %v129
    %v214 = vunpack.c.l.b16 %v130
    %v215 = vunpack.c.h.b16 %v130
    %v216 = vunpack.c.l.b16 %v131
    %v217 = vunpack.c.h.b16 %v131
    %v218 = vunpack.c.l.b16 %v132
    %v219 = vunpack.c.h.b16 %v132
    %v220 = vunpack.c.l.b16 %v133
    %v221 = vunpack.c.h.b16 %v133
    %v222 = vunpack.c.l.b16 %v134
    %v223 = vunpack.c.h.b16 %v134
    %v224 = vunpack.c.l.b16 %v135
    %v225 = vunpack.c.h.b16 %v135
    %v226 = vpack.c.b16 %v190, %v186
    %v227 = vpack.c.b16 %v191, %v187
    %v228 = vpack.c.b16 %v192, %v188
    %v229 = vpack.c.b16 %v193, %v189
    %v230 = vpack.c.b16 %v198, %v194
    %v231 = vpack.c.b16 %v199, %v195
    %v232 = vpack.c.b16 %v200, %v196
    %v233 = vpack.c.b16 %v201, %v197
    %v234 = vpack.c.b16 %v206, %v202
    %v235 = vpack.c.b16 %v207, %v203
    %v236 = vpack.c.b16 %v208, %v204
    %v237 = vpack.c.b16 %v209, %v205
    %v238 = vpack.c.b16 %v214, %v210
    %v239 = vpack.c.b16 %v215, %v211
    %v240 = vpack.c.b16 %v216, %v212
    %v241 = vpack.c.b16 %v217, %v213
    %v242 = vpack.c.b16 %v222, %v218
    %v243 = vpack.c.b16 %v223, %v219
    %v244 = vpack.c.b16 %v224, %v220
    %v245 = vpack.c.b16 %v225, %v221
    %vm266 = vcmask 654336
    %v268 = vsel %vm266, %v162, 0
    %v271 = vsel %vm266, %v163, 0
    %v274 = vsel %vm266, %v164, 0
    %v277 = vsel %vm266, %v165, 0
    %279 = vmatpush.bf16.msra.mxu0 0
    %280 = vmatpush.bf16.msra.mxu0 0
    %281 = vmatpush.bf16.msra.mxu0 0
    %282 = vmatpush.bf16.msra.mxu0 %v242
    %283 = vmatpush.bf16.msra.mxu0 %v238
    %284 = vmatpush.bf16.msra.mxu0 %v234
    %285 = vmatpush.bf16.msra.mxu0 %v230
    %286 = vmatpush.bf16.msra.mxu0 %v226
    %287 = vmatmul.bf16.gmra.mxu0 %v268
    %v288 = vpop.f32.mrf.mxu0
    %v289 = vadd.f32 %v138, %v288
    %v290 = vpop.f32.mrf.mxu0
    %v291 = vadd.f32 %v138, %v290
    %292 = vmatmul.bf16.gmra.mxu0 %v271
    %v293 = vpop.f32.mrf.mxu0
    %v294 = vadd.f32 %v138, %v293
    %v295 = vpop.f32.mrf.mxu0
    %v296 = vadd.f32 %v138, %v295
    %297 = vmatmul.bf16.gmra.mxu0 %v274
    %v298 = vpop.f32.mrf.mxu0
    %v299 = vadd.f32 %v138, %v298
    %v300 = vpop.f32.mrf.mxu0
    %v301 = vadd.f32 %v138, %v300
    %302 = vmatmul.bf16.gmra.mxu0 %v277
    %v303 = vpop.f32.mrf.mxu0
    %v304 = vadd.f32 %v138, %v303
    %v305 = vpop.f32.mrf.mxu0
    %v306 = vadd.f32 %v138, %v305
    %307 = vdwg.mxu0
    %308 = vmatpush.bf16.msra.mxu0 0
    %309 = vmatpush.bf16.msra.mxu0 0
    %310 = vmatpush.bf16.msra.mxu0 0
    %311 = vmatpush.bf16.msra.mxu0 %v243
    %312 = vmatpush.bf16.msra.mxu0 %v239
    %313 = vmatpush.bf16.msra.mxu0 %v235
    %314 = vmatpush.bf16.msra.mxu0 %v231
    %315 = vmatpush.bf16.msra.mxu0 %v227
    %316 = vmatmul.bf16.gmra.mxu0 %v268
    %v317 = vpop.f32.mrf.mxu0
    %v318 = vadd.f32 %v139, %v317
    %v319 = vpop.f32.mrf.mxu0
    %v320 = vadd.f32 %v139, %v319
    %321 = vmatmul.bf16.gmra.mxu0 %v271
    %v322 = vpop.f32.mrf.mxu0
    %v323 = vadd.f32 %v139, %v322
    %v324 = vpop.f32.mrf.mxu0
    %v325 = vadd.f32 %v139, %v324
    %326 = vmatmul.bf16.gmra.mxu0 %v274
    %v327 = vpop.f32.mrf.mxu0
    %v328 = vadd.f32 %v139, %v327
    %v329 = vpop.f32.mrf.mxu0
    %v330 = vadd.f32 %v139, %v329
    %331 = vmatmul.bf16.gmra.mxu0 %v277
    %v332 = vpop.f32.mrf.mxu0
    %v333 = vadd.f32 %v139, %v332
    %v334 = vpop.f32.mrf.mxu0
    %v335 = vadd.f32 %v139, %v334
    %336 = vdwg.mxu0
    %337 = vmatpush.bf16.msra.mxu0 0
    %338 = vmatpush.bf16.msra.mxu0 0
    %339 = vmatpush.bf16.msra.mxu0 0
    %340 = vmatpush.bf16.msra.mxu0 %v244
    %341 = vmatpush.bf16.msra.mxu0 %v240
    %342 = vmatpush.bf16.msra.mxu0 %v236
    %343 = vmatpush.bf16.msra.mxu0 %v232
    %344 = vmatpush.bf16.msra.mxu0 %v228
    %345 = vmatmul.bf16.gmra.mxu0 %v268
    %v346 = vpop.f32.mrf.mxu0
    %v347 = vadd.f32 %v140, %v346
    %v348 = vpop.f32.mrf.mxu0
    %v349 = vadd.f32 %v140, %v348
    %350 = vmatmul.bf16.gmra.mxu0 %v271
    %v351 = vpop.f32.mrf.mxu0
    %v352 = vadd.f32 %v140, %v351
    %v353 = vpop.f32.mrf.mxu0
    %v354 = vadd.f32 %v140, %v353
    %355 = vmatmul.bf16.gmra.mxu0 %v274
    %v356 = vpop.f32.mrf.mxu0
    %v357 = vadd.f32 %v140, %v356
    %v358 = vpop.f32.mrf.mxu0
    %v359 = vadd.f32 %v140, %v358
    %360 = vmatmul.bf16.gmra.mxu0 %v277
    %v361 = vpop.f32.mrf.mxu0
    %v362 = vadd.f32 %v140, %v361
    %v363 = vpop.f32.mrf.mxu0
    %v364 = vadd.f32 %v140, %v363
    %365 = vdwg.mxu0
    %366 = vmatpush.bf16.msra.mxu0 0
    %367 = vmatpush.bf16.msra.mxu0 0
    %368 = vmatpush.bf16.msra.mxu0 0
    %369 = vmatpush.bf16.msra.mxu0 %v245
    %370 = vmatpush.bf16.msra.mxu0 %v241
    %371 = vmatpush.bf16.msra.mxu0 %v237
    %372 = vmatpush.bf16.msra.mxu0 %v233
    %373 = vmatpush.bf16.msra.mxu0 %v229
    %374 = vmatmul.bf16.gmra.mxu0 %v268
    %v375 = vpop.f32.mrf.mxu0
    %v376 = vadd.f32 %v141, %v375
    %v377 = vpop.f32.mrf.mxu0
    %v378 = vadd.f32 %v141, %v377
    %379 = vmatmul.bf16.gmra.mxu0 %v271
    %v380 = vpop.f32.mrf.mxu0
    %v381 = vadd.f32 %v141, %v380
    %v382 = vpop.f32.mrf.mxu0
    %v383 = vadd.f32 %v141, %v382
    %384 = vmatmul.bf16.gmra.mxu0 %v274
    %v385 = vpop.f32.mrf.mxu0
    %v386 = vadd.f32 %v141, %v385
    %v387 = vpop.f32.mrf.mxu0
    %v388 = vadd.f32 %v141, %v387
    %389 = vmatmul.bf16.gmra.mxu0 %v277
    %v390 = vpop.f32.mrf.mxu0
    %v391 = vadd.f32 %v141, %v390
    %v392 = vpop.f32.mrf.mxu0
    %v393 = vadd.f32 %v141, %v392
    %394 = vdwg.mxu0
    %395 = vst [vmem:[#allocation2] sm:$0xff] %v289
    %396 = vst [vmem:[#allocation2 + $0x8] sm:$0xff] %v318
    %397 = vst [vmem:[#allocation2 + $0x10] sm:$0xff] %v347
    %398 = vst [vmem:[#allocation2 + $0x18] sm:$0xff] %v376
    %399 = vst [vmem:[#allocation2 + $0x20] sm:$0xff] %v291
    %400 = vst [vmem:[#allocation2 + $0x28] sm:$0xff] %v320
    %401 = vst [vmem:[#allocation2 + $0x30] sm:$0xff] %v349
    %402 = vst [vmem:[#allocation2 + $0x38] sm:$0xff] %v378
    %403 = vst [vmem:[#allocation2 + $0x40] sm:$0xff] %v294
    %404 = vst [vmem:[#allocation2 + $0x48] sm:$0xff] %v323
    %405 = vst [vmem:[#allocation2 + $0x50] sm:$0xff] %v352
    %406 = vst [vmem:[#allocation2 + $0x58] sm:$0xff] %v381
    %407 = vst [vmem:[#allocation2 + $0x60] sm:$0xff] %v296
    %408 = vst [vmem:[#allocation2 + $0x68] sm:$0xff] %v325
    %409 = vst [vmem:[#allocation2 + $0x70] sm:$0xff] %v354
    %410 = vst [vmem:[#allocation2 + $0x78] sm:$0xff] %v383
    %411 = vst [vmem:[#allocation2 + $0x80] sm:$0xff] %v299
    %412 = vst [vmem:[#allocation2 + $0x88] sm:$0xff] %v328
    %413 = vst [vmem:[#allocation2 + $0x90] sm:$0xff] %v357
    %414 = vst [vmem:[#allocation2 + $0x98] sm:$0xff] %v386
    %415 = vst [vmem:[#allocation2 + $0xa0] sm:$0xff] %v301
    %416 = vst [vmem:[#allocation2 + $0xa8] sm:$0xff] %v330
    %417 = vst [vmem:[#allocation2 + $0xb0] sm:$0xff] %v359
    %418 = vst [vmem:[#allocation2 + $0xb8] sm:$0xff] %v388
    %419 = vst [vmem:[#allocation2 + $0xc0] sm:$0xff] %v304
    %420 = vst [vmem:[#allocation2 + $0xc8] sm:$0xff] %v333
    %421 = vst [vmem:[#allocation2 + $0xd0] sm:$0xff] %v362
    %422 = vst [vmem:[#allocation2 + $0xd8] sm:$0xff] %v391
    %423 = vst [vmem:[#allocation2 + $0xe0] sm:$0xff] %v306
    %424 = vst [vmem:[#allocation2 + $0xe8] sm:$0xff] %v335
    %425 = vst [vmem:[#allocation2 + $0xf0] sm:$0xff] %v364
    %426 = vst [vmem:[#allocation2 + $0xf8] sm:$0xff] %v393
    %v427 = vld [vmem:[#allocation2] sm:$0xff]
    %v428 = vld [vmem:[#allocation2 + $0x8] sm:$0xff]
    %v429 = vld [vmem:[#allocation2 + $0x10] sm:$0xff]
    %v430 = vld [vmem:[#allocation2 + $0x18] sm:$0xff]
    %v431 = vmul.f32 %v427, 0.5
    %v432 = vtanh.pop %v431
    %v433 = vmul.f32 %v432, 0.5
    %v434 = vadd.f32 %v433, 0.5
    %v435 = vmul.f32 %v428, 0.5
    %v436 = vtanh.pop %v435
    %v437 = vmul.f32 %v436, 0.5
    %v438 = vadd.f32 %v437, 0.5
    %v439 = vtanh.pop %v429
    %v440 = vmul.f32 %v430, 0.5
    %v441 = vtanh.pop %v440
    %v442 = vmul.f32 %v441, 0.5
    %v443 = vadd.f32 %v442, 0.5
    %v444 = vmul.f32 %v438, 0.0
    %v445 = vmul.f32 %v434, %v439
    %v446 = vadd.f32 %v444, %v445
    %v447 = vtanh.pop %v446
    %v448 = vmul.f32 %v443, %v447
    %v449 = vld [vmem:[#allocation2 + $0x20] sm:$0xff]
    %v450 = vld [vmem:[#allocation2 + $0x28] sm:$0xff]
    %v451 = vld [vmem:[#allocation2 + $0x30] sm:$0xff]
    %v452 = vld [vmem:[#allocation2 + $0x38] sm:$0xff]
    %v453 = vpack.c.bf16 %v448, %v448
    %v454 = vld [vmem:[#allocation5] sm:$0xff]
    %v455 = vld [vmem:[#allocation5 + $0x8] sm:$0xff]
    %v456 = vld [vmem:[#allocation5 + $0x10] sm:$0xff]
    %v457 = vld [vmem:[#allocation5 + $0x18] sm:$0xff]
    %v458 = vld [vmem:[#allocation5 + $0x20] sm:$0xff]
    %v459 = vld [vmem:[#allocation5 + $0x28] sm:$0xff]
    %v460 = vld [vmem:[#allocation5 + $0x30] sm:$0xff]
    %v461 = vld [vmem:[#allocation5 + $0x38] sm:$0xff]
    %v462 = vld [vmem:[#allocation5 + $0x40] sm:$0xff]
    %v463 = vld [vmem:[#allocation5 + $0x48] sm:$0xff]
    %v464 = vld [vmem:[#allocation5 + $0x50] sm:$0xff]
    %v465 = vld [vmem:[#allocation5 + $0x58] sm:$0xff]
    %v466 = vld [vmem:[#allocation5 + $0x60] sm:$0xff]
    %v467 = vld [vmem:[#allocation5 + $0x68] sm:$0xff]
    %v468 = vld [vmem:[#allocation5 + $0x70] sm:$0xff]
    %v469 = vld [vmem:[#allocation5 + $0x78] sm:$0xff]
    %v470 = vld [vmem:[#allocation5 + $0x80] sm:$0xff]
    %v471 = vld [vmem:[#allocation5 + $0x88] sm:$0xff]
    %v472 = vld [vmem:[#allocation5 + $0x90] sm:$0xff]
    %v473 = vld [vmem:[#allocation5 + $0x98] sm:$0xff]
    %v474 = vld [vmem:[#allocation5 + $0xa0] sm:$0xff]
    %v475 = vld [vmem:[#allocation5 + $0xa8] sm:$0xff]
    %v476 = vld [vmem:[#allocation5 + $0xb0] sm:$0xff]
    %v477 = vld [vmem:[#allocation5 + $0xb8] sm:$0xff]
    %v478 = vld [vmem:[#allocation5 + $0xc0] sm:$0xff]
    %v479 = vld [vmem:[#allocation5 + $0xc8] sm:$0xff]
    %v480 = vld [vmem:[#allocation5 + $0xd0] sm:$0xff]
    %v481 = vld [vmem:[#allocation5 + $0xd8] sm:$0xff]
    %v482 = vld [vmem:[#allocation5 + $0xe0] sm:$0xff]
    %v483 = vld [vmem:[#allocation5 + $0xe8] sm:$0xff]
    %v484 = vld [vmem:[#allocation5 + $0xf0] sm:$0xff]
    %v485 = vld [vmem:[#allocation5 + $0xf8] sm:$0xff]
    %v518 = vunpack.c.l.b16 %v454
    %v519 = vunpack.c.h.b16 %v454
    %v520 = vunpack.c.l.b16 %v455
    %v521 = vunpack.c.h.b16 %v455
    %v522 = vunpack.c.l.b16 %v456
    %v523 = vunpack.c.h.b16 %v456
    %v524 = vunpack.c.l.b16 %v457
    %v525 = vunpack.c.h.b16 %v457
    %v526 = vunpack.c.l.b16 %v458
    %v527 = vunpack.c.h.b16 %v458
    %v528 = vunpack.c.l.b16 %v459
    %v529 = vunpack.c.h.b16 %v459
    %v530 = vunpack.c.l.b16 %v460
    %v531 = vunpack.c.h.b16 %v460
    %v532 = vunpack.c.l.b16 %v461
    %v533 = vunpack.c.h.b16 %v461
    %v534 = vunpack.c.l.b16 %v462
    %v535 = vunpack.c.h.b16 %v462
    %v536 = vunpack.c.l.b16 %v463
    %v537 = vunpack.c.h.b16 %v463
    %v538 = vunpack.c.l.b16 %v464
    %v539 = vunpack.c.h.b16 %v464
    %v540 = vunpack.c.l.b16 %v465
    %v541 = vunpack.c.h.b16 %v465
    %v542 = vunpack.c.l.b16 %v466
    %v543 = vunpack.c.h.b16 %v466
    %v544 = vunpack.c.l.b16 %v467
    %v545 = vunpack.c.h.b16 %v467
    %v546 = vunpack.c.l.b16 %v468
    %v547 = vunpack.c.h.b16 %v468
    %v548 = vunpack.c.l.b16 %v469
    %v549 = vunpack.c.h.b16 %v469
    %v550 = vunpack.c.l.b16 %v470
    %v551 = vunpack.c.h.b16 %v470
    %v552 = vunpack.c.l.b16 %v471
    %v553 = vunpack.c.h.b16 %v471
    %v554 = vunpack.c.l.b16 %v472
    %v555 = vunpack.c.h.b16 %v472
    %v556 = vunpack.c.l.b16 %v473
    %v557 = vunpack.c.h.b16 %v473
    %v558 = vunpack.c.l.b16 %v474
    %v559 = vunpack.c.h.b16 %v474
    %v560 = vunpack.c.l.b16 %v475
    %v561 = vunpack.c.h.b16 %v475
    %v562 = vunpack.c.l.b16 %v476
    %v563 = vunpack.c.h.b16 %v476
    %v564 = vunpack.c.l.b16 %v477
    %v565 = vunpack.c.h.b16 %v477
    %v566 = vunpack.c.l.b16 %v478
    %v567 = vunpack.c.h.b16 %v478
    %v568 = vunpack.c.l.b16 %v479
    %v569 = vunpack.c.h.b16 %v479
    %v570 = vunpack.c.l.b16 %v480
    %v571 = vunpack.c.h.b16 %v480
    %v572 = vunpack.c.l.b16 %v481
    %v573 = vunpack.c.h.b16 %v481
    %v574 = vunpack.c.l.b16 %v482
    %v575 = vunpack.c.h.b16 %v482
    %v576 = vunpack.c.l.b16 %v483
    %v577 = vunpack.c.h.b16 %v483
    %v578 = vunpack.c.l.b16 %v484
    %v579 = vunpack.c.h.b16 %v484
    %v580 = vunpack.c.l.b16 %v485
    %v581 = vunpack.c.h.b16 %v485
    %v582 = vpack.c.b16 %v522, %v518
    %v583 = vpack.c.b16 %v523, %v519
    %v584 = vpack.c.b16 %v524, %v520
    %v585 = vpack.c.b16 %v525, %v521
    %v586 = vpack.c.b16 %v530, %v526
    %v587 = vpack.c.b16 %v531, %v527
    %v588 = vpack.c.b16 %v532, %v528
    %v589 = vpack.c.b16 %v533, %v529
    %v590 = vpack.c.b16 %v538, %v534
    %v591 = vpack.c.b16 %v539, %v535
    %v592 = vpack.c.b16 %v540, %v536
    %v593 = vpack.c.b16 %v541, %v537
    %v594 = vpack.c.b16 %v546, %v542
    %v595 = vpack.c.b16 %v547, %v543
    %v596 = vpack.c.b16 %v548, %v544
    %v597 = vpack.c.b16 %v549, %v545
    %v598 = vpack.c.b16 %v554, %v550
    %v599 = vpack.c.b16 %v555, %v551
    %v600 = vpack.c.b16 %v556, %v552
    %v601 = vpack.c.b16 %v557, %v553
    %v602 = vpack.c.b16 %v562, %v558
    %v603 = vpack.c.b16 %v563, %v559
    %v604 = vpack.c.b16 %v564, %v560
    %v605 = vpack.c.b16 %v565, %v561
    %v606 = vpack.c.b16 %v570, %v566
    %v607 = vpack.c.b16 %v571, %v567
    %v608 = vpack.c.b16 %v572, %v568
    %v609 = vpack.c.b16 %v573, %v569
    %v610 = vpack.c.b16 %v578, %v574
    %v611 = vpack.c.b16 %v579, %v575
    %v612 = vpack.c.b16 %v580, %v576
    %v613 = vpack.c.b16 %v581, %v577
    %646 = vmatpush.bf16.msra.mxu0 %v610
    %647 = vmatpush.bf16.msra.mxu0 %v606
    %648 = vmatpush.bf16.msra.mxu0 %v602
    %649 = vmatpush.bf16.msra.mxu0 %v598
    %650 = vmatpush.bf16.msra.mxu0 %v594
    %651 = vmatpush.bf16.msra.mxu0 %v590
    %652 = vmatpush.bf16.msra.mxu0 %v586
    %653 = vmatpush.bf16.msra.mxu0 %v582
    %654 = vmatmul.bf16.gmra.mxu0 %v453
    %v655 = vpop.f32.mrf.mxu0
    %v656 = vadd.f32 0.0, %v655
    %v657 = vpop.f32.mrf.mxu0
    %658 = vdwg.mxu0
    %659 = vmatpush.bf16.msra.mxu0 %v611
    %660 = vmatpush.bf16.msra.mxu0 %v607
    %661 = vmatpush.bf16.msra.mxu0 %v603
    %662 = vmatpush.bf16.msra.mxu0 %v599
    %663 = vmatpush.bf16.msra.mxu0 %v595
    %664 = vmatpush.bf16.msra.mxu0 %v591
    %665 = vmatpush.bf16.msra.mxu0 %v587
    %666 = vmatpush.bf16.msra.mxu0 %v583
    %667 = vmatmul.bf16.gmra.mxu0 %v453
    %v668 = vpop.f32.mrf.mxu0
    %v669 = vadd.f32 0.0, %v668
    %v670 = vpop.f32.mrf.mxu0
    %671 = vdwg.mxu0
    %672 = vmatpush.bf16.msra.mxu0 %v612
    %673 = vmatpush.bf16.msra.mxu0 %v608
    %674 = vmatpush.bf16.msra.mxu0 %v604
    %675 = vmatpush.bf16.msra.mxu0 %v600
    %676 = vmatpush.bf16.msra.mxu0 %v596
    %677 = vmatpush.bf16.msra.mxu0 %v592
    %678 = vmatpush.bf16.msra.mxu0 %v588
    %679 = vmatpush.bf16.msra.mxu0 %v584
    %680 = vmatmul.bf16.gmra.mxu0 %v453
    %v681 = vpop.f32.mrf.mxu0
    %v682 = vadd.f32 0.0, %v681
    %v683 = vpop.f32.mrf.mxu0
    %684 = vdwg.mxu0
    %685 = vmatpush.bf16.msra.mxu0 %v613
    %686 = vmatpush.bf16.msra.mxu0 %v609
    %687 = vmatpush.bf16.msra.mxu0 %v605
    %688 = vmatpush.bf16.msra.mxu0 %v601
    %689 = vmatpush.bf16.msra.mxu0 %v597
    %690 = vmatpush.bf16.msra.mxu0 %v593
    %691 = vmatpush.bf16.msra.mxu0 %v589
    %692 = vmatpush.bf16.msra.mxu0 %v585
    %693 = vmatmul.bf16.gmra.mxu0 %v453
    %v694 = vpop.f32.mrf.mxu0
    %v695 = vadd.f32 0.0, %v694
    %v696 = vpop.f32.mrf.mxu0
    %697 = vdwg.mxu0
    %v698 = vadd.f32 %v449, %v656
    %v699 = vadd.f32 %v450, %v669
    %v700 = vadd.f32 %v451, %v682
    %v701 = vadd.f32 %v452, %v695
    %v702 = vmul.f32 %v698, 0.5
    %v703 = vtanh.pop %v702
    %v704 = vmul.f32 %v703, 0.5
    %v705 = vadd.f32 %v704, 0.5
    %v706 = vmul.f32 %v699, 0.5
    %v707 = vtanh.pop %v706
    %v708 = vmul.f32 %v707, 0.5
    %v709 = vadd.f32 %v708, 0.5
    %v710 = vtanh.pop %v700
    %v711 = vmul.f32 %v701, 0.5
    %v712 = vtanh.pop %v711
    %v713 = vmul.f32 %v712, 0.5
    %v714 = vadd.f32 %v713, 0.5
    %v715 = vmul.f32 %v709, %v446
    %v716 = vmul.f32 %v705, %v710
    %v717 = vadd.f32 %v715, %v716
    %v718 = vtanh.pop %v717
    %v719 = vmul.f32 %v714, %v718
    %v720 = vld [vmem:[#allocation7] sm:$0xff]
    %v721 = vld [vmem:[#allocation7 + $0x8] sm:$0xff]
    %v722 = vld [vmem:[#allocation7 + $0x10] sm:$0xff]
    %v723 = vld [vmem:[#allocation7 + $0x18] sm:$0xff]
    %v724 = vld [vmem:[#allocation7 + $0x20] sm:$0xff]
    %v725 = vld [vmem:[#allocation7 + $0x28] sm:$0xff]
    %v726 = vld [vmem:[#allocation7 + $0x30] sm:$0xff]
    %v727 = vld [vmem:[#allocation7 + $0x38] sm:$0xff]
    %v728 = vld [vmem:[#allocation7 + $0x40] sm:$0xff]
    %v729 = vld [vmem:[#allocation7 + $0x48] sm:$0xff]
    %v730 = vld [vmem:[#allocation7 + $0x50] sm:$0xff]
    %v731 = vld [vmem:[#allocation7 + $0x58] sm:$0xff]
    %v732 = vld [vmem:[#allocation7 + $0x60] sm:$0xff]
    %v733 = vld [vmem:[#allocation7 + $0x68] sm:$0xff]
    %v734 = vld [vmem:[#allocation7 + $0x70] sm:$0xff]
    %v735 = vld [vmem:[#allocation7 + $0x78] sm:$0xff]
    %v736 = vld [vmem:[#allocation7 + $0x80] sm:$0xff]
    %v737 = vld [vmem:[#allocation7 + $0x88] sm:$0xff]
    %v738 = vld [vmem:[#allocation7 + $0x90] sm:$0xff]
    %v739 = vld [vmem:[#allocation7 + $0x98] sm:$0xff]
    %v740 = vld [vmem:[#allocation7 + $0xa0] sm:$0xff]
    %v741 = vld [vmem:[#allocation7 + $0xa8] sm:$0xff]
    %v742 = vld [vmem:[#allocation7 + $0xb0] sm:$0xff]
    %v743 = vld [vmem:[#allocation7 + $0xb8] sm:$0xff]
    %v744 = vld [vmem:[#allocation7 + $0xc0] sm:$0xff]
    %v745 = vld [vmem:[#allocation7 + $0xc8] sm:$0xff]
    %v746 = vld [vmem:[#allocation7 + $0xd0] sm:$0xff]
    %v747 = vld [vmem:[#allocation7 + $0xd8] sm:$0xff]
    %v748 = vld [vmem:[#allocation7 + $0xe0] sm:$0xff]
    %v749 = vld [vmem:[#allocation7 + $0xe8] sm:$0xff]
    %v750 = vld [vmem:[#allocation7 + $0xf0] sm:$0xff]
    %v751 = vld [vmem:[#allocation7 + $0xf8] sm:$0xff]
    %v752 = vld [vmem:[%s6] sm:$0xf]
    %v754 = vperm.slane %v752, 0
    %v755 = vperm.slane %v752, 1
    %v756 = vperm.slane %v752, 2
    %v757 = vperm.slane %v752, 3
    %v794 = vunpack.c.l.b16 %v720
    %v795 = vunpack.c.h.b16 %v720
    %v796 = vunpack.c.l.b16 %v721
    %v797 = vunpack.c.h.b16 %v721
    %v798 = vunpack.c.l.b16 %v722
    %v799 = vunpack.c.h.b16 %v722
    %v800 = vunpack.c.l.b16 %v723
    %v801 = vunpack.c.h.b16 %v723
    %v802 = vunpack.c.l.b16 %v724
    %v803 = vunpack.c.h.b16 %v724
    %v804 = vunpack.c.l.b16 %v725
    %v805 = vunpack.c.h.b16 %v725
    %v806 = vunpack.c.l.b16 %v726
    %v807 = vunpack.c.h.b16 %v726
    %v808 = vunpack.c.l.b16 %v727
    %v809 = vunpack.c.h.b16 %v727
    %v810 = vunpack.c.l.b16 %v728
    %v811 = vunpack.c.h.b16 %v728
    %v812 = vunpack.c.l.b16 %v729
    %v813 = vunpack.c.h.b16 %v729
    %v814 = vunpack.c.l.b16 %v730
    %v815 = vunpack.c.h.b16 %v730
    %v816 = vunpack.c.l.b16 %v731
    %v817 = vunpack.c.h.b16 %v731
    %v818 = vunpack.c.l.b16 %v732
    %v819 = vunpack.c.h.b16 %v732
    %v820 = vunpack.c.l.b16 %v733
    %v821 = vunpack.c.h.b16 %v733
    %v822 = vunpack.c.l.b16 %v734
    %v823 = vunpack.c.h.b16 %v734
    %v824 = vunpack.c.l.b16 %v735
    %v825 = vunpack.c.h.b16 %v735
    %v826 = vunpack.c.l.b16 %v736
    %v827 = vunpack.c.h.b16 %v736
    %v828 = vunpack.c.l.b16 %v737
    %v829 = vunpack.c.h.b16 %v737
    %v830 = vunpack.c.l.b16 %v738
    %v831 = vunpack.c.h.b16 %v738
    %v832 = vunpack.c.l.b16 %v739
    %v833 = vunpack.c.h.b16 %v739
    %v834 = vunpack.c.l.b16 %v740
    %v835 = vunpack.c.h.b16 %v740
    %v836 = vunpack.c.l.b16 %v741
    %v837 = vunpack.c.h.b16 %v741
    %v838 = vunpack.c.l.b16 %v742
    %v839 = vunpack.c.h.b16 %v742
    %v840 = vunpack.c.l.b16 %v743
    %v841 = vunpack.c.h.b16 %v743
    %v842 = vunpack.c.l.b16 %v744
    %v843 = vunpack.c.h.b16 %v744
    %v844 = vunpack.c.l.b16 %v745
    %v845 = vunpack.c.h.b16 %v745
    %v846 = vunpack.c.l.b16 %v746
    %v847 = vunpack.c.h.b16 %v746
    %v848 = vunpack.c.l.b16 %v747
    %v849 = vunpack.c.h.b16 %v747
    %v850 = vunpack.c.l.b16 %v748
    %v851 = vunpack.c.h.b16 %v748
    %v852 = vunpack.c.l.b16 %v749
    %v853 = vunpack.c.h.b16 %v749
    %v854 = vunpack.c.l.b16 %v750
    %v855 = vunpack.c.h.b16 %v750
    %v856 = vunpack.c.l.b16 %v751
    %v857 = vunpack.c.h.b16 %v751
    %v858 = vpack.c.b16 %v798, %v794
    %v859 = vpack.c.b16 %v799, %v795
    %v860 = vpack.c.b16 %v800, %v796
    %v861 = vpack.c.b16 %v801, %v797
    %v862 = vpack.c.b16 %v806, %v802
    %v863 = vpack.c.b16 %v807, %v803
    %v864 = vpack.c.b16 %v808, %v804
    %v865 = vpack.c.b16 %v809, %v805
    %v866 = vpack.c.b16 %v814, %v810
    %v867 = vpack.c.b16 %v815, %v811
    %v868 = vpack.c.b16 %v816, %v812
    %v869 = vpack.c.b16 %v817, %v813
    %v870 = vpack.c.b16 %v822, %v818
    %v871 = vpack.c.b16 %v823, %v819
    %v872 = vpack.c.b16 %v824, %v820
    %v873 = vpack.c.b16 %v825, %v821
    %v874 = vpack.c.b16 %v830, %v826
    %v875 = vpack.c.b16 %v831, %v827
    %v876 = vpack.c.b16 %v832, %v828
    %v877 = vpack.c.b16 %v833, %v829
    %v878 = vpack.c.b16 %v838, %v834
    %v879 = vpack.c.b16 %v839, %v835
    %v880 = vpack.c.b16 %v840, %v836
    %v881 = vpack.c.b16 %v841, %v837
    %v882 = vpack.c.b16 %v846, %v842
    %v883 = vpack.c.b16 %v847, %v843
    %v884 = vpack.c.b16 %v848, %v844
    %v885 = vpack.c.b16 %v849, %v845
    %v886 = vpack.c.b16 %v854, %v850
    %v887 = vpack.c.b16 %v855, %v851
    %v888 = vpack.c.b16 %v856, %v852
    %v889 = vpack.c.b16 %v857, %v853
    %922 = vmatpush.bf16.msra.mxu0 %v886
    %923 = vmatpush.bf16.msra.mxu0 %v882
    %924 = vmatpush.bf16.msra.mxu0 %v878
    %925 = vmatpush.bf16.msra.mxu0 %v874
    %926 = vmatpush.bf16.msra.mxu0 %v870
    %927 = vmatpush.bf16.msra.mxu0 %v866
    %928 = vmatpush.bf16.msra.mxu0 %v862
    %929 = vmatpush.bf16.msra.mxu0 %v858
    %930 = vmatmul.bf16.gmra.mxu0 %v453
    %v931 = vpop.f32.mrf.mxu0
    %v932 = vadd.f32 %v754, %v931
    %v933 = vpop.f32.mrf.mxu0
    %934 = vdwg.mxu0
    %935 = vmatpush.bf16.msra.mxu0 %v887
    %936 = vmatpush.bf16.msra.mxu0 %v883
    %937 = vmatpush.bf16.msra.mxu0 %v879
    %938 = vmatpush.bf16.msra.mxu0 %v875
    %939 = vmatpush.bf16.msra.mxu0 %v871
    %940 = vmatpush.bf16.msra.mxu0 %v867
    %941 = vmatpush.bf16.msra.mxu0 %v863
    %942 = vmatpush.bf16.msra.mxu0 %v859
    %943 = vmatmul.bf16.gmra.mxu0 %v453
    %v944 = vpop.f32.mrf.mxu0
    %v945 = vadd.f32 %v755, %v944
    %v946 = vpop.f32.mrf.mxu0
    %947 = vdwg.mxu0
    %948 = vmatpush.bf16.msra.mxu0 %v888
    %949 = vmatpush.bf16.msra.mxu0 %v884
    %950 = vmatpush.bf16.msra.mxu0 %v880
    %951 = vmatpush.bf16.msra.mxu0 %v876
    %952 = vmatpush.bf16.msra.mxu0 %v872
    %953 = vmatpush.bf16.msra.mxu0 %v868
    %954 = vmatpush.bf16.msra.mxu0 %v864
    %955 = vmatpush.bf16.msra.mxu0 %v860
    %956 = vmatmul.bf16.gmra.mxu0 %v453
    %v957 = vpop.f32.mrf.mxu0
    %v958 = vadd.f32 %v756, %v957
    %v959 = vpop.f32.mrf.mxu0
    %960 = vdwg.mxu0
    %961 = vmatpush.bf16.msra.mxu0 %v889
    %962 = vmatpush.bf16.msra.mxu0 %v885
    %963 = vmatpush.bf16.msra.mxu0 %v881
    %964 = vmatpush.bf16.msra.mxu0 %v877
    %965 = vmatpush.bf16.msra.mxu0 %v873
    %966 = vmatpush.bf16.msra.mxu0 %v869
    %967 = vmatpush.bf16.msra.mxu0 %v865
    %968 = vmatpush.bf16.msra.mxu0 %v861
    %969 = vmatmul.bf16.gmra.mxu0 %v453
    %v970 = vpop.f32.mrf.mxu0
    %v971 = vadd.f32 %v757, %v970
    %v972 = vpop.f32.mrf.mxu0
    %973 = vdwg.mxu0
    %v974 = vmul.f32 %v932, 0.5
    %v975 = vtanh.pop %v974
    %v976 = vmul.f32 %v975, 0.5
    %v977 = vadd.f32 %v976, 0.5
    %v978 = vmul.f32 %v945, 0.5
    %v979 = vtanh.pop %v978
    %v980 = vmul.f32 %v979, 0.5
    %v981 = vadd.f32 %v980, 0.5
    %v982 = vtanh.pop %v958
    %v983 = vmul.f32 %v971, 0.5
    %v984 = vtanh.pop %v983
    %v985 = vmul.f32 %v984, 0.5
    %v986 = vadd.f32 %v985, 0.5
    %v987 = vmul.f32 %v981, 0.0
    %v988 = vmul.f32 %v977, %v982
    %v989 = vadd.f32 %v987, %v988
    %v990 = vtanh.pop %v989
    %v991 = vmul.f32 %v986, %v990
    %v992 = vld [vmem:[#allocation2 + $0x40] sm:$0xff]
    %v993 = vld [vmem:[#allocation2 + $0x48] sm:$0xff]
    %v994 = vld [vmem:[#allocation2 + $0x50] sm:$0xff]
    %v995 = vld [vmem:[#allocation2 + $0x58] sm:$0xff]
    %v996 = vpack.c.bf16 %v719, %v719
    %997 = vmatpush.bf16.msra.mxu0 %v610
    %998 = vmatpush.bf16.msra.mxu0 %v606
    %999 = vmatpush.bf16.msra.mxu0 %v602
    %1000 = vmatpush.bf16.msra.mxu0 %v598
    %1001 = vmatpush.bf16.msra.mxu0 %v594
    %1002 = vmatpush.bf16.msra.mxu0 %v590
    %1003 = vmatpush.bf16.msra.mxu0 %v586
    %1004 = vmatpush.bf16.msra.mxu0 %v582
    %1005 = vmatmul.bf16.gmra.mxu0 %v996
    %v1006 = vpop.f32.mrf.mxu0
    %v1007 = vadd.f32 0.0, %v1006
    %v1008 = vpop.f32.mrf.mxu0
    %1009 = vdwg.mxu0
    %1010 = vmatpush.bf16.msra.mxu0 %v611
    %1011 = vmatpush.bf16.msra.mxu0 %v607
    %1012 = vmatpush.bf16.msra.mxu0 %v603
    %1013 = vmatpush.bf16.msra.mxu0 %v599
    %1014 = vmatpush.bf16.msra.mxu0 %v595
    %1015 = vmatpush.bf16.msra.mxu0 %v591
    %1016 = vmatpush.bf16.msra.mxu0 %v587
    %1017 = vmatpush.bf16.msra.mxu0 %v583
    %1018 = vmatmul.bf16.gmra.mxu0 %v996
    %v1019 = vpop.f32.mrf.mxu0
    %v1020 = vadd.f32 0.0, %v1019
    %v1021 = vpop.f32.mrf.mxu0
    %1022 = vdwg.mxu0
    %1023 = vmatpush.bf16.msra.mxu0 %v612
    %1024 = vmatpush.bf16.msra.mxu0 %v608
    %1025 = vmatpush.bf16.msra.mxu0 %v604
    %1026 = vmatpush.bf16.msra.mxu0 %v600
    %1027 = vmatpush.bf16.msra.mxu0 %v596
    %1028 = vmatpush.bf16.msra.mxu0 %v592
    %1029 = vmatpush.bf16.msra.mxu0 %v588
    %1030 = vmatpush.bf16.msra.mxu0 %v584
    %1031 = vmatmul.bf16.gmra.mxu0 %v996
    %v1032 = vpop.f32.mrf.mxu0
    %v1033 = vadd.f32 0.0, %v1032
    %v1034 = vpop.f32.mrf.mxu0
    %1035 = vdwg.mxu0
    %1036 = vmatpush.bf16.msra.mxu0 %v613
    %1037 = vmatpush.bf16.msra.mxu0 %v609
    %1038 = vmatpush.bf16.msra.mxu0 %v605
    %1039 = vmatpush.bf16.msra.mxu0 %v601
    %1040 = vmatpush.bf16.msra.mxu0 %v597
    %1041 = vmatpush.bf16.msra.mxu0 %v593
    %1042 = vmatpush.bf16.msra.mxu0 %v589
    %1043 = vmatpush.bf16.msra.mxu0 %v585
    %1044 = vmatmul.bf16.gmra.mxu0 %v996
    %v1045 = vpop.f32.mrf.mxu0
    %v1046 = vadd.f32 0.0, %v1045
    %v1047 = vpop.f32.mrf.mxu0
    %1048 = vdwg.mxu0
    %v1049 = vadd.f32 %v992, %v1007
    %v1050 = vadd.f32 %v993, %v1020
    %v1051 = vadd.f32 %v994, %v1033
    %v1052 = vadd.f32 %v995, %v1046
    %v1053 = vmul.f32 %v1049, 0.5
    %v1054 = vtanh.pop %v1053
    %v1055 = vmul.f32 %v1054, 0.5
    %v1056 = vadd.f32 %v1055, 0.5
    %v1057 = vmul.f32 %v1050, 0.5
    %v1058 = vtanh.pop %v1057
    %v1059 = vmul.f32 %v1058, 0.5
    %v1060 = vadd.f32 %v1059, 0.5
    %v1061 = vtanh.pop %v1051
    %v1062 = vmul.f32 %v1052, 0.5
    %v1063 = vtanh.pop %v1062
    %v1064 = vmul.f32 %v1063, 0.5
    %v1065 = vadd.f32 %v1064, 0.5
    %v1066 = vmul.f32 %v1060, %v717
    %v1067 = vmul.f32 %v1056, %v1061
    %v1068 = vadd.f32 %v1066, %v1067
    %v1069 = vtanh.pop %v1068
    %v1070 = vmul.f32 %v1065, %v1069
    %1071 = vmatpush.bf16.msra.mxu0 %v886
    %1072 = vmatpush.bf16.msra.mxu0 %v882
    %1073 = vmatpush.bf16.msra.mxu0 %v878
    %1074 = vmatpush.bf16.msra.mxu0 %v874
    %1075 = vmatpush.bf16.msra.mxu0 %v870
    %1076 = vmatpush.bf16.msra.mxu0 %v866
    %1077 = vmatpush.bf16.msra.mxu0 %v862
    %1078 = vmatpush.bf16.msra.mxu0 %v858
    %1079 = vmatmul.bf16.gmra.mxu0 %v996
    %v1080 = vpop.f32.mrf.mxu0
    %v1081 = vadd.f32 %v754, %v1080
    %v1082 = vpop.f32.mrf.mxu0
    %1083 = vdwg.mxu0
    %1084 = vmatpush.bf16.msra.mxu0 %v887
    %1085 = vmatpush.bf16.msra.mxu0 %v883
    %1086 = vmatpush.bf16.msra.mxu0 %v879
    %1087 = vmatpush.bf16.msra.mxu0 %v875
    %1088 = vmatpush.bf16.msra.mxu0 %v871
    %1089 = vmatpush.bf16.msra.mxu0 %v867
    %1090 = vmatpush.bf16.msra.mxu0 %v863
    %1091 = vmatpush.bf16.msra.mxu0 %v859
    %1092 = vmatmul.bf16.gmra.mxu0 %v996
    %v1093 = vpop.f32.mrf.mxu0
    %v1094 = vadd.f32 %v755, %v1093
    %v1095 = vpop.f32.mrf.mxu0
    %1096 = vdwg.mxu0
    %1097 = vmatpush.bf16.msra.mxu0 %v888
    %1098 = vmatpush.bf16.msra.mxu0 %v884
    %1099 = vmatpush.bf16.msra.mxu0 %v880
    %1100 = vmatpush.bf16.msra.mxu0 %v876
    %1101 = vmatpush.bf16.msra.mxu0 %v872
    %1102 = vmatpush.bf16.msra.mxu0 %v868
    %1103 = vmatpush.bf16.msra.mxu0 %v864
    %1104 = vmatpush.bf16.msra.mxu0 %v860
    %1105 = vmatmul.bf16.gmra.mxu0 %v996
    %v1106 = vpop.f32.mrf.mxu0
    %v1107 = vadd.f32 %v756, %v1106
    %v1108 = vpop.f32.mrf.mxu0
    %1109 = vdwg.mxu0
    %1110 = vmatpush.bf16.msra.mxu0 %v889
    %1111 = vmatpush.bf16.msra.mxu0 %v885
    %1112 = vmatpush.bf16.msra.mxu0 %v881
    %1113 = vmatpush.bf16.msra.mxu0 %v877
    %1114 = vmatpush.bf16.msra.mxu0 %v873
    %1115 = vmatpush.bf16.msra.mxu0 %v869
    %1116 = vmatpush.bf16.msra.mxu0 %v865
    %1117 = vmatpush.bf16.msra.mxu0 %v861
    %1118 = vmatmul.bf16.gmra.mxu0 %v996
    %v1119 = vpop.f32.mrf.mxu0
    %v1120 = vadd.f32 %v757, %v1119
    %v1121 = vpop.f32.mrf.mxu0
    %1122 = vdwg.mxu0
    %v1123 = vpack.c.bf16 %v991, %v991
    %v1124 = vld [vmem:[#allocation8] sm:$0xff]
    %v1125 = vld [vmem:[#allocation8 + $0x8] sm:$0xff]
    %v1126 = vld [vmem:[#allocation8 + $0x10] sm:$0xff]
    %v1127 = vld [vmem:[#allocation8 + $0x18] sm:$0xff]
    %v1128 = vld [vmem:[#allocation8 + $0x20] sm:$0xff]
    %v1129 = vld [vmem:[#allocation8 + $0x28] sm:$0xff]
    %v1130 = vld [vmem:[#allocation8 + $0x30] sm:$0xff]
    %v1131 = vld [vmem:[#allocation8 + $0x38] sm:$0xff]
    %v1132 = vld [vmem:[#allocation8 + $0x40] sm:$0xff]
    %v1133 = vld [vmem:[#allocation8 + $0x48] sm:$0xff]
    %v1134 = vld [vmem:[#allocation8 + $0x50] sm:$0xff]
    %v1135 = vld [vmem:[#allocation8 + $0x58] sm:$0xff]
    %v1136 = vld [vmem:[#allocation8 + $0x60] sm:$0xff]
    %v1137 = vld [vmem:[#allocation8 + $0x68] sm:$0xff]
    %v1138 = vld [vmem:[#allocation8 + $0x70] sm:$0xff]
    %v1139 = vld [vmem:[#allocation8 + $0x78] sm:$0xff]
    %v1140 = vld [vmem:[#allocation8 + $0x80] sm:$0xff]
    %v1141 = vld [vmem:[#allocation8 + $0x88] sm:$0xff]
    %v1142 = vld [vmem:[#allocation8 + $0x90] sm:$0xff]
    %v1143 = vld [vmem:[#allocation8 + $0x98] sm:$0xff]
    %v1144 = vld [vmem:[#allocation8 + $0xa0] sm:$0xff]
    %v1145 = vld [vmem:[#allocation8 + $0xa8] sm:$0xff]
    %v1146 = vld [vmem:[#allocation8 + $0xb0] sm:$0xff]
    %v1147 = vld [vmem:[#allocation8 + $0xb8] sm:$0xff]
    %v1148 = vld [vmem:[#allocation8 + $0xc0] sm:$0xff]
    %v1149 = vld [vmem:[#allocation8 + $0xc8] sm:$0xff]
    %v1150 = vld [vmem:[#allocation8 + $0xd0] sm:$0xff]
    %v1151 = vld [vmem:[#allocation8 + $0xd8] sm:$0xff]
    %v1152 = vld [vmem:[#allocation8 + $0xe0] sm:$0xff]
    %v1153 = vld [vmem:[#allocation8 + $0xe8] sm:$0xff]
    %v1154 = vld [vmem:[#allocation8 + $0xf0] sm:$0xff]
    %v1155 = vld [vmem:[#allocation8 + $0xf8] sm:$0xff]
    %v1188 = vunpack.c.l.b16 %v1124
    %v1189 = vunpack.c.h.b16 %v1124
    %v1190 = vunpack.c.l.b16 %v1125
    %v1191 = vunpack.c.h.b16 %v1125
    %v1192 = vunpack.c.l.b16 %v1126
    %v1193 = vunpack.c.h.b16 %v1126
    %v1194 = vunpack.c.l.b16 %v1127
    %v1195 = vunpack.c.h.b16 %v1127
    %v1196 = vunpack.c.l.b16 %v1128
    %v1197 = vunpack.c.h.b16 %v1128
    %v1198 = vunpack.c.l.b16 %v1129
    %v1199 = vunpack.c.h.b16 %v1129
    %v1200 = vunpack.c.l.b16 %v1130
    %v1201 = vunpack.c.h.b16 %v1130
    %v1202 = vunpack.c.l.b16 %v1131
    %v1203 = vunpack.c.h.b16 %v1131
    %v1204 = vunpack.c.l.b16 %v1132
    %v1205 = vunpack.c.h.b16 %v1132
    %v1206 = vunpack.c.l.b16 %v1133
    %v1207 = vunpack.c.h.b16 %v1133
    %v1208 = vunpack.c.l.b16 %v1134
    %v1209 = vunpack.c.h.b16 %v1134
    %v1210 = vunpack.c.l.b16 %v1135
    %v1211 = vunpack.c.h.b16 %v1135
    %v1212 = vunpack.c.l.b16 %v1136
    %v1213 = vunpack.c.h.b16 %v1136
    %v1214 = vunpack.c.l.b16 %v1137
    %v1215 = vunpack.c.h.b16 %v1137
    %v1216 = vunpack.c.l.b16 %v1138
    %v1217 = vunpack.c.h.b16 %v1138
    %v1218 = vunpack.c.l.b16 %v1139
    %v1219 = vunpack.c.h.b16 %v1139
    %v1220 = vunpack.c.l.b16 %v1140
    %v1221 = vunpack.c.h.b16 %v1140
    %v1222 = vunpack.c.l.b16 %v1141
    %v1223 = vunpack.c.h.b16 %v1141
    %v1224 = vunpack.c.l.b16 %v1142
    %v1225 = vunpack.c.h.b16 %v1142
    %v1226 = vunpack.c.l.b16 %v1143
    %v1227 = vunpack.c.h.b16 %v1143
    %v1228 = vunpack.c.l.b16 %v1144
    %v1229 = vunpack.c.h.b16 %v1144
    %v1230 = vunpack.c.l.b16 %v1145
    %v1231 = vunpack.c.h.b16 %v1145
    %v1232 = vunpack.c.l.b16 %v1146
    %v1233 = vunpack.c.h.b16 %v1146
    %v1234 = vunpack.c.l.b16 %v1147
    %v1235 = vunpack.c.h.b16 %v1147
    %v1236 = vunpack.c.l.b16 %v1148
    %v1237 = vunpack.c.h.b16 %v1148
    %v1238 = vunpack.c.l.b16 %v1149
    %v1239 = vunpack.c.h.b16 %v1149
    %v1240 = vunpack.c.l.b16 %v1150
    %v1241 = vunpack.c.h.b16 %v1150
    %v1242 = vunpack.c.l.b16 %v1151
    %v1243 = vunpack.c.h.b16 %v1151
    %v1244 = vunpack.c.l.b16 %v1152
    %v1245 = vunpack.c.h.b16 %v1152
    %v1246 = vunpack.c.l.b16 %v1153
    %v1247 = vunpack.c.h.b16 %v1153
    %v1248 = vunpack.c.l.b16 %v1154
    %v1249 = vunpack.c.h.b16 %v1154
    %v1250 = vunpack.c.l.b16 %v1155
    %v1251 = vunpack.c.h.b16 %v1155
    %v1252 = vpack.c.b16 %v1192, %v1188
    %v1253 = vpack.c.b16 %v1193, %v1189
    %v1254 = vpack.c.b16 %v1194, %v1190
    %v1255 = vpack.c.b16 %v1195, %v1191
    %v1256 = vpack.c.b16 %v1200, %v1196
    %v1257 = vpack.c.b16 %v1201, %v1197
    %v1258 = vpack.c.b16 %v1202, %v1198
    %v1259 = vpack.c.b16 %v1203, %v1199
    %v1260 = vpack.c.b16 %v1208, %v1204
    %v1261 = vpack.c.b16 %v1209, %v1205
    %v1262 = vpack.c.b16 %v1210, %v1206
    %v1263 = vpack.c.b16 %v1211, %v1207
    %v1264 = vpack.c.b16 %v1216, %v1212
    %v1265 = vpack.c.b16 %v1217, %v1213
    %v1266 = vpack.c.b16 %v1218, %v1214
    %v1267 = vpack.c.b16 %v1219, %v1215
    %v1268 = vpack.c.b16 %v1224, %v1220
    %v1269 = vpack.c.b16 %v1225, %v1221
    %v1270 = vpack.c.b16 %v1226, %v1222
    %v1271 = vpack.c.b16 %v1227, %v1223
    %v1272 = vpack.c.b16 %v1232, %v1228
    %v1273 = vpack.c.b16 %v1233, %v1229
    %v1274 = vpack.c.b16 %v1234, %v1230
    %v1275 = vpack.c.b16 %v1235, %v1231
    %v1276 = vpack.c.b16 %v1240, %v1236
    %v1277 = vpack.c.b16 %v1241, %v1237
    %v1278 = vpack.c.b16 %v1242, %v1238
    %v1279 = vpack.c.b16 %v1243, %v1239
    %v1280 = vpack.c.b16 %v1248, %v1244
    %v1281 = vpack.c.b16 %v1249, %v1245
    %v1282 = vpack.c.b16 %v1250, %v1246
    %v1283 = vpack.c.b16 %v1251, %v1247
    %1316 = vmatpush.bf16.msra.mxu0 %v1280
    %1317 = vmatpush.bf16.msra.mxu0 %v1276
    %1318 = vmatpush.bf16.msra.mxu0 %v1272
    %1319 = vmatpush.bf16.msra.mxu0 %v1268
    %1320 = vmatpush.bf16.msra.mxu0 %v1264
    %1321 = vmatpush.bf16.msra.mxu0 %v1260
    %1322 = vmatpush.bf16.msra.mxu0 %v1256
    %1323 = vmatpush.bf16.msra.mxu0 %v1252
    %1324 = vmatmul.bf16.gmra.mxu0 %v1123
    %v1325 = vpop.f32.mrf.mxu0
    %v1326 = vadd.f32 0.0, %v1325
    %v1327 = vpop.f32.mrf.mxu0
    %1328 = vdwg.mxu0
    %1329 = vmatpush.bf16.msra.mxu0 %v1281
    %1330 = vmatpush.bf16.msra.mxu0 %v1277
    %1331 = vmatpush.bf16.msra.mxu0 %v1273
    %1332 = vmatpush.bf16.msra.mxu0 %v1269
    %1333 = vmatpush.bf16.msra.mxu0 %v1265
    %1334 = vmatpush.bf16.msra.mxu0 %v1261
    %1335 = vmatpush.bf16.msra.mxu0 %v1257
    %1336 = vmatpush.bf16.msra.mxu0 %v1253
    %1337 = vmatmul.bf16.gmra.mxu0 %v1123
    %v1338 = vpop.f32.mrf.mxu0
    %v1339 = vadd.f32 0.0, %v1338
    %v1340 = vpop.f32.mrf.mxu0
    %1341 = vdwg.mxu0
    %1342 = vmatpush.bf16.msra.mxu0 %v1282
    %1343 = vmatpush.bf16.msra.mxu0 %v1278
    %1344 = vmatpush.bf16.msra.mxu0 %v1274
    %1345 = vmatpush.bf16.msra.mxu0 %v1270
    %1346 = vmatpush.bf16.msra.mxu0 %v1266
    %1347 = vmatpush.bf16.msra.mxu0 %v1262
    %1348 = vmatpush.bf16.msra.mxu0 %v1258
    %1349 = vmatpush.bf16.msra.mxu0 %v1254
    %1350 = vmatmul.bf16.gmra.mxu0 %v1123
    %v1351 = vpop.f32.mrf.mxu0
    %v1352 = vadd.f32 0.0, %v1351
    %v1353 = vpop.f32.mrf.mxu0
    %1354 = vdwg.mxu0
    %1355 = vmatpush.bf16.msra.mxu0 %v1283
    %1356 = vmatpush.bf16.msra.mxu0 %v1279
    %1357 = vmatpush.bf16.msra.mxu0 %v1275
    %1358 = vmatpush.bf16.msra.mxu0 %v1271
    %1359 = vmatpush.bf16.msra.mxu0 %v1267
    %1360 = vmatpush.bf16.msra.mxu0 %v1263
    %1361 = vmatpush.bf16.msra.mxu0 %v1259
    %1362 = vmatpush.bf16.msra.mxu0 %v1255
    %1363 = vmatmul.bf16.gmra.mxu0 %v1123
    %v1364 = vpop.f32.mrf.mxu0
    %v1365 = vadd.f32 0.0, %v1364
    %v1366 = vpop.f32.mrf.mxu0
    %1367 = vdwg.mxu0
    %v1368 = vadd.f32 %v1081, %v1326
    %v1369 = vadd.f32 %v1094, %v1339
    %v1370 = vadd.f32 %v1107, %v1352
    %v1371 = vadd.f32 %v1120, %v1365
    %v1372 = vmul.f32 %v1368, 0.5
    %v1373 = vtanh.pop %v1372
    %v1374 = vmul.f32 %v1373, 0.5
    %v1375 = vadd.f32 %v1374, 0.5
    %v1376 = vmul.f32 %v1369, 0.5
    %v1377 = vtanh.pop %v1376
    %v1378 = vmul.f32 %v1377, 0.5
    %v1379 = vadd.f32 %v1378, 0.5
    %v1380 = vtanh.pop %v1370
    %v1381 = vmul.f32 %v1371, 0.5
    %v1382 = vtanh.pop %v1381
    %v1383 = vmul.f32 %v1382, 0.5
    %v1384 = vadd.f32 %v1383, 0.5
    %v1385 = vmul.f32 %v1379, %v989
    %v1386 = vmul.f32 %v1375, %v1380
    %v1387 = vadd.f32 %v1385, %v1386
    %v1388 = vtanh.pop %v1387
    %v1389 = vmul.f32 %v1384, %v1388
    %v1390 = vld [vmem:[#allocation2 + $0x60] sm:$0xff]
    %v1391 = vld [vmem:[#allocation2 + $0x68] sm:$0xff]
    %v1392 = vld [vmem:[#allocation2 + $0x70] sm:$0xff]
    %v1393 = vld [vmem:[#allocation2 + $0x78] sm:$0xff]
    %v1394 = vpack.c.bf16 %v1070, %v1070
    %1395 = vmatpush.bf16.msra.mxu0 %v610
    %1396 = vmatpush.bf16.msra.mxu0 %v606
    %1397 = vmatpush.bf16.msra.mxu0 %v602
    %1398 = vmatpush.bf16.msra.mxu0 %v598
    %1399 = vmatpush.bf16.msra.mxu0 %v594
    %1400 = vmatpush.bf16.msra.mxu0 %v590
    %1401 = vmatpush.bf16.msra.mxu0 %v586
    %1402 = vmatpush.bf16.msra.mxu0 %v582
    %1403 = vmatmul.bf16.gmra.mxu0 %v1394
    %v1404 = vpop.f32.mrf.mxu0
    %v1405 = vadd.f32 0.0, %v1404
    %v1406 = vpop.f32.mrf.mxu0
    %1407 = vdwg.mxu0
    %1408 = vmatpush.bf16.msra.mxu0 %v611
    %1409 = vmatpush.bf16.msra.mxu0 %v607
    %1410 = vmatpush.bf16.msra.mxu0 %v603
    %1411 = vmatpush.bf16.msra.mxu0 %v599
    %1412 = vmatpush.bf16.msra.mxu0 %v595
    %1413 = vmatpush.bf16.msra.mxu0 %v591
    %1414 = vmatpush.bf16.msra.mxu0 %v587
    %1415 = vmatpush.bf16.msra.mxu0 %v583
    %1416 = vmatmul.bf16.gmra.mxu0 %v1394
    %v1417 = vpop.f32.mrf.mxu0
    %v1418 = vadd.f32 0.0, %v1417
    %v1419 = vpop.f32.mrf.mxu0
    %1420 = vdwg.mxu0
    %1421 = vmatpush.bf16.msra.mxu0 %v612
    %1422 = vmatpush.bf16.msra.mxu0 %v608
    %1423 = vmatpush.bf16.msra.mxu0 %v604
    %1424 = vmatpush.bf16.msra.mxu0 %v600
    %1425 = vmatpush.bf16.msra.mxu0 %v596
    %1426 = vmatpush.bf16.msra.mxu0 %v592
    %1427 = vmatpush.bf16.msra.mxu0 %v588
    %1428 = vmatpush.bf16.msra.mxu0 %v584
    %1429 = vmatmul.bf16.gmra.mxu0 %v1394
    %v1430 = vpop.f32.mrf.mxu0
    %v1431 = vadd.f32 0.0, %v1430
    %v1432 = vpop.f32.mrf.mxu0
    %1433 = vdwg.mxu0
    %1434 = vmatpush.bf16.msra.mxu0 %v613
    %1435 = vmatpush.bf16.msra.mxu0 %v609
    %1436 = vmatpush.bf16.msra.mxu0 %v605
    %1437 = vmatpush.bf16.msra.mxu0 %v601
    %1438 = vmatpush.bf16.msra.mxu0 %v597
    %1439 = vmatpush.bf16.msra.mxu0 %v593
    %1440 = vmatpush.bf16.msra.mxu0 %v589
    %1441 = vmatpush.bf16.msra.mxu0 %v585
    %1442 = vmatmul.bf16.gmra.mxu0 %v1394
    %v1443 = vpop.f32.mrf.mxu0
    %v1444 = vadd.f32 0.0, %v1443
    %v1445 = vpop.f32.mrf.mxu0
    %1446 = vdwg.mxu0
    %v1447 = vadd.f32 %v1390, %v1405
    %v1448 = vadd.f32 %v1391, %v1418
    %v1449 = vadd.f32 %v1392, %v1431
    %v1450 = vadd.f32 %v1393, %v1444
    %v1451 = vmul.f32 %v1447, 0.5
    %v1452 = vtanh.pop %v1451
    %v1453 = vmul.f32 %v1452, 0.5
    %v1454 = vadd.f32 %v1453, 0.5
    %v1455 = vmul.f32 %v1448, 0.5
    %v1456 = vtanh.pop %v1455
    %v1457 = vmul.f32 %v1456, 0.5
    %v1458 = vadd.f32 %v1457, 0.5
    %v1459 = vtanh.pop %v1449
    %v1460 = vmul.f32 %v1450, 0.5
    %v1461 = vtanh.pop %v1460
    %v1462 = vmul.f32 %v1461, 0.5
    %v1463 = vadd.f32 %v1462, 0.5
    %v1464 = vmul.f32 %v1458, %v1068
    %v1465 = vmul.f32 %v1454, %v1459
    %v1466 = vadd.f32 %v1464, %v1465
    %v1467 = vtanh.pop %v1466
    %v1468 = vmul.f32 %v1463, %v1467
    %1469 = vmatpush.bf16.msra.mxu0 %v886
    %1470 = vmatpush.bf16.msra.mxu0 %v882
    %1471 = vmatpush.bf16.msra.mxu0 %v878
    %1472 = vmatpush.bf16.msra.mxu0 %v874
    %1473 = vmatpush.bf16.msra.mxu0 %v870
    %1474 = vmatpush.bf16.msra.mxu0 %v866
    %1475 = vmatpush.bf16.msra.mxu0 %v862
    %1476 = vmatpush.bf16.msra.mxu0 %v858
    %1477 = vmatmul.bf16.gmra.mxu0 %v1394
    %v1478 = vpop.f32.mrf.mxu0
    %v1479 = vadd.f32 %v754, %v1478
    %v1480 = vpop.f32.mrf.mxu0
    %1481 = vdwg.mxu0
    %1482 = vmatpush.bf16.msra.mxu0 %v887
    %1483 = vmatpush.bf16.msra.mxu0 %v883
    %1484 = vmatpush.bf16.msra.mxu0 %v879
    %1485 = vmatpush.bf16.msra.mxu0 %v875
    %1486 = vmatpush.bf16.msra.mxu0 %v871
    %1487 = vmatpush.bf16.msra.mxu0 %v867
    %1488 = vmatpush.bf16.msra.mxu0 %v863
    %1489 = vmatpush.bf16.msra.mxu0 %v859
    %1490 = vmatmul.bf16.gmra.mxu0 %v1394
    %v1491 = vpop.f32.mrf.mxu0
    %v1492 = vadd.f32 %v755, %v1491
    %v1493 = vpop.f32.mrf.mxu0
    %1494 = vdwg.mxu0
    %1495 = vmatpush.bf16.msra.mxu0 %v888
    %1496 = vmatpush.bf16.msra.mxu0 %v884
    %1497 = vmatpush.bf16.msra.mxu0 %v880
    %1498 = vmatpush.bf16.msra.mxu0 %v876
    %1499 = vmatpush.bf16.msra.mxu0 %v872
    %1500 = vmatpush.bf16.msra.mxu0 %v868
    %1501 = vmatpush.bf16.msra.mxu0 %v864
    %1502 = vmatpush.bf16.msra.mxu0 %v860
    %1503 = vmatmul.bf16.gmra.mxu0 %v1394
    %v1504 = vpop.f32.mrf.mxu0
    %v1505 = vadd.f32 %v756, %v1504
    %v1506 = vpop.f32.mrf.mxu0
    %1507 = vdwg.mxu0
    %1508 = vmatpush.bf16.msra.mxu0 %v889
    %1509 = vmatpush.bf16.msra.mxu0 %v885
    %1510 = vmatpush.bf16.msra.mxu0 %v881
    %1511 = vmatpush.bf16.msra.mxu0 %v877
    %1512 = vmatpush.bf16.msra.mxu0 %v873
    %1513 = vmatpush.bf16.msra.mxu0 %v869
    %1514 = vmatpush.bf16.msra.mxu0 %v865
    %1515 = vmatpush.bf16.msra.mxu0 %v861
    %1516 = vmatmul.bf16.gmra.mxu0 %v1394
    %v1517 = vpop.f32.mrf.mxu0
    %v1518 = vadd.f32 %v757, %v1517
    %v1519 = vpop.f32.mrf.mxu0
    %1520 = vdwg.mxu0
    %v1521 = vpack.c.bf16 %v1389, %v1389
    %1522 = vmatpush.bf16.msra.mxu0 %v1280
    %1523 = vmatpush.bf16.msra.mxu0 %v1276
    %1524 = vmatpush.bf16.msra.mxu0 %v1272
    %1525 = vmatpush.bf16.msra.mxu0 %v1268
    %1526 = vmatpush.bf16.msra.mxu0 %v1264
    %1527 = vmatpush.bf16.msra.mxu0 %v1260
    %1528 = vmatpush.bf16.msra.mxu0 %v1256
    %1529 = vmatpush.bf16.msra.mxu0 %v1252
    %1530 = vmatmul.bf16.gmra.mxu0 %v1521
    %v1531 = vpop.f32.mrf.mxu0
    %v1532 = vadd.f32 0.0, %v1531
    %v1533 = vpop.f32.mrf.mxu0
    %1534 = vdwg.mxu0
    %1535 = vmatpush.bf16.msra.mxu0 %v1281
    %1536 = vmatpush.bf16.msra.mxu0 %v1277
    %1537 = vmatpush.bf16.msra.mxu0 %v1273
    %1538 = vmatpush.bf16.msra.mxu0 %v1269
    %1539 = vmatpush.bf16.msra.mxu0 %v1265
    %1540 = vmatpush.bf16.msra.mxu0 %v1261
    %1541 = vmatpush.bf16.msra.mxu0 %v1257
    %1542 = vmatpush.bf16.msra.mxu0 %v1253
    %1543 = vmatmul.bf16.gmra.mxu0 %v1521
    %v1544 = vpop.f32.mrf.mxu0
    %v1545 = vadd.f32 0.0, %v1544
    %v1546 = vpop.f32.mrf.mxu0
    %1547 = vdwg.mxu0
    %1548 = vmatpush.bf16.msra.mxu0 %v1282
    %1549 = vmatpush.bf16.msra.mxu0 %v1278
    %1550 = vmatpush.bf16.msra.mxu0 %v1274
    %1551 = vmatpush.bf16.msra.mxu0 %v1270
    %1552 = vmatpush.bf16.msra.mxu0 %v1266
    %1553 = vmatpush.bf16.msra.mxu0 %v1262
    %1554 = vmatpush.bf16.msra.mxu0 %v1258
    %1555 = vmatpush.bf16.msra.mxu0 %v1254
    %1556 = vmatmul.bf16.gmra.mxu0 %v1521
    %v1557 = vpop.f32.mrf.mxu0
    %v1558 = vadd.f32 0.0, %v1557
    %v1559 = vpop.f32.mrf.mxu0
    %1560 = vdwg.mxu0
    %1561 = vmatpush.bf16.msra.mxu0 %v1283
    %1562 = vmatpush.bf16.msra.mxu0 %v1279
    %1563 = vmatpush.bf16.msra.mxu0 %v1275
    %1564 = vmatpush.bf16.msra.mxu0 %v1271
    %1565 = vmatpush.bf16.msra.mxu0 %v1267
    %1566 = vmatpush.bf16.msra.mxu0 %v1263
    %1567 = vmatpush.bf16.msra.mxu0 %v1259
    %1568 = vmatpush.bf16.msra.mxu0 %v1255
    %1569 = vmatmul.bf16.gmra.mxu0 %v1521
    %v1570 = vpop.f32.mrf.mxu0
    %v1571 = vadd.f32 0.0, %v1570
    %v1572 = vpop.f32.mrf.mxu0
    %1573 = vdwg.mxu0
    %v1574 = vadd.f32 %v1479, %v1532
    %v1575 = vadd.f32 %v1492, %v1545
    %v1576 = vadd.f32 %v1505, %v1558
    %v1577 = vadd.f32 %v1518, %v1571
    %v1578 = vmul.f32 %v1574, 0.5
    %v1579 = vtanh.pop %v1578
    %v1580 = vmul.f32 %v1579, 0.5
    %v1581 = vadd.f32 %v1580, 0.5
    %v1582 = vmul.f32 %v1575, 0.5
    %v1583 = vtanh.pop %v1582
    %v1584 = vmul.f32 %v1583, 0.5
    %v1585 = vadd.f32 %v1584, 0.5
    %v1586 = vtanh.pop %v1576
    %v1587 = vmul.f32 %v1577, 0.5
    %v1588 = vtanh.pop %v1587
    %v1589 = vmul.f32 %v1588, 0.5
    %v1590 = vadd.f32 %v1589, 0.5
    %v1591 = vmul.f32 %v1585, %v1387
    %v1592 = vmul.f32 %v1581, %v1586
    %v1593 = vadd.f32 %v1591, %v1592
    %v1594 = vtanh.pop %v1593
    %v1595 = vmul.f32 %v1590, %v1594
    %v1596 = vld [vmem:[#allocation2 + $0x80] sm:$0xff]
    %v1597 = vld [vmem:[#allocation2 + $0x88] sm:$0xff]
    %v1598 = vld [vmem:[#allocation2 + $0x90] sm:$0xff]
    %v1599 = vld [vmem:[#allocation2 + $0x98] sm:$0xff]
    %v1600 = vpack.c.bf16 %v1468, %v1468
    %1601 = vmatpush.bf16.msra.mxu0 %v610
    %1602 = vmatpush.bf16.msra.mxu0 %v606
    %1603 = vmatpush.bf16.msra.mxu0 %v602
    %1604 = vmatpush.bf16.msra.mxu0 %v598
    %1605 = vmatpush.bf16.msra.mxu0 %v594
    %1606 = vmatpush.bf16.msra.mxu0 %v590
    %1607 = vmatpush.bf16.msra.mxu0 %v586
    %1608 = vmatpush.bf16.msra.mxu0 %v582
    %1609 = vmatmul.bf16.gmra.mxu0 %v1600
    %v1610 = vpop.f32.mrf.mxu0
    %v1611 = vadd.f32 0.0, %v1610
    %v1612 = vpop.f32.mrf.mxu0
    %1613 = vdwg.mxu0
    %1614 = vmatpush.bf16.msra.mxu0 %v611
    %1615 = vmatpush.bf16.msra.mxu0 %v607
    %1616 = vmatpush.bf16.msra.mxu0 %v603
    %1617 = vmatpush.bf16.msra.mxu0 %v599
    %1618 = vmatpush.bf16.msra.mxu0 %v595
    %1619 = vmatpush.bf16.msra.mxu0 %v591
    %1620 = vmatpush.bf16.msra.mxu0 %v587
    %1621 = vmatpush.bf16.msra.mxu0 %v583
    %1622 = vmatmul.bf16.gmra.mxu0 %v1600
    %v1623 = vpop.f32.mrf.mxu0
    %v1624 = vadd.f32 0.0, %v1623
    %v1625 = vpop.f32.mrf.mxu0
    %1626 = vdwg.mxu0
    %1627 = vmatpush.bf16.msra.mxu0 %v612
    %1628 = vmatpush.bf16.msra.mxu0 %v608
    %1629 = vmatpush.bf16.msra.mxu0 %v604
    %1630 = vmatpush.bf16.msra.mxu0 %v600
    %1631 = vmatpush.bf16.msra.mxu0 %v596
    %1632 = vmatpush.bf16.msra.mxu0 %v592
    %1633 = vmatpush.bf16.msra.mxu0 %v588
    %1634 = vmatpush.bf16.msra.mxu0 %v584
    %1635 = vmatmul.bf16.gmra.mxu0 %v1600
    %v1636 = vpop.f32.mrf.mxu0
    %v1637 = vadd.f32 0.0, %v1636
    %v1638 = vpop.f32.mrf.mxu0
    %1639 = vdwg.mxu0
    %1640 = vmatpush.bf16.msra.mxu0 %v613
    %1641 = vmatpush.bf16.msra.mxu0 %v609
    %1642 = vmatpush.bf16.msra.mxu0 %v605
    %1643 = vmatpush.bf16.msra.mxu0 %v601
    %1644 = vmatpush.bf16.msra.mxu0 %v597
    %1645 = vmatpush.bf16.msra.mxu0 %v593
    %1646 = vmatpush.bf16.msra.mxu0 %v589
    %1647 = vmatpush.bf16.msra.mxu0 %v585
    %1648 = vmatmul.bf16.gmra.mxu0 %v1600
    %v1649 = vpop.f32.mrf.mxu0
    %v1650 = vadd.f32 0.0, %v1649
    %v1651 = vpop.f32.mrf.mxu0
    %1652 = vdwg.mxu0
    %v1653 = vadd.f32 %v1596, %v1611
    %v1654 = vadd.f32 %v1597, %v1624
    %v1655 = vadd.f32 %v1598, %v1637
    %v1656 = vadd.f32 %v1599, %v1650
    %v1657 = vmul.f32 %v1653, 0.5
    %v1658 = vtanh.pop %v1657
    %v1659 = vmul.f32 %v1658, 0.5
    %v1660 = vadd.f32 %v1659, 0.5
    %v1661 = vmul.f32 %v1654, 0.5
    %v1662 = vtanh.pop %v1661
    %v1663 = vmul.f32 %v1662, 0.5
    %v1664 = vadd.f32 %v1663, 0.5
    %v1665 = vtanh.pop %v1655
    %v1666 = vmul.f32 %v1656, 0.5
    %v1667 = vtanh.pop %v1666
    %v1668 = vmul.f32 %v1667, 0.5
    %v1669 = vadd.f32 %v1668, 0.5
    %v1670 = vmul.f32 %v1664, %v1466
    %v1671 = vmul.f32 %v1660, %v1665
    %v1672 = vadd.f32 %v1670, %v1671
    %v1673 = vtanh.pop %v1672
    %v1674 = vmul.f32 %v1669, %v1673
    %1675 = vmatpush.bf16.msra.mxu0 %v886
    %1676 = vmatpush.bf16.msra.mxu0 %v882
    %1677 = vmatpush.bf16.msra.mxu0 %v878
    %1678 = vmatpush.bf16.msra.mxu0 %v874
    %1679 = vmatpush.bf16.msra.mxu0 %v870
    %1680 = vmatpush.bf16.msra.mxu0 %v866
    %1681 = vmatpush.bf16.msra.mxu0 %v862
    %1682 = vmatpush.bf16.msra.mxu0 %v858
    %1683 = vmatmul.bf16.gmra.mxu0 %v1600
    %v1684 = vpop.f32.mrf.mxu0
    %v1685 = vadd.f32 %v754, %v1684
    %v1686 = vpop.f32.mrf.mxu0
    %1687 = vdwg.mxu0
    %1688 = vmatpush.bf16.msra.mxu0 %v887
    %1689 = vmatpush.bf16.msra.mxu0 %v883
    %1690 = vmatpush.bf16.msra.mxu0 %v879
    %1691 = vmatpush.bf16.msra.mxu0 %v875
    %1692 = vmatpush.bf16.msra.mxu0 %v871
    %1693 = vmatpush.bf16.msra.mxu0 %v867
    %1694 = vmatpush.bf16.msra.mxu0 %v863
    %1695 = vmatpush.bf16.msra.mxu0 %v859
    %1696 = vmatmul.bf16.gmra.mxu0 %v1600
    %v1697 = vpop.f32.mrf.mxu0
    %v1698 = vadd.f32 %v755, %v1697
    %v1699 = vpop.f32.mrf.mxu0
    %1700 = vdwg.mxu0
    %1701 = vmatpush.bf16.msra.mxu0 %v888
    %1702 = vmatpush.bf16.msra.mxu0 %v884
    %1703 = vmatpush.bf16.msra.mxu0 %v880
    %1704 = vmatpush.bf16.msra.mxu0 %v876
    %1705 = vmatpush.bf16.msra.mxu0 %v872
    %1706 = vmatpush.bf16.msra.mxu0 %v868
    %1707 = vmatpush.bf16.msra.mxu0 %v864
    %1708 = vmatpush.bf16.msra.mxu0 %v860
    %1709 = vmatmul.bf16.gmra.mxu0 %v1600
    %v1710 = vpop.f32.mrf.mxu0
    %v1711 = vadd.f32 %v756, %v1710
    %v1712 = vpop.f32.mrf.mxu0
    %1713 = vdwg.mxu0
    %1714 = vmatpush.bf16.msra.mxu0 %v889
    %1715 = vmatpush.bf16.msra.mxu0 %v885
    %1716 = vmatpush.bf16.msra.mxu0 %v881
    %1717 = vmatpush.bf16.msra.mxu0 %v877
    %1718 = vmatpush.bf16.msra.mxu0 %v873
    %1719 = vmatpush.bf16.msra.mxu0 %v869
    %1720 = vmatpush.bf16.msra.mxu0 %v865
    %1721 = vmatpush.bf16.msra.mxu0 %v861
    %1722 = vmatmul.bf16.gmra.mxu0 %v1600
    %v1723 = vpop.f32.mrf.mxu0
    %v1724 = vadd.f32 %v757, %v1723
    %v1725 = vpop.f32.mrf.mxu0
    %1726 = vdwg.mxu0
    %v1727 = vpack.c.bf16 %v1595, %v1595
    %1728 = vmatpush.bf16.msra.mxu0 %v1280
    %1729 = vmatpush.bf16.msra.mxu0 %v1276
    %1730 = vmatpush.bf16.msra.mxu0 %v1272
    %1731 = vmatpush.bf16.msra.mxu0 %v1268
    %1732 = vmatpush.bf16.msra.mxu0 %v1264
    %1733 = vmatpush.bf16.msra.mxu0 %v1260
    %1734 = vmatpush.bf16.msra.mxu0 %v1256
    %1735 = vmatpush.bf16.msra.mxu0 %v1252
    %1736 = vmatmul.bf16.gmra.mxu0 %v1727
    %v1737 = vpop.f32.mrf.mxu0
    %v1738 = vadd.f32 0.0, %v1737
    %v1739 = vpop.f32.mrf.mxu0
    %1740 = vdwg.mxu0
    %1741 = vmatpush.bf16.msra.mxu0 %v1281
    %1742 = vmatpush.bf16.msra.mxu0 %v1277
    %1743 = vmatpush.bf16.msra.mxu0 %v1273
    %1744 = vmatpush.bf16.msra.mxu0 %v1269
    %1745 = vmatpush.bf16.msra.mxu0 %v1265
    %1746 = vmatpush.bf16.msra.mxu0 %v1261
    %1747 = vmatpush.bf16.msra.mxu0 %v1257
    %1748 = vmatpush.bf16.msra.mxu0 %v1253
    %1749 = vmatmul.bf16.gmra.mxu0 %v1727
    %v1750 = vpop.f32.mrf.mxu0
    %v1751 = vadd.f32 0.0, %v1750
    %v1752 = vpop.f32.mrf.mxu0
    %1753 = vdwg.mxu0
    %1754 = vmatpush.bf16.msra.mxu0 %v1282
    %1755 = vmatpush.bf16.msra.mxu0 %v1278
    %1756 = vmatpush.bf16.msra.mxu0 %v1274
    %1757 = vmatpush.bf16.msra.mxu0 %v1270
    %1758 = vmatpush.bf16.msra.mxu0 %v1266
    %1759 = vmatpush.bf16.msra.mxu0 %v1262
    %1760 = vmatpush.bf16.msra.mxu0 %v1258
    %1761 = vmatpush.bf16.msra.mxu0 %v1254
    %1762 = vmatmul.bf16.gmra.mxu0 %v1727
    %v1763 = vpop.f32.mrf.mxu0
    %v1764 = vadd.f32 0.0, %v1763
    %v1765 = vpop.f32.mrf.mxu0
    %1766 = vdwg.mxu0
    %1767 = vmatpush.bf16.msra.mxu0 %v1283
    %1768 = vmatpush.bf16.msra.mxu0 %v1279
    %1769 = vmatpush.bf16.msra.mxu0 %v1275
    %1770 = vmatpush.bf16.msra.mxu0 %v1271
    %1771 = vmatpush.bf16.msra.mxu0 %v1267
    %1772 = vmatpush.bf16.msra.mxu0 %v1263
    %1773 = vmatpush.bf16.msra.mxu0 %v1259
    %1774 = vmatpush.bf16.msra.mxu0 %v1255
    %1775 = vmatmul.bf16.gmra.mxu0 %v1727
    %v1776 = vpop.f32.mrf.mxu0
    %v1777 = vadd.f32 0.0, %v1776
    %v1778 = vpop.f32.mrf.mxu0
    %1779 = vdwg.mxu0
    %v1780 = vadd.f32 %v1685, %v1738
    %v1781 = vadd.f32 %v1698, %v1751
    %v1782 = vadd.f32 %v1711, %v1764
    %v1783 = vadd.f32 %v1724, %v1777
    %v1784 = vmul.f32 %v1780, 0.5
    %v1785 = vtanh.pop %v1784
    %v1786 = vmul.f32 %v1785, 0.5
    %v1787 = vadd.f32 %v1786, 0.5
    %v1788 = vmul.f32 %v1781, 0.5
    %v1789 = vtanh.pop %v1788
    %v1790 = vmul.f32 %v1789, 0.5
    %v1791 = vadd.f32 %v1790, 0.5
    %v1792 = vtanh.pop %v1782
    %v1793 = vmul.f32 %v1783, 0.5
    %v1794 = vtanh.pop %v1793
    %v1795 = vmul.f32 %v1794, 0.5
    %v1796 = vadd.f32 %v1795, 0.5
    %v1797 = vmul.f32 %v1791, %v1593
    %v1798 = vmul.f32 %v1787, %v1792
    %v1799 = vadd.f32 %v1797, %v1798
    %v1800 = vtanh.pop %v1799
    %v1801 = vmul.f32 %v1796, %v1800
    %v1802 = vld [vmem:[#allocation2 + $0xa0] sm:$0xff]
    %v1803 = vld [vmem:[#allocation2 + $0xa8] sm:$0xff]
    %v1804 = vld [vmem:[#allocation2 + $0xb0] sm:$0xff]
    %v1805 = vld [vmem:[#allocation2 + $0xb8] sm:$0xff]
    %v1806 = vpack.c.bf16 %v1674, %v1674
    %1807 = vmatpush.bf16.msra.mxu0 %v610
    %1808 = vmatpush.bf16.msra.mxu0 %v606
    %1809 = vmatpush.bf16.msra.mxu0 %v602
    %1810 = vmatpush.bf16.msra.mxu0 %v598
    %1811 = vmatpush.bf16.msra.mxu0 %v594
    %1812 = vmatpush.bf16.msra.mxu0 %v590
    %1813 = vmatpush.bf16.msra.mxu0 %v586
    %1814 = vmatpush.bf16.msra.mxu0 %v582
    %1815 = vmatmul.bf16.gmra.mxu0 %v1806
    %v1816 = vpop.f32.mrf.mxu0
    %v1817 = vadd.f32 0.0, %v1816
    %v1818 = vpop.f32.mrf.mxu0
    %1819 = vdwg.mxu0
    %1820 = vmatpush.bf16.msra.mxu0 %v611
    %1821 = vmatpush.bf16.msra.mxu0 %v607
    %1822 = vmatpush.bf16.msra.mxu0 %v603
    %1823 = vmatpush.bf16.msra.mxu0 %v599
    %1824 = vmatpush.bf16.msra.mxu0 %v595
    %1825 = vmatpush.bf16.msra.mxu0 %v591
    %1826 = vmatpush.bf16.msra.mxu0 %v587
    %1827 = vmatpush.bf16.msra.mxu0 %v583
    %1828 = vmatmul.bf16.gmra.mxu0 %v1806
    %v1829 = vpop.f32.mrf.mxu0
    %v1830 = vadd.f32 0.0, %v1829
    %v1831 = vpop.f32.mrf.mxu0
    %1832 = vdwg.mxu0
    %1833 = vmatpush.bf16.msra.mxu0 %v612
    %1834 = vmatpush.bf16.msra.mxu0 %v608
    %1835 = vmatpush.bf16.msra.mxu0 %v604
    %1836 = vmatpush.bf16.msra.mxu0 %v600
    %1837 = vmatpush.bf16.msra.mxu0 %v596
    %1838 = vmatpush.bf16.msra.mxu0 %v592
    %1839 = vmatpush.bf16.msra.mxu0 %v588
    %1840 = vmatpush.bf16.msra.mxu0 %v584
    %1841 = vmatmul.bf16.gmra.mxu0 %v1806
    %v1842 = vpop.f32.mrf.mxu0
    %v1843 = vadd.f32 0.0, %v1842
    %v1844 = vpop.f32.mrf.mxu0
    %1845 = vdwg.mxu0
    %1846 = vmatpush.bf16.msra.mxu0 %v613
    %1847 = vmatpush.bf16.msra.mxu0 %v609
    %1848 = vmatpush.bf16.msra.mxu0 %v605
    %1849 = vmatpush.bf16.msra.mxu0 %v601
    %1850 = vmatpush.bf16.msra.mxu0 %v597
    %1851 = vmatpush.bf16.msra.mxu0 %v593
    %1852 = vmatpush.bf16.msra.mxu0 %v589
    %1853 = vmatpush.bf16.msra.mxu0 %v585
    %1854 = vmatmul.bf16.gmra.mxu0 %v1806
    %v1855 = vpop.f32.mrf.mxu0
    %v1856 = vadd.f32 0.0, %v1855
    %v1857 = vpop.f32.mrf.mxu0
    %1858 = vdwg.mxu0
    %v1859 = vadd.f32 %v1802, %v1817
    %v1860 = vadd.f32 %v1803, %v1830
    %v1861 = vadd.f32 %v1804, %v1843
    %v1862 = vadd.f32 %v1805, %v1856
    %v1863 = vmul.f32 %v1859, 0.5
    %v1864 = vtanh.pop %v1863
    %v1865 = vmul.f32 %v1864, 0.5
    %v1866 = vadd.f32 %v1865, 0.5
    %v1867 = vmul.f32 %v1860, 0.5
    %v1868 = vtanh.pop %v1867
    %v1869 = vmul.f32 %v1868, 0.5
    %v1870 = vadd.f32 %v1869, 0.5
    %v1871 = vtanh.pop %v1861
    %v1872 = vmul.f32 %v1862, 0.5
    %v1873 = vtanh.pop %v1872
    %v1874 = vmul.f32 %v1873, 0.5
    %v1875 = vadd.f32 %v1874, 0.5
    %v1876 = vmul.f32 %v1870, %v1672
    %v1877 = vmul.f32 %v1866, %v1871
    %v1878 = vadd.f32 %v1876, %v1877
    %v1879 = vtanh.pop %v1878
    %v1880 = vmul.f32 %v1875, %v1879
    %1881 = vmatpush.bf16.msra.mxu0 %v886
    %1882 = vmatpush.bf16.msra.mxu0 %v882
    %1883 = vmatpush.bf16.msra.mxu0 %v878
    %1884 = vmatpush.bf16.msra.mxu0 %v874
    %1885 = vmatpush.bf16.msra.mxu0 %v870
    %1886 = vmatpush.bf16.msra.mxu0 %v866
    %1887 = vmatpush.bf16.msra.mxu0 %v862
    %1888 = vmatpush.bf16.msra.mxu0 %v858
    %1889 = vmatmul.bf16.gmra.mxu0 %v1806
    %v1890 = vpop.f32.mrf.mxu0
    %v1891 = vadd.f32 %v754, %v1890
    %v1892 = vpop.f32.mrf.mxu0
    %1893 = vdwg.mxu0
    %1894 = vmatpush.bf16.msra.mxu0 %v887
    %1895 = vmatpush.bf16.msra.mxu0 %v883
    %1896 = vmatpush.bf16.msra.mxu0 %v879
    %1897 = vmatpush.bf16.msra.mxu0 %v875
    %1898 = vmatpush.bf16.msra.mxu0 %v871
    %1899 = vmatpush.bf16.msra.mxu0 %v867
    %1900 = vmatpush.bf16.msra.mxu0 %v863
    %1901 = vmatpush.bf16.msra.mxu0 %v859
    %1902 = vmatmul.bf16.gmra.mxu0 %v1806
    %v1903 = vpop.f32.mrf.mxu0
    %v1904 = vadd.f32 %v755, %v1903
    %v1905 = vpop.f32.mrf.mxu0
    %1906 = vdwg.mxu0
    %1907 = vmatpush.bf16.msra.mxu0 %v888
    %1908 = vmatpush.bf16.msra.mxu0 %v884
    %1909 = vmatpush.bf16.msra.mxu0 %v880
    %1910 = vmatpush.bf16.msra.mxu0 %v876
    %1911 = vmatpush.bf16.msra.mxu0 %v872
    %1912 = vmatpush.bf16.msra.mxu0 %v868
    %1913 = vmatpush.bf16.msra.mxu0 %v864
    %1914 = vmatpush.bf16.msra.mxu0 %v860
    %1915 = vmatmul.bf16.gmra.mxu0 %v1806
    %v1916 = vpop.f32.mrf.mxu0
    %v1917 = vadd.f32 %v756, %v1916
    %v1918 = vpop.f32.mrf.mxu0
    %1919 = vdwg.mxu0
    %1920 = vmatpush.bf16.msra.mxu0 %v889
    %1921 = vmatpush.bf16.msra.mxu0 %v885
    %1922 = vmatpush.bf16.msra.mxu0 %v881
    %1923 = vmatpush.bf16.msra.mxu0 %v877
    %1924 = vmatpush.bf16.msra.mxu0 %v873
    %1925 = vmatpush.bf16.msra.mxu0 %v869
    %1926 = vmatpush.bf16.msra.mxu0 %v865
    %1927 = vmatpush.bf16.msra.mxu0 %v861
    %1928 = vmatmul.bf16.gmra.mxu0 %v1806
    %v1929 = vpop.f32.mrf.mxu0
    %v1930 = vadd.f32 %v757, %v1929
    %v1931 = vpop.f32.mrf.mxu0
    %1932 = vdwg.mxu0
    %v1933 = vpack.c.bf16 %v1801, %v1801
    %1934 = vmatpush.bf16.msra.mxu0 %v1280
    %1935 = vmatpush.bf16.msra.mxu0 %v1276
    %1936 = vmatpush.bf16.msra.mxu0 %v1272
    %1937 = vmatpush.bf16.msra.mxu0 %v1268
    %1938 = vmatpush.bf16.msra.mxu0 %v1264
    %1939 = vmatpush.bf16.msra.mxu0 %v1260
    %1940 = vmatpush.bf16.msra.mxu0 %v1256
    %1941 = vmatpush.bf16.msra.mxu0 %v1252
    %1942 = vmatmul.bf16.gmra.mxu0 %v1933
    %v1943 = vpop.f32.mrf.mxu0
    %v1944 = vadd.f32 0.0, %v1943
    %v1945 = vpop.f32.mrf.mxu0
    %1946 = vdwg.mxu0
    %1947 = vmatpush.bf16.msra.mxu0 %v1281
    %1948 = vmatpush.bf16.msra.mxu0 %v1277
    %1949 = vmatpush.bf16.msra.mxu0 %v1273
    %1950 = vmatpush.bf16.msra.mxu0 %v1269
    %1951 = vmatpush.bf16.msra.mxu0 %v1265
    %1952 = vmatpush.bf16.msra.mxu0 %v1261
    %1953 = vmatpush.bf16.msra.mxu0 %v1257
    %1954 = vmatpush.bf16.msra.mxu0 %v1253
    %1955 = vmatmul.bf16.gmra.mxu0 %v1933
    %v1956 = vpop.f32.mrf.mxu0
    %v1957 = vadd.f32 0.0, %v1956
    %v1958 = vpop.f32.mrf.mxu0
    %1959 = vdwg.mxu0
    %1960 = vmatpush.bf16.msra.mxu0 %v1282
    %1961 = vmatpush.bf16.msra.mxu0 %v1278
    %1962 = vmatpush.bf16.msra.mxu0 %v1274
    %1963 = vmatpush.bf16.msra.mxu0 %v1270
    %1964 = vmatpush.bf16.msra.mxu0 %v1266
    %1965 = vmatpush.bf16.msra.mxu0 %v1262
    %1966 = vmatpush.bf16.msra.mxu0 %v1258
    %1967 = vmatpush.bf16.msra.mxu0 %v1254
    %1968 = vmatmul.bf16.gmra.mxu0 %v1933
    %v1969 = vpop.f32.mrf.mxu0
    %v1970 = vadd.f32 0.0, %v1969
    %v1971 = vpop.f32.mrf.mxu0
    %1972 = vdwg.mxu0
    %1973 = vmatpush.bf16.msra.mxu0 %v1283
    %1974 = vmatpush.bf16.msra.mxu0 %v1279
    %1975 = vmatpush.bf16.msra.mxu0 %v1275
    %1976 = vmatpush.bf16.msra.mxu0 %v1271
    %1977 = vmatpush.bf16.msra.mxu0 %v1267
    %1978 = vmatpush.bf16.msra.mxu0 %v1263
    %1979 = vmatpush.bf16.msra.mxu0 %v1259
    %1980 = vmatpush.bf16.msra.mxu0 %v1255
    %1981 = vmatmul.bf16.gmra.mxu0 %v1933
    %v1982 = vpop.f32.mrf.mxu0
    %v1983 = vadd.f32 0.0, %v1982
    %v1984 = vpop.f32.mrf.mxu0
    %1985 = vdwg.mxu0
    %v1986 = vadd.f32 %v1891, %v1944
    %v1987 = vadd.f32 %v1904, %v1957
    %v1988 = vadd.f32 %v1917, %v1970
    %v1989 = vadd.f32 %v1930, %v1983
    %v1990 = vmul.f32 %v1986, 0.5
    %v1991 = vtanh.pop %v1990
    %v1992 = vmul.f32 %v1991, 0.5
    %v1993 = vadd.f32 %v1992, 0.5
    %v1994 = vmul.f32 %v1987, 0.5
    %v1995 = vtanh.pop %v1994
    %v1996 = vmul.f32 %v1995, 0.5
    %v1997 = vadd.f32 %v1996, 0.5
    %v1998 = vtanh.pop %v1988
    %v1999 = vmul.f32 %v1989, 0.5
    %v2000 = vtanh.pop %v1999
    %v2001 = vmul.f32 %v2000, 0.5
    %v2002 = vadd.f32 %v2001, 0.5
    %v2003 = vmul.f32 %v1997, %v1799
    %v2004 = vmul.f32 %v1993, %v1998
    %v2005 = vadd.f32 %v2003, %v2004
    %v2006 = vtanh.pop %v2005
    %v2007 = vmul.f32 %v2002, %v2006
    %v2008 = vld [vmem:[#allocation2 + $0xc0] sm:$0xff]
    %v2009 = vld [vmem:[#allocation2 + $0xc8] sm:$0xff]
    %v2010 = vld [vmem:[#allocation2 + $0xd0] sm:$0xff]
    %v2011 = vld [vmem:[#allocation2 + $0xd8] sm:$0xff]
    %v2012 = vpack.c.bf16 %v1880, %v1880
    %2013 = vmatpush.bf16.msra.mxu0 %v610
    %2014 = vmatpush.bf16.msra.mxu0 %v606
    %2015 = vmatpush.bf16.msra.mxu0 %v602
    %2016 = vmatpush.bf16.msra.mxu0 %v598
    %2017 = vmatpush.bf16.msra.mxu0 %v594
    %2018 = vmatpush.bf16.msra.mxu0 %v590
    %2019 = vmatpush.bf16.msra.mxu0 %v586
    %2020 = vmatpush.bf16.msra.mxu0 %v582
    %2021 = vmatmul.bf16.gmra.mxu0 %v2012
    %v2022 = vpop.f32.mrf.mxu0
    %v2023 = vadd.f32 0.0, %v2022
    %v2024 = vpop.f32.mrf.mxu0
    %2025 = vdwg.mxu0
    %2026 = vmatpush.bf16.msra.mxu0 %v611
    %2027 = vmatpush.bf16.msra.mxu0 %v607
    %2028 = vmatpush.bf16.msra.mxu0 %v603
    %2029 = vmatpush.bf16.msra.mxu0 %v599
    %2030 = vmatpush.bf16.msra.mxu0 %v595
    %2031 = vmatpush.bf16.msra.mxu0 %v591
    %2032 = vmatpush.bf16.msra.mxu0 %v587
    %2033 = vmatpush.bf16.msra.mxu0 %v583
    %2034 = vmatmul.bf16.gmra.mxu0 %v2012
    %v2035 = vpop.f32.mrf.mxu0
    %v2036 = vadd.f32 0.0, %v2035
    %v2037 = vpop.f32.mrf.mxu0
    %2038 = vdwg.mxu0
    %2039 = vmatpush.bf16.msra.mxu0 %v612
    %2040 = vmatpush.bf16.msra.mxu0 %v608
    %2041 = vmatpush.bf16.msra.mxu0 %v604
    %2042 = vmatpush.bf16.msra.mxu0 %v600
    %2043 = vmatpush.bf16.msra.mxu0 %v596
    %2044 = vmatpush.bf16.msra.mxu0 %v592
    %2045 = vmatpush.bf16.msra.mxu0 %v588
    %2046 = vmatpush.bf16.msra.mxu0 %v584
    %2047 = vmatmul.bf16.gmra.mxu0 %v2012
    %v2048 = vpop.f32.mrf.mxu0
    %v2049 = vadd.f32 0.0, %v2048
    %v2050 = vpop.f32.mrf.mxu0
    %2051 = vdwg.mxu0
    %2052 = vmatpush.bf16.msra.mxu0 %v613
    %2053 = vmatpush.bf16.msra.mxu0 %v609
    %2054 = vmatpush.bf16.msra.mxu0 %v605
    %2055 = vmatpush.bf16.msra.mxu0 %v601
    %2056 = vmatpush.bf16.msra.mxu0 %v597
    %2057 = vmatpush.bf16.msra.mxu0 %v593
    %2058 = vmatpush.bf16.msra.mxu0 %v589
    %2059 = vmatpush.bf16.msra.mxu0 %v585
    %2060 = vmatmul.bf16.gmra.mxu0 %v2012
    %v2061 = vpop.f32.mrf.mxu0
    %v2062 = vadd.f32 0.0, %v2061
    %v2063 = vpop.f32.mrf.mxu0
    %2064 = vdwg.mxu0
    %v2065 = vadd.f32 %v2008, %v2023
    %v2066 = vadd.f32 %v2009, %v2036
    %v2067 = vadd.f32 %v2010, %v2049
    %v2068 = vadd.f32 %v2011, %v2062
    %v2069 = vmul.f32 %v2065, 0.5
    %v2070 = vtanh.pop %v2069
    %v2071 = vmul.f32 %v2070, 0.5
    %v2072 = vadd.f32 %v2071, 0.5
    %v2073 = vmul.f32 %v2066, 0.5
    %v2074 = vtanh.pop %v2073
    %v2075 = vmul.f32 %v2074, 0.5
    %v2076 = vadd.f32 %v2075, 0.5
    %v2077 = vtanh.pop %v2067
    %v2078 = vmul.f32 %v2068, 0.5
    %v2079 = vtanh.pop %v2078
    %v2080 = vmul.f32 %v2079, 0.5
    %v2081 = vadd.f32 %v2080, 0.5
    %v2082 = vmul.f32 %v2076, %v1878
    %v2083 = vmul.f32 %v2072, %v2077
    %v2084 = vadd.f32 %v2082, %v2083
    %v2085 = vtanh.pop %v2084
    %v2086 = vmul.f32 %v2081, %v2085
    %2087 = vmatpush.bf16.msra.mxu0 %v886
    %2088 = vmatpush.bf16.msra.mxu0 %v882
    %2089 = vmatpush.bf16.msra.mxu0 %v878
    %2090 = vmatpush.bf16.msra.mxu0 %v874
    %2091 = vmatpush.bf16.msra.mxu0 %v870
    %2092 = vmatpush.bf16.msra.mxu0 %v866
    %2093 = vmatpush.bf16.msra.mxu0 %v862
    %2094 = vmatpush.bf16.msra.mxu0 %v858
    %2095 = vmatmul.bf16.gmra.mxu0 %v2012
    %v2096 = vpop.f32.mrf.mxu0
    %v2097 = vadd.f32 %v754, %v2096
    %v2098 = vpop.f32.mrf.mxu0
    %2099 = vdwg.mxu0
    %2100 = vmatpush.bf16.msra.mxu0 %v887
    %2101 = vmatpush.bf16.msra.mxu0 %v883
    %2102 = vmatpush.bf16.msra.mxu0 %v879
    %2103 = vmatpush.bf16.msra.mxu0 %v875
    %2104 = vmatpush.bf16.msra.mxu0 %v871
    %2105 = vmatpush.bf16.msra.mxu0 %v867
    %2106 = vmatpush.bf16.msra.mxu0 %v863
    %2107 = vmatpush.bf16.msra.mxu0 %v859
    %2108 = vmatmul.bf16.gmra.mxu0 %v2012
    %v2109 = vpop.f32.mrf.mxu0
    %v2110 = vadd.f32 %v755, %v2109
    %v2111 = vpop.f32.mrf.mxu0
    %2112 = vdwg.mxu0
    %2113 = vmatpush.bf16.msra.mxu0 %v888
    %2114 = vmatpush.bf16.msra.mxu0 %v884
    %2115 = vmatpush.bf16.msra.mxu0 %v880
    %2116 = vmatpush.bf16.msra.mxu0 %v876
    %2117 = vmatpush.bf16.msra.mxu0 %v872
    %2118 = vmatpush.bf16.msra.mxu0 %v868
    %2119 = vmatpush.bf16.msra.mxu0 %v864
    %2120 = vmatpush.bf16.msra.mxu0 %v860
    %2121 = vmatmul.bf16.gmra.mxu0 %v2012
    %v2122 = vpop.f32.mrf.mxu0
    %v2123 = vadd.f32 %v756, %v2122
    %v2124 = vpop.f32.mrf.mxu0
    %2125 = vdwg.mxu0
    %2126 = vmatpush.bf16.msra.mxu0 %v889
    %2127 = vmatpush.bf16.msra.mxu0 %v885
    %2128 = vmatpush.bf16.msra.mxu0 %v881
    %2129 = vmatpush.bf16.msra.mxu0 %v877
    %2130 = vmatpush.bf16.msra.mxu0 %v873
    %2131 = vmatpush.bf16.msra.mxu0 %v869
    %2132 = vmatpush.bf16.msra.mxu0 %v865
    %2133 = vmatpush.bf16.msra.mxu0 %v861
    %2134 = vmatmul.bf16.gmra.mxu0 %v2012
    %v2135 = vpop.f32.mrf.mxu0
    %v2136 = vadd.f32 %v757, %v2135
    %v2137 = vpop.f32.mrf.mxu0
    %2138 = vdwg.mxu0
    %v2139 = vpack.c.bf16 %v2007, %v2007
    %2140 = vmatpush.bf16.msra.mxu0 %v1280
    %2141 = vmatpush.bf16.msra.mxu0 %v1276
    %2142 = vmatpush.bf16.msra.mxu0 %v1272
    %2143 = vmatpush.bf16.msra.mxu0 %v1268
    %2144 = vmatpush.bf16.msra.mxu0 %v1264
    %2145 = vmatpush.bf16.msra.mxu0 %v1260
    %2146 = vmatpush.bf16.msra.mxu0 %v1256
    %2147 = vmatpush.bf16.msra.mxu0 %v1252
    %2148 = vmatmul.bf16.gmra.mxu0 %v2139
    %v2149 = vpop.f32.mrf.mxu0
    %v2150 = vadd.f32 0.0, %v2149
    %v2151 = vpop.f32.mrf.mxu0
    %2152 = vdwg.mxu0
    %2153 = vmatpush.bf16.msra.mxu0 %v1281
    %2154 = vmatpush.bf16.msra.mxu0 %v1277
    %2155 = vmatpush.bf16.msra.mxu0 %v1273
    %2156 = vmatpush.bf16.msra.mxu0 %v1269
    %2157 = vmatpush.bf16.msra.mxu0 %v1265
    %2158 = vmatpush.bf16.msra.mxu0 %v1261
    %2159 = vmatpush.bf16.msra.mxu0 %v1257
    %2160 = vmatpush.bf16.msra.mxu0 %v1253
    %2161 = vmatmul.bf16.gmra.mxu0 %v2139
    %v2162 = vpop.f32.mrf.mxu0
    %v2163 = vadd.f32 0.0, %v2162
    %v2164 = vpop.f32.mrf.mxu0
    %2165 = vdwg.mxu0
    %2166 = vmatpush.bf16.msra.mxu0 %v1282
    %2167 = vmatpush.bf16.msra.mxu0 %v1278
    %2168 = vmatpush.bf16.msra.mxu0 %v1274
    %2169 = vmatpush.bf16.msra.mxu0 %v1270
    %2170 = vmatpush.bf16.msra.mxu0 %v1266
    %2171 = vmatpush.bf16.msra.mxu0 %v1262
    %2172 = vmatpush.bf16.msra.mxu0 %v1258
    %2173 = vmatpush.bf16.msra.mxu0 %v1254
    %2174 = vmatmul.bf16.gmra.mxu0 %v2139
    %v2175 = vpop.f32.mrf.mxu0
    %v2176 = vadd.f32 0.0, %v2175
    %v2177 = vpop.f32.mrf.mxu0
    %2178 = vdwg.mxu0
    %2179 = vmatpush.bf16.msra.mxu0 %v1283
    %2180 = vmatpush.bf16.msra.mxu0 %v1279
    %2181 = vmatpush.bf16.msra.mxu0 %v1275
    %2182 = vmatpush.bf16.msra.mxu0 %v1271
    %2183 = vmatpush.bf16.msra.mxu0 %v1267
    %2184 = vmatpush.bf16.msra.mxu0 %v1263
    %2185 = vmatpush.bf16.msra.mxu0 %v1259
    %2186 = vmatpush.bf16.msra.mxu0 %v1255
    %2187 = vmatmul.bf16.gmra.mxu0 %v2139
    %v2188 = vpop.f32.mrf.mxu0
    %v2189 = vadd.f32 0.0, %v2188
    %v2190 = vpop.f32.mrf.mxu0
    %2191 = vdwg.mxu0
    %v2192 = vadd.f32 %v2097, %v2150
    %v2193 = vadd.f32 %v2110, %v2163
    %v2194 = vadd.f32 %v2123, %v2176
    %v2195 = vadd.f32 %v2136, %v2189
    %v2196 = vmul.f32 %v2192, 0.5
    %v2197 = vtanh.pop %v2196
    %v2198 = vmul.f32 %v2197, 0.5
    %v2199 = vadd.f32 %v2198, 0.5
    %v2200 = vmul.f32 %v2193, 0.5
    %v2201 = vtanh.pop %v2200
    %v2202 = vmul.f32 %v2201, 0.5
    %v2203 = vadd.f32 %v2202, 0.5
    %v2204 = vtanh.pop %v2194
    %v2205 = vmul.f32 %v2195, 0.5
    %v2206 = vtanh.pop %v2205
    %v2207 = vmul.f32 %v2206, 0.5
    %v2208 = vadd.f32 %v2207, 0.5
    %v2209 = vmul.f32 %v2203, %v2005
    %v2210 = vmul.f32 %v2199, %v2204
    %v2211 = vadd.f32 %v2209, %v2210
    %v2212 = vtanh.pop %v2211
    %v2213 = vmul.f32 %v2208, %v2212
    %v2214 = vld [vmem:[#allocation2 + $0xe0] sm:$0xff]
    %v2215 = vld [vmem:[#allocation2 + $0xe8] sm:$0xff]
    %v2216 = vld [vmem:[#allocation2 + $0xf0] sm:$0xff]
    %v2217 = vld [vmem:[#allocation2 + $0xf8] sm:$0xff]
    %v2218 = vpack.c.bf16 %v2086, %v2086
    %2219 = vmatpush.bf16.msra.mxu0 %v610
    %2220 = vmatpush.bf16.msra.mxu0 %v606
    %2221 = vmatpush.bf16.msra.mxu0 %v602
    %2222 = vmatpush.bf16.msra.mxu0 %v598
    %2223 = vmatpush.bf16.msra.mxu0 %v594
    %2224 = vmatpush.bf16.msra.mxu0 %v590
    %2225 = vmatpush.bf16.msra.mxu0 %v586
    %2226 = vmatpush.bf16.msra.mxu0 %v582
    %2227 = vmatmul.bf16.gmra.mxu0 %v2218
    %v2228 = vpop.f32.mrf.mxu0
    %v2229 = vadd.f32 0.0, %v2228
    %v2230 = vpop.f32.mrf.mxu0
    %2231 = vdwg.mxu0
    %2232 = vmatpush.bf16.msra.mxu0 %v611
    %2233 = vmatpush.bf16.msra.mxu0 %v607
    %2234 = vmatpush.bf16.msra.mxu0 %v603
    %2235 = vmatpush.bf16.msra.mxu0 %v599
    %2236 = vmatpush.bf16.msra.mxu0 %v595
    %2237 = vmatpush.bf16.msra.mxu0 %v591
    %2238 = vmatpush.bf16.msra.mxu0 %v587
    %2239 = vmatpush.bf16.msra.mxu0 %v583
    %2240 = vmatmul.bf16.gmra.mxu0 %v2218
    %v2241 = vpop.f32.mrf.mxu0
    %v2242 = vadd.f32 0.0, %v2241
    %v2243 = vpop.f32.mrf.mxu0
    %2244 = vdwg.mxu0
    %2245 = vmatpush.bf16.msra.mxu0 %v612
    %2246 = vmatpush.bf16.msra.mxu0 %v608
    %2247 = vmatpush.bf16.msra.mxu0 %v604
    %2248 = vmatpush.bf16.msra.mxu0 %v600
    %2249 = vmatpush.bf16.msra.mxu0 %v596
    %2250 = vmatpush.bf16.msra.mxu0 %v592
    %2251 = vmatpush.bf16.msra.mxu0 %v588
    %2252 = vmatpush.bf16.msra.mxu0 %v584
    %2253 = vmatmul.bf16.gmra.mxu0 %v2218
    %v2254 = vpop.f32.mrf.mxu0
    %v2255 = vadd.f32 0.0, %v2254
    %v2256 = vpop.f32.mrf.mxu0
    %2257 = vdwg.mxu0
    %2258 = vmatpush.bf16.msra.mxu0 %v613
    %2259 = vmatpush.bf16.msra.mxu0 %v609
    %2260 = vmatpush.bf16.msra.mxu0 %v605
    %2261 = vmatpush.bf16.msra.mxu0 %v601
    %2262 = vmatpush.bf16.msra.mxu0 %v597
    %2263 = vmatpush.bf16.msra.mxu0 %v593
    %2264 = vmatpush.bf16.msra.mxu0 %v589
    %2265 = vmatpush.bf16.msra.mxu0 %v585
    %2266 = vmatmul.bf16.gmra.mxu0 %v2218
    %v2267 = vpop.f32.mrf.mxu0
    %v2268 = vadd.f32 0.0, %v2267
    %v2269 = vpop.f32.mrf.mxu0
    %2270 = vdwg.mxu0
    %v2271 = vadd.f32 %v2214, %v2229
    %v2272 = vadd.f32 %v2215, %v2242
    %v2273 = vadd.f32 %v2216, %v2255
    %v2274 = vadd.f32 %v2217, %v2268
    %v2275 = vmul.f32 %v2271, 0.5
    %v2276 = vtanh.pop %v2275
    %v2277 = vmul.f32 %v2276, 0.5
    %v2278 = vadd.f32 %v2277, 0.5
    %v2279 = vmul.f32 %v2272, 0.5
    %v2280 = vtanh.pop %v2279
    %v2281 = vmul.f32 %v2280, 0.5
    %v2282 = vadd.f32 %v2281, 0.5
    %v2283 = vtanh.pop %v2273
    %v2284 = vmul.f32 %v2274, 0.5
    %v2285 = vtanh.pop %v2284
    %v2286 = vmul.f32 %v2285, 0.5
    %v2287 = vadd.f32 %v2286, 0.5
    %v2288 = vmul.f32 %v2282, %v2084
    %v2289 = vmul.f32 %v2278, %v2283
    %v2290 = vadd.f32 %v2288, %v2289
    %v2291 = vtanh.pop %v2290
    %v2292 = vmul.f32 %v2287, %v2291
    %2293 = vmatpush.bf16.msra.mxu0 %v886
    %2294 = vmatpush.bf16.msra.mxu0 %v882
    %2295 = vmatpush.bf16.msra.mxu0 %v878
    %2296 = vmatpush.bf16.msra.mxu0 %v874
    %2297 = vmatpush.bf16.msra.mxu0 %v870
    %2298 = vmatpush.bf16.msra.mxu0 %v866
    %2299 = vmatpush.bf16.msra.mxu0 %v862
    %2300 = vmatpush.bf16.msra.mxu0 %v858
    %2301 = vmatmul.bf16.gmra.mxu0 %v2218
    %v2302 = vpop.f32.mrf.mxu0
    %v2303 = vadd.f32 %v754, %v2302
    %v2304 = vpop.f32.mrf.mxu0
    %2305 = vdwg.mxu0
    %2306 = vmatpush.bf16.msra.mxu0 %v887
    %2307 = vmatpush.bf16.msra.mxu0 %v883
    %2308 = vmatpush.bf16.msra.mxu0 %v879
    %2309 = vmatpush.bf16.msra.mxu0 %v875
    %2310 = vmatpush.bf16.msra.mxu0 %v871
    %2311 = vmatpush.bf16.msra.mxu0 %v867
    %2312 = vmatpush.bf16.msra.mxu0 %v863
    %2313 = vmatpush.bf16.msra.mxu0 %v859
    %2314 = vmatmul.bf16.gmra.mxu0 %v2218
    %v2315 = vpop.f32.mrf.mxu0
    %v2316 = vadd.f32 %v755, %v2315
    %v2317 = vpop.f32.mrf.mxu0
    %2318 = vdwg.mxu0
    %2319 = vmatpush.bf16.msra.mxu0 %v888
    %2320 = vmatpush.bf16.msra.mxu0 %v884
    %2321 = vmatpush.bf16.msra.mxu0 %v880
    %2322 = vmatpush.bf16.msra.mxu0 %v876
    %2323 = vmatpush.bf16.msra.mxu0 %v872
    %2324 = vmatpush.bf16.msra.mxu0 %v868
    %2325 = vmatpush.bf16.msra.mxu0 %v864
    %2326 = vmatpush.bf16.msra.mxu0 %v860
    %2327 = vmatmul.bf16.gmra.mxu0 %v2218
    %v2328 = vpop.f32.mrf.mxu0
    %v2329 = vadd.f32 %v756, %v2328
    %v2330 = vpop.f32.mrf.mxu0
    %2331 = vdwg.mxu0
    %2332 = vmatpush.bf16.msra.mxu0 %v889
    %2333 = vmatpush.bf16.msra.mxu0 %v885
    %2334 = vmatpush.bf16.msra.mxu0 %v881
    %2335 = vmatpush.bf16.msra.mxu0 %v877
    %2336 = vmatpush.bf16.msra.mxu0 %v873
    %2337 = vmatpush.bf16.msra.mxu0 %v869
    %2338 = vmatpush.bf16.msra.mxu0 %v865
    %2339 = vmatpush.bf16.msra.mxu0 %v861
    %2340 = vmatmul.bf16.gmra.mxu0 %v2218
    %v2341 = vpop.f32.mrf.mxu0
    %v2342 = vadd.f32 %v757, %v2341
    %v2343 = vpop.f32.mrf.mxu0
    %2344 = vdwg.mxu0
    %v2345 = vpack.c.bf16 %v2213, %v2213
    %2346 = vmatpush.bf16.msra.mxu0 %v1280
    %2347 = vmatpush.bf16.msra.mxu0 %v1276
    %2348 = vmatpush.bf16.msra.mxu0 %v1272
    %2349 = vmatpush.bf16.msra.mxu0 %v1268
    %2350 = vmatpush.bf16.msra.mxu0 %v1264
    %2351 = vmatpush.bf16.msra.mxu0 %v1260
    %2352 = vmatpush.bf16.msra.mxu0 %v1256
    %2353 = vmatpush.bf16.msra.mxu0 %v1252
    %2354 = vmatmul.bf16.gmra.mxu0 %v2345
    %v2355 = vpop.f32.mrf.mxu0
    %v2356 = vadd.f32 0.0, %v2355
    %v2357 = vpop.f32.mrf.mxu0
    %2358 = vdwg.mxu0
    %2359 = vmatpush.bf16.msra.mxu0 %v1281
    %2360 = vmatpush.bf16.msra.mxu0 %v1277
    %2361 = vmatpush.bf16.msra.mxu0 %v1273
    %2362 = vmatpush.bf16.msra.mxu0 %v1269
    %2363 = vmatpush.bf16.msra.mxu0 %v1265
    %2364 = vmatpush.bf16.msra.mxu0 %v1261
    %2365 = vmatpush.bf16.msra.mxu0 %v1257
    %2366 = vmatpush.bf16.msra.mxu0 %v1253
    %2367 = vmatmul.bf16.gmra.mxu0 %v2345
    %v2368 = vpop.f32.mrf.mxu0
    %v2369 = vadd.f32 0.0, %v2368
    %v2370 = vpop.f32.mrf.mxu0
    %2371 = vdwg.mxu0
    %2372 = vmatpush.bf16.msra.mxu0 %v1282
    %2373 = vmatpush.bf16.msra.mxu0 %v1278
    %2374 = vmatpush.bf16.msra.mxu0 %v1274
    %2375 = vmatpush.bf16.msra.mxu0 %v1270
    %2376 = vmatpush.bf16.msra.mxu0 %v1266
    %2377 = vmatpush.bf16.msra.mxu0 %v1262
    %2378 = vmatpush.bf16.msra.mxu0 %v1258
    %2379 = vmatpush.bf16.msra.mxu0 %v1254
    %2380 = vmatmul.bf16.gmra.mxu0 %v2345
    %v2381 = vpop.f32.mrf.mxu0
    %v2382 = vadd.f32 0.0, %v2381
    %v2383 = vpop.f32.mrf.mxu0
    %2384 = vdwg.mxu0
    %2385 = vmatpush.bf16.msra.mxu0 %v1283
    %2386 = vmatpush.bf16.msra.mxu0 %v1279
    %2387 = vmatpush.bf16.msra.mxu0 %v1275
    %2388 = vmatpush.bf16.msra.mxu0 %v1271
    %2389 = vmatpush.bf16.msra.mxu0 %v1267
    %2390 = vmatpush.bf16.msra.mxu0 %v1263
    %2391 = vmatpush.bf16.msra.mxu0 %v1259
    %2392 = vmatpush.bf16.msra.mxu0 %v1255
    %2393 = vmatmul.bf16.gmra.mxu0 %v2345
    %v2394 = vpop.f32.mrf.mxu0
    %v2395 = vadd.f32 0.0, %v2394
    %v2396 = vpop.f32.mrf.mxu0
    %2397 = vdwg.mxu0
    %v2398 = vadd.f32 %v2303, %v2356
    %v2399 = vadd.f32 %v2316, %v2369
    %v2400 = vadd.f32 %v2329, %v2382
    %v2401 = vadd.f32 %v2342, %v2395
    %v2402 = vmul.f32 %v2398, 0.5
    %v2403 = vtanh.pop %v2402
    %v2404 = vmul.f32 %v2403, 0.5
    %v2405 = vadd.f32 %v2404, 0.5
    %v2406 = vmul.f32 %v2399, 0.5
    %v2407 = vtanh.pop %v2406
    %v2408 = vmul.f32 %v2407, 0.5
    %v2409 = vadd.f32 %v2408, 0.5
    %v2410 = vtanh.pop %v2400
    %v2411 = vmul.f32 %v2401, 0.5
    %v2412 = vtanh.pop %v2411
    %v2413 = vmul.f32 %v2412, 0.5
    %v2414 = vadd.f32 %v2413, 0.5
    %v2415 = vmul.f32 %v2409, %v2211
    %v2416 = vmul.f32 %v2405, %v2410
    %v2417 = vadd.f32 %v2415, %v2416
    %v2418 = vtanh.pop %v2417
    %v2419 = vmul.f32 %v2414, %v2418
    %v2420 = vpack.c.bf16 %v2292, %v2292
    %2421 = vmatpush.bf16.msra.mxu0 %v886
    %2422 = vmatpush.bf16.msra.mxu0 %v882
    %2423 = vmatpush.bf16.msra.mxu0 %v878
    %2424 = vmatpush.bf16.msra.mxu0 %v874
    %2425 = vmatpush.bf16.msra.mxu0 %v870
    %2426 = vmatpush.bf16.msra.mxu0 %v866
    %2427 = vmatpush.bf16.msra.mxu0 %v862
    %2428 = vmatpush.bf16.msra.mxu0 %v858
    %2429 = vmatmul.bf16.gmra.mxu0 %v2420
    %v2430 = vpop.f32.mrf.mxu0
    %v2431 = vadd.f32 %v754, %v2430
    %v2432 = vpop.f32.mrf.mxu0
    %2433 = vdwg.mxu0
    %2434 = vmatpush.bf16.msra.mxu0 %v887
    %2435 = vmatpush.bf16.msra.mxu0 %v883
    %2436 = vmatpush.bf16.msra.mxu0 %v879
    %2437 = vmatpush.bf16.msra.mxu0 %v875
    %2438 = vmatpush.bf16.msra.mxu0 %v871
    %2439 = vmatpush.bf16.msra.mxu0 %v867
    %2440 = vmatpush.bf16.msra.mxu0 %v863
    %2441 = vmatpush.bf16.msra.mxu0 %v859
    %2442 = vmatmul.bf16.gmra.mxu0 %v2420
    %v2443 = vpop.f32.mrf.mxu0
    %v2444 = vadd.f32 %v755, %v2443
    %v2445 = vpop.f32.mrf.mxu0
    %2446 = vdwg.mxu0
    %2447 = vmatpush.bf16.msra.mxu0 %v888
    %2448 = vmatpush.bf16.msra.mxu0 %v884
    %2449 = vmatpush.bf16.msra.mxu0 %v880
    %2450 = vmatpush.bf16.msra.mxu0 %v876
    %2451 = vmatpush.bf16.msra.mxu0 %v872
    %2452 = vmatpush.bf16.msra.mxu0 %v868
    %2453 = vmatpush.bf16.msra.mxu0 %v864
    %2454 = vmatpush.bf16.msra.mxu0 %v860
    %2455 = vmatmul.bf16.gmra.mxu0 %v2420
    %v2456 = vpop.f32.mrf.mxu0
    %v2457 = vadd.f32 %v756, %v2456
    %v2458 = vpop.f32.mrf.mxu0
    %2459 = vdwg.mxu0
    %2460 = vmatpush.bf16.msra.mxu0 %v889
    %2461 = vmatpush.bf16.msra.mxu0 %v885
    %2462 = vmatpush.bf16.msra.mxu0 %v881
    %2463 = vmatpush.bf16.msra.mxu0 %v877
    %2464 = vmatpush.bf16.msra.mxu0 %v873
    %2465 = vmatpush.bf16.msra.mxu0 %v869
    %2466 = vmatpush.bf16.msra.mxu0 %v865
    %2467 = vmatpush.bf16.msra.mxu0 %v861
    %2468 = vmatmul.bf16.gmra.mxu0 %v2420
    %v2469 = vpop.f32.mrf.mxu0
    %v2470 = vadd.f32 %v757, %v2469
    %v2471 = vpop.f32.mrf.mxu0
    %2472 = vdwg.mxu0
    %v2473 = vpack.c.bf16 %v2419, %v2419
    %2474 = vmatpush.bf16.msra.mxu0 %v1280
    %2475 = vmatpush.bf16.msra.mxu0 %v1276
    %2476 = vmatpush.bf16.msra.mxu0 %v1272
    %2477 = vmatpush.bf16.msra.mxu0 %v1268
    %2478 = vmatpush.bf16.msra.mxu0 %v1264
    %2479 = vmatpush.bf16.msra.mxu0 %v1260
    %2480 = vmatpush.bf16.msra.mxu0 %v1256
    %2481 = vmatpush.bf16.msra.mxu0 %v1252
    %2482 = vmatmul.bf16.gmra.mxu0 %v2473
    %v2483 = vpop.f32.mrf.mxu0
    %v2484 = vadd.f32 0.0, %v2483
    %v2485 = vpop.f32.mrf.mxu0
    %2486 = vdwg.mxu0
    %2487 = vmatpush.bf16.msra.mxu0 %v1281
    %2488 = vmatpush.bf16.msra.mxu0 %v1277
    %2489 = vmatpush.bf16.msra.mxu0 %v1273
    %2490 = vmatpush.bf16.msra.mxu0 %v1269
    %2491 = vmatpush.bf16.msra.mxu0 %v1265
    %2492 = vmatpush.bf16.msra.mxu0 %v1261
    %2493 = vmatpush.bf16.msra.mxu0 %v1257
    %2494 = vmatpush.bf16.msra.mxu0 %v1253
    %2495 = vmatmul.bf16.gmra.mxu0 %v2473
    %v2496 = vpop.f32.mrf.mxu0
    %v2497 = vadd.f32 0.0, %v2496
    %v2498 = vpop.f32.mrf.mxu0
    %2499 = vdwg.mxu0
    %2500 = vmatpush.bf16.msra.mxu0 %v1282
    %2501 = vmatpush.bf16.msra.mxu0 %v1278
    %2502 = vmatpush.bf16.msra.mxu0 %v1274
    %2503 = vmatpush.bf16.msra.mxu0 %v1270
    %2504 = vmatpush.bf16.msra.mxu0 %v1266
    %2505 = vmatpush.bf16.msra.mxu0 %v1262
    %2506 = vmatpush.bf16.msra.mxu0 %v1258
    %2507 = vmatpush.bf16.msra.mxu0 %v1254
    %2508 = vmatmul.bf16.gmra.mxu0 %v2473
    %v2509 = vpop.f32.mrf.mxu0
    %v2510 = vadd.f32 0.0, %v2509
    %v2511 = vpop.f32.mrf.mxu0
    %2512 = vdwg.mxu0
    %2513 = vmatpush.bf16.msra.mxu0 %v1283
    %2514 = vmatpush.bf16.msra.mxu0 %v1279
    %2515 = vmatpush.bf16.msra.mxu0 %v1275
    %2516 = vmatpush.bf16.msra.mxu0 %v1271
    %2517 = vmatpush.bf16.msra.mxu0 %v1267
    %2518 = vmatpush.bf16.msra.mxu0 %v1263
    %2519 = vmatpush.bf16.msra.mxu0 %v1259
    %2520 = vmatpush.bf16.msra.mxu0 %v1255
    %2521 = vmatmul.bf16.gmra.mxu0 %v2473
    %v2522 = vpop.f32.mrf.mxu0
    %v2523 = vadd.f32 0.0, %v2522
    %v2524 = vpop.f32.mrf.mxu0
    %2525 = vdwg.mxu0
    %v2526 = vadd.f32 %v2431, %v2484
    %v2527 = vadd.f32 %v2444, %v2497
    %v2528 = vadd.f32 %v2457, %v2510
    %v2529 = vadd.f32 %v2470, %v2523
    %v2530 = vmul.f32 %v2526, 0.5
    %v2531 = vtanh.pop %v2530
    %v2532 = vmul.f32 %v2531, 0.5
    %v2533 = vadd.f32 %v2532, 0.5
    %v2534 = vmul.f32 %v2527, 0.5
    %v2535 = vtanh.pop %v2534
    %v2536 = vmul.f32 %v2535, 0.5
    %v2537 = vadd.f32 %v2536, 0.5
    %v2538 = vtanh.pop %v2528
    %v2539 = vmul.f32 %v2529, 0.5
    %v2540 = vtanh.pop %v2539
    %v2541 = vmul.f32 %v2540, 0.5
    %v2542 = vadd.f32 %v2541, 0.5
    %v2543 = vmul.f32 %v2537, %v2417
    %v2544 = vmul.f32 %v2533, %v2538
    %v2545 = vadd.f32 %v2543, %v2544
    %v2546 = vtanh.pop %v2545
    %v2547 = vmul.f32 %v2542, %v2546
    %v2548 = vpack.c.bf16 %v2547, %v2547
    %v2549 = vld [vmem:[%s7] sm:$0xf]
    %v2550 = vld [vmem:[%s7 + $0x4] sm:$0xf]
    %v2551 = vld [vmem:[%s7 + $0x8] sm:$0xf]
    %v2552 = vld [vmem:[%s7 + $0xc] sm:$0xf]
    %v2553 = vld [vmem:[%s7 + $0x10] sm:$0xf]
    %v2554 = vld [vmem:[%s7 + $0x14] sm:$0xf]
    %v2555 = vld [vmem:[%s7 + $0x18] sm:$0xf]
    %v2556 = vld [vmem:[%s7 + $0x1c] sm:$0xf]
    %v2557 = vld [vmem:[%s7 + $0x20] sm:$0xf]
    %v2558 = vld [vmem:[%s7 + $0x24] sm:$0xf]
    %v2559 = vld [vmem:[%s7 + $0x28] sm:$0xf]
    %v2560 = vld [vmem:[%s7 + $0x2c] sm:$0xf]
    %v2561 = vld [vmem:[%s7 + $0x30] sm:$0xf]
    %v2562 = vld [vmem:[%s7 + $0x34] sm:$0xf]
    %v2563 = vld [vmem:[%s7 + $0x38] sm:$0xf]
    %v2564 = vld [vmem:[%s7 + $0x3c] sm:$0xf]
    %v2565 = vld [vmem:[%s8] sm:$0x1]
    %v2567 = vperm.slane %v2565, 0
    %v2585 = vunpack.c.l.b16 %v2549
    %v2586 = vunpack.c.l.b16 %v2550
    %v2587 = vunpack.c.l.b16 %v2551
    %v2588 = vunpack.c.l.b16 %v2552
    %v2589 = vunpack.c.l.b16 %v2553
    %v2590 = vunpack.c.l.b16 %v2554
    %v2591 = vunpack.c.l.b16 %v2555
    %v2592 = vunpack.c.l.b16 %v2556
    %v2593 = vunpack.c.l.b16 %v2557
    %v2594 = vunpack.c.l.b16 %v2558
    %v2595 = vunpack.c.l.b16 %v2559
    %v2596 = vunpack.c.l.b16 %v2560
    %v2597 = vunpack.c.l.b16 %v2561
    %v2598 = vunpack.c.l.b16 %v2562
    %v2599 = vunpack.c.l.b16 %v2563
    %v2600 = vunpack.c.l.b16 %v2564
    %v2601 = vpack.c.b16 %v2586, %v2585
    %v2602 = vpack.c.b16 %v2588, %v2587
    %v2603 = vpack.c.b16 %v2590, %v2589
    %v2604 = vpack.c.b16 %v2592, %v2591
    %v2605 = vpack.c.b16 %v2594, %v2593
    %v2606 = vpack.c.b16 %v2596, %v2595
    %v2607 = vpack.c.b16 %v2598, %v2597
    %v2608 = vpack.c.b16 %v2600, %v2599
    %2617 = vmatpush.bf16.msra.mxu0 %v2608
    %2618 = vmatpush.bf16.msra.mxu0 %v2607
    %2619 = vmatpush.bf16.msra.mxu0 %v2606
    %2620 = vmatpush.bf16.msra.mxu0 %v2605
    %2621 = vmatpush.bf16.msra.mxu0 %v2604
    %2622 = vmatpush.bf16.msra.mxu0 %v2603
    %2623 = vmatpush.bf16.msra.mxu0 %v2602
    %2624 = vmatpush.bf16.msra.mxu0 %v2601
    %2625 = vmatmul.bf16.gmra.mxu0 %v2548
    %v2626 = vpop.f32.mrf.mxu0
    %v2627 = vadd.f32 %v2567, %v2626
    %v2628 = vpop.f32.mrf.mxu0
    %2629 = vdwg.mxu0
    %v2630 = vmax.f32 %v2627, 0.0
    %v2631 = vpack.c.bf16 %v2630, %v2630
    %v2632 = vld [vmem:[%s9] sm:$0xf]
    %v2633 = vld [vmem:[%s9 + $0x4] sm:$0xf]
    %v2634 = vld [vmem:[%s9 + $0x8] sm:$0xf]
    %v2635 = vld [vmem:[%s9 + $0xc] sm:$0xf]
    %v2636 = vld [vmem:[%s9 + $0x10] sm:$0xf]
    %v2637 = vld [vmem:[%s9 + $0x14] sm:$0xf]
    %v2638 = vld [vmem:[%s9 + $0x18] sm:$0xf]
    %v2639 = vld [vmem:[%s9 + $0x1c] sm:$0xf]
    %v2640 = vld [vmem:[%s10] sm:$0x1]
    %v2642 = vperm.slane %v2640, 0
    %v2652 = vunpack.c.l.b16 %v2632
    %v2653 = vunpack.c.l.b16 %v2633
    %v2654 = vunpack.c.l.b16 %v2634
    %v2655 = vunpack.c.l.b16 %v2635
    %v2656 = vunpack.c.l.b16 %v2636
    %v2657 = vunpack.c.l.b16 %v2637
    %v2658 = vunpack.c.l.b16 %v2638
    %v2659 = vunpack.c.l.b16 %v2639
    %v2660 = vpack.c.b16 %v2653, %v2652
    %v2661 = vpack.c.b16 %v2655, %v2654
    %v2662 = vpack.c.b16 %v2657, %v2656
    %v2663 = vpack.c.b16 %v2659, %v2658
    %vm2668 = vcmask 523264
    %v2670 = vsel %vm2668, %v2631, 0
    %2672 = vmatpush.bf16.msra.mxu0 0
    %2673 = vmatpush.bf16.msra.mxu0 0
    %2674 = vmatpush.bf16.msra.mxu0 0
    %2675 = vmatpush.bf16.msra.mxu0 0
    %2676 = vmatpush.bf16.msra.mxu0 %v2663
    %2677 = vmatpush.bf16.msra.mxu0 %v2662
    %2678 = vmatpush.bf16.msra.mxu0 %v2661
    %2679 = vmatpush.bf16.msra.mxu0 %v2660
    %2680 = vmatmul.bf16.gmra.mxu0 %v2670
    %v2681 = vpop.f32.mrf.mxu0
    %v2682 = vadd.f32 %v2642, %v2681
    %v2683 = vpop.f32.mrf.mxu0
    %2684 = vdwg.mxu0
    %v2685 = vmax.f32 %v2682, 0.0
    %v2686 = vpack.c.bf16 %v2685, %v2685
    %v2687 = vld [vmem:[%s11] sm:$0xf]
    %v2688 = vld [vmem:[%s11 + $0x4] sm:$0xf]
    %v2689 = vld [vmem:[%s11 + $0x8] sm:$0xf]
    %v2690 = vld [vmem:[%s11 + $0xc] sm:$0xf]
    %v2691 = vld [vmem:[%s12] sm:$0x1]
    %v2693 = vperm.slane %v2691, 0
    %v2699 = vunpack.c.l.b16 %v2687
    %v2700 = vunpack.c.l.b16 %v2688
    %v2701 = vunpack.c.l.b16 %v2689
    %v2702 = vunpack.c.l.b16 %v2690
    %v2703 = vpack.c.b16 %v2700, %v2699
    %v2704 = vpack.c.b16 %v2702, %v2701
    %vm2707 = vcmask 261120
    %v2709 = vsel %vm2707, %v2686, 0
    %2711 = vmatpush.bf16.msra.mxu0 0
    %2712 = vmatpush.bf16.msra.mxu0 0
    %2713 = vmatpush.bf16.msra.mxu0 0
    %2714 = vmatpush.bf16.msra.mxu0 0
    %2715 = vmatpush.bf16.msra.mxu0 0
    %2716 = vmatpush.bf16.msra.mxu0 0
    %2717 = vmatpush.bf16.msra.mxu0 %v2704
    %2718 = vmatpush.bf16.msra.mxu0 %v2703
    %2719 = vmatmul.bf16.gmra.mxu0 %v2709
    %v2720 = vpop.f32.mrf.mxu0
    %v2721 = vadd.f32 %v2693, %v2720
    %v2722 = vpop.f32.mrf.mxu0
    %2723 = vdwg.mxu0
    %2724 = vst [vmem:[%s13] sm:$0xff] %v2721
    // Predicated region
    $region70: #{lstm_model_forward.1} parent=1 // pred_check
      _
    $region71: #{lstm_model_forward.1} parent=1 // pred_check_branch
      %2726 = sbr.rel (0) target = $region73
    $region72: #{lstm_model_forward.1} parent=1 // pred_region
      _
    $region73: #{lstm_model_forward.1} parent=1 // pred_fallthru
      _
    // Predicated region
    $region74: #{lstm_model_forward.1} parent=1 // pred_check
      _
    $region75: #{lstm_model_forward.1} parent=1 // pred_check_branch
      %2728 = sbr.rel (0) target = $region77
    $region76: #{lstm_model_forward.1} parent=1 // pred_region
      _
    $region77: #{lstm_model_forward.1} parent=1 // pred_fallthru
      _
    %2729 = vsyncpa [#allocation4], 1
    %2730 = vsyncpa [#allocation6], 1
    %2731 = vsyncpa [#allocation9], 1

</llo_original>
